<compile_context>
chip_gen: v6e
topology: v6e:2x2x1
jax: 0.10.0
libtpu: 0.0.40
codegen_flags: <defaults>
</compile_context>

<pallas_src>
import functools

import jax
import jax.numpy as jnp
from jax.experimental import pallas as pl
from jax.experimental.pallas import tpu as pltpu


def _transformer_layer_kernel(
    x_ref,        # (BB, N, C)   activation block (pipelined over batch blocks)
    ln1_g_ref,    # (1, C)  f32
    ln1_b_ref,    # (1, C)  f32
    wq_ref,       # (C, C)  compute_dtype, 1/sqrt(head_dim) pre-folded
    wkv_ref,      # (C, 2C) compute_dtype
    wproj_ref,    # (C, C)  compute_dtype
    bproj_ref,    # (1, C)  f32
    ln2_g_ref,    # (1, C)  f32
    ln2_b_ref,    # (1, C)  f32
    w1_ref,       # (C, H)  compute_dtype
    b1_ref,       # (1, H)  f32
    w2_ref,       # (H, C)  compute_dtype
    b2_ref,       # (1, C)  f32
    o_ref,        # (BB, N, C)
    heads_ref,    # VMEM scratch (BB, N, C) compute_dtype — assembled head outputs
    *,
    num_heads: int,
    compute_dtype,
    approx_recip: bool,
):
    eps = 1e-5
    f32 = jnp.float32
    BB, N, C = x_ref.shape
    HD = C // num_heads
    M = BB * N

    def layer_norm(v, g_ref, b_ref):
        mu = jnp.mean(v, axis=-1, keepdims=True)
        var = jnp.mean((v - mu) ** 2, axis=-1, keepdims=True)
        return (v - mu) * jax.lax.rsqrt(var + eps) * g_ref[0] + b_ref[0]

    # ---- norm1 (f32 statistics); (BB, N) flattened into the GEMM M dimension ----
    x = x_ref[...].astype(f32).reshape(M, C)
    xn_c = layer_norm(x, ln1_g_ref, ln1_b_ref).astype(compute_dtype)

    # ---- Q / KV projections (bias=False in the module), f32 MXU accumulation.
    #      The 1/sqrt(head_dim) scale is already folded into wq host-side. ----
    q3 = jnp.dot(xn_c, wq_ref[...], preferred_element_type=f32)
    q3 = q3.astype(compute_dtype).reshape(BB, N, C)
    kv = jnp.dot(xn_c, wkv_ref[...], preferred_element_type=f32).astype(compute_dtype)
    k3 = kv[:, :C].reshape(BB, N, C)
    v3 = kv[:, C:].reshape(BB, N, C)

    # ---- attention: per-head (N, N) scores + softmax (the contraction is
    #      inherently K=head_dim); each head's output lands in its column slice
    #      of the (BB, N, C) scratch so the output projection below is ONE
    #      K=C matmul instead of num_heads K=head_dim matmuls. ----
    for h in range(num_heads):
        sl = slice(h * HD, (h + 1) * HD)
        s = jnp.einsum("bnd,bmd->bnm", q3[:, :, sl], k3[:, :, sl],
                       preferred_element_type=f32)                      # (BB, N, N)
        s = s - jnp.max(s, axis=-1, keepdims=True)
        p = jnp.exp(s)
        denom = jnp.sum(p, axis=-1, keepdims=True)
        if approx_recip:
            inv = pl.reciprocal(denom, approx=True)                     # EUP
        else:
            inv = 1.0 / denom                                           # exact (f32 path)
        pv = jnp.einsum("bnm,bmd->bnd", p.astype(compute_dtype), v3[:, :, sl],
                        preferred_element_type=f32)                     # (BB, N, HD)
        heads_ref[:, :, sl] = (pv * inv).astype(compute_dtype)

    # ---- single fused output projection (K = C) + residual 1 ----
    attn_out = jnp.dot(heads_ref[...].reshape(M, C), wproj_ref[...],
                       preferred_element_type=f32) + bproj_ref[0]
    x1 = x + attn_out

    # ---- norm2 + MLP (ReLU; dropout = identity in forward/eval) + residual 2 ----
    x1n = layer_norm(x1, ln2_g_ref, ln2_b_ref).astype(compute_dtype)
    hid = jnp.dot(x1n, w1_ref[...], preferred_element_type=f32) + b1_ref[0]
    hid = jnp.maximum(hid, 0.0).astype(compute_dtype)
    mlp_out = jnp.dot(hid, w2_ref[...], preferred_element_type=f32) + b2_ref[0]

    o_ref[...] = (x1 + mlp_out).reshape(BB, N, C).astype(o_ref.dtype)


def _tpu_target_info():
    """Return (per-core VMEM capacity bytes, tensorcores per chip) with fallbacks."""
    vmem = None
    try:
        vmem = int(pltpu.get_tpu_info().vmem_capacity_bytes)
    except Exception:
        vmem = None
    kind = ""
    try:
        kind = jax.devices()[0].device_kind.lower()
    except Exception:
        pass
    num_tc = 2 if ("v7" in kind or "tpu7" in kind) else 1
    if vmem is not None and vmem <= (64 << 20):
        num_tc = max(num_tc, 2)          # 64 MiB per-TC parts (v7x) are dual-core
    if vmem is None:
        vmem = (64 << 20) if num_tc == 2 else (128 << 20)
    return vmem, num_tc


def transformer_layer_pallas(x, params, num_heads, *, block_b=None,
                             compute_dtype=jnp.bfloat16):
    B, N, C = x.shape
    H = params["w1"].shape[1]
    assert C % num_heads == 0
    HD = C // num_heads
    assert params["wkv"].shape[0] == C, "self-attention only (dim_ref == dim_self)"
    # TODO(synk): cross-attention (y != x) and the optional attention mask path
    # of MultiHeadAttention are not implemented (module's default self-attn path).

    vmem_cap, num_tc = _tpu_target_info()

    if block_b is None:
        # Pack batch rows into the GEMM M dimension: target ~512 rows per grid
        # step (fills the 256-wide MXU of v6e/v7x, >> fills v5e's 128-wide MXU).
        # Only on dual-TC parts (v7x) keep >= 2 "parallel" grid steps so both
        # TensorCores get work; on single-TC v5e/v6e splitting would just halve
        # the MXU row fill and add ~0.35 us per extra step.
        target_rows = 512
        divisors = [d for d in range(1, B + 1) if B % d == 0]
        fitting = [d for d in divisors if d * N <= target_rows] or [1]
        block_b = max(fitting)
        if num_tc > 1 and B >= num_tc:
            capped = [d for d in fitting if d <= B // num_tc]
            if capped:
                block_b = max(capped)
        # TODO(synk): on v7x with tiny batches, pad B instead of shrinking block_b.
    assert B % block_b == 0, "block_b must divide the batch size"
    grid = (B // block_b,)

    # Host-side weight prep: fold the 1/sqrt(head_dim) scale into wq (exact) and
    # narrow the big GEMM weights to compute_dtype (halves DMA bytes and VMEM
    # residency for bf16). Biases and LayerNorm params stay f32.
    scale = float(HD) ** (-0.5)
    wq = (params["wq"] * scale).astype(compute_dtype)
    wkv = params["wkv"].astype(compute_dtype)
    wproj = params["wproj"].astype(compute_dtype)
    w1 = params["w1"].astype(compute_dtype)
    w2 = params["w2"].astype(compute_dtype)

    kernel = functools.partial(
        _transformer_layer_kernel,
        num_heads=num_heads,
        compute_dtype=compute_dtype,
        approx_recip=(jnp.dtype(compute_dtype) != jnp.float32),
    )

    # Constant-index operands: full-array, single-buffered VMEM residents
    # (no pointless double-buffering across the batch grid).
    vmem_resident = pl.BlockSpec(memory_space=pltpu.MemorySpace.VMEM)
    in_specs = [
        pl.BlockSpec((block_b, N, C), lambda i: (i, 0, 0)),   # x (pipelined)
        vmem_resident, vmem_resident,                          # ln1_g, ln1_b
        vmem_resident, vmem_resident, vmem_resident,           # wq, wkv, wproj
        vmem_resident,                                         # bproj
        vmem_resident, vmem_resident,                          # ln2_g, ln2_b
        vmem_resident, vmem_resident,                          # w1, b1
        vmem_resident, vmem_resident,                          # w2, b2
    ]
    out_spec = pl.BlockSpec((block_b, N, C), lambda i: (i, 0, 0))

    # Generation-aware VMEM budget: ~85% of per-core capacity (headroom for
    # Mosaic internal scratch, semaphores and the double-buffered x/o blocks).
    itemsize = jnp.dtype(compute_dtype).itemsize
    weight_bytes = (wq.size + wkv.size + wproj.size + w1.size + w2.size) * itemsize
    small_bytes = 4 * (6 * C + H)                             # LN params + biases (f32)
    act_bytes = 2 * 2 * block_b * N * C * x.dtype.itemsize    # x + o blocks, double-buffered
    scratch_bytes = (block_b * N * C * itemsize               # heads scratch
                     + 12 * block_b * N * max(C, H, 2 * C) * 4)  # f32 intermediates headroom
    budget = int(0.85 * vmem_cap)
    vmem_limit = int(min(
        max(2 * (weight_bytes + small_bytes + act_bytes + scratch_bytes), 32 << 20),
        budget,
    ))

    return pl.pallas_call(
        kernel,
        out_shape=jax.ShapeDtypeStruct((B, N, C), x.dtype),
        grid_spec=pltpu.PrefetchScalarGridSpec(
            num_scalar_prefetch=0,
            grid=grid,
            in_specs=in_specs,
            out_specs=out_spec,
            scratch_shapes=[pltpu.VMEM((block_b, N, C), compute_dtype)],
        ),
        compiler_params=pltpu.CompilerParams(
            dimension_semantics=("parallel",),
            vmem_limit_bytes=vmem_limit,
        ),
    )(
        x,
        params["ln1_g"], params["ln1_b"],
        wq, wkv, wproj, params["bproj"],
        params["ln2_g"], params["ln2_b"],
        w1, params["b1"],
        w2, params["b2"],
    )


def make_params(key, dim_self, dim_ref, num_heads, mlp_ratio):
    """Deterministic synthetic params.

    Linear weights are stored as (in_dim, out_dim) so y = x @ W + b, equivalent
    to PyTorch's y = x @ W_pt.T + b. TransformerLayer uses bias=False for the Q
    and KV projections, bias=True elsewhere.
    """
    hid = int(dim_self * mlp_ratio)
    ks = jax.random.split(key, 8)
    s = 0.02
    return {
        "ln1_g": jnp.ones((1, dim_self), jnp.float32),
        "ln1_b": jnp.zeros((1, dim_self), jnp.float32),
        "wq": s * jax.random.normal(ks[0], (dim_self, dim_self), jnp.float32),
        "wkv": s * jax.random.normal(ks[1], (dim_ref, 2 * dim_self), jnp.float32),
        "wproj": s * jax.random.normal(ks[2], (dim_self, dim_self), jnp.float32),
        "bproj": s * jax.random.normal(ks[3], (1, dim_self), jnp.float32),
        "ln2_g": jnp.ones((1, dim_self), jnp.float32),
        "ln2_b": jnp.zeros((1, dim_self), jnp.float32),
        "w1": s * jax.random.normal(ks[4], (dim_self, hid), jnp.float32),
        "b1": s * jax.random.normal(ks[5], (1, hid), jnp.float32),
        "w2": s * jax.random.normal(ks[6], (hid, dim_self), jnp.float32),
        "b2": s * jax.random.normal(ks[7], (1, dim_self), jnp.float32),
    }


def transformer_layer_ref(x, p, num_heads):
    """Pure-JAX reference mirroring the PyTorch forward (dropout = identity)."""
    eps = 1e-5

    def ln(v, g, b):
        mu = v.mean(-1, keepdims=True)
        var = ((v - mu) ** 2).mean(-1, keepdims=True)
        return (v - mu) / jnp.sqrt(var + eps) * g + b

    B, N, C = x.shape
    HD = C // num_heads
    xn = ln(x, p["ln1_g"][0], p["ln1_b"][0])
    q = xn @ p["wq"]
    kv = xn @ p["wkv"]
    k, v = kv[..., :C], kv[..., C:]
    qh = q.reshape(B, N, num_heads, HD)
    kh = k.reshape(B, N, num_heads, HD)
    vh = v.reshape(B, N, num_heads, HD)
    att = jnp.einsum("bnhd,bmhd->bnmh", qh, kh) * (HD ** -0.5)
    att = jax.nn.softmax(att, axis=2)
    out = jnp.einsum("bnmh,bmhd->bnhd", att, vh).reshape(B, N, C)
    out = out @ p["wproj"] + p["bproj"][0]
    x1 = x + out
    x1n = ln(x1, p["ln2_g"][0], p["ln2_b"][0])
    hid = jax.nn.relu(x1n @ p["w1"] + p["b1"][0])
    return x1 + hid @ p["w2"] + p["b2"][0]


if __name__ == "__main__":
    # Small but TPU-friendly shapes: batch=4, seq=8 (multiple of 8),
    # dim_self=dim_ref=128 (lane-dense), heads=4, mlp_ratio=4 (hidden=512).
    B, N, C = 4, 8, 128
    NUM_HEADS = 4
    MLP_RATIO = 4.0

    key = jax.random.PRNGKey(0)
    kx, kp = jax.random.split(key)
    x = jax.random.normal(kx, (B, N, C), jnp.float32)
    params = make_params(kp, C, C, NUM_HEADS, MLP_RATIO)

    ref = transformer_layer_ref(x, params, NUM_HEADS)

    # f32 GEMM operands + exact softmax divide: tight check vs the reference.
    out_f32 = transformer_layer_pallas(x, params, NUM_HEADS,
                                       compute_dtype=jnp.float32)
    out_f32 = jax.block_until_ready(out_f32)
    assert out_f32.shape == (B, N, C)
    assert jnp.allclose(out_f32, ref, atol=1e-3, rtol=1e-3), "f32 mismatch vs reference"

    # bf16 GEMM operands (f32 accumulation, f32 LN/softmax stats): looser tolerance.
    out_bf16 = transformer_layer_pallas(x, params, NUM_HEADS,
                                        compute_dtype=jnp.bfloat16)
    out_bf16 = jax.block_until_ready(out_bf16)
    assert out_bf16.shape == (B, N, C)
    assert jnp.allclose(out_bf16, ref, atol=3e-2, rtol=3e-2), "bf16 mismatch vs reference"

    print("KERNEL_OK")
</pallas_src>

<mosaic_0001>
module attributes {stable_mosaic.version = 11 : i64} {
  func.func @_transformer_layer_kernel(%arg0: i32, %arg1: memref<4x8x128xf32, #tpu.memory_space<vmem>>, %arg2: memref<1x128xf32, #tpu.memory_space<vmem>>, %arg3: memref<1x128xf32, #tpu.memory_space<vmem>>, %arg4: memref<128x128xf32, #tpu.memory_space<vmem>>, %arg5: memref<128x256xf32, #tpu.memory_space<vmem>>, %arg6: memref<128x128xf32, #tpu.memory_space<vmem>>, %arg7: memref<1x128xf32, #tpu.memory_space<vmem>>, %arg8: memref<1x128xf32, #tpu.memory_space<vmem>>, %arg9: memref<1x128xf32, #tpu.memory_space<vmem>>, %arg10: memref<128x512xf32, #tpu.memory_space<vmem>>, %arg11: memref<1x512xf32, #tpu.memory_space<vmem>>, %arg12: memref<512x128xf32, #tpu.memory_space<vmem>>, %arg13: memref<1x128xf32, #tpu.memory_space<vmem>>, %arg14: memref<4x8x128xf32, #tpu.memory_space<vmem>>, %arg15: memref<4x8x128xf32, #tpu.memory_space<vmem>>) attributes {dimension_semantics = [#tpu.dimension_semantics<parallel>], iteration_bounds = array<i64: 1>, scalar_prefetch = 0 : i64, scratch_operands = 1 : i64, tpu.core_type = #tpu.core_type<tc>, window_params = [{transform_indices = @transform_0, window_bounds = array<i64: 4, 8, 128>}, {pipeline_mode = #tpu.pipeline_mode<synchronous>, transform_indices = @transform_1, window_bounds = array<i64: 1, 128>}, {pipeline_mode = #tpu.pipeline_mode<synchronous>, transform_indices = @transform_2, window_bounds = array<i64: 1, 128>}, {pipeline_mode = #tpu.pipeline_mode<synchronous>, transform_indices = @transform_3, window_bounds = array<i64: 128, 128>}, {pipeline_mode = #tpu.pipeline_mode<synchronous>, transform_indices = @transform_4, window_bounds = array<i64: 128, 256>}, {pipeline_mode = #tpu.pipeline_mode<synchronous>, transform_indices = @transform_5, window_bounds = array<i64: 128, 128>}, {pipeline_mode = #tpu.pipeline_mode<synchronous>, transform_indices = @transform_6, window_bounds = array<i64: 1, 128>}, {pipeline_mode = #tpu.pipeline_mode<synchronous>, transform_indices = @transform_7, window_bounds = array<i64: 1, 128>}, {pipeline_mode = #tpu.pipeline_mode<synchronous>, transform_indices = @transform_8, window_bounds = array<i64: 1, 128>}, {pipeline_mode = #tpu.pipeline_mode<synchronous>, transform_indices = @transform_9, window_bounds = array<i64: 128, 512>}, {pipeline_mode = #tpu.pipeline_mode<synchronous>, transform_indices = @transform_10, window_bounds = array<i64: 1, 512>}, {pipeline_mode = #tpu.pipeline_mode<synchronous>, transform_indices = @transform_11, window_bounds = array<i64: 512, 128>}, {pipeline_mode = #tpu.pipeline_mode<synchronous>, transform_indices = @transform_12, window_bounds = array<i64: 1, 128>}, {transform_indices = @transform_13, window_bounds = array<i64: 4, 8, 128>}]} {
    %c0 = arith.constant 0 : index
    %c0_0 = arith.constant 0 : index
    %c0_1 = arith.constant 0 : index
    %0 = vector.load %arg1[%c0, %c0_0, %c0_1] : memref<4x8x128xf32, #tpu.memory_space<vmem>>, vector<4x8x128xf32>
    %1 = vector.shape_cast %0 : vector<4x8x128xf32> to vector<32x128xf32>
    %cst = arith.constant dense<0.000000e+00> : vector<32xf32>
    %2 = vector.multi_reduction <add>, %1, %cst [1] : vector<32x128xf32> to vector<32xf32>
    %3 = vector.shape_cast %2 : vector<32xf32> to vector<32x1xf32>
    %cst_2 = arith.constant 1.280000e+02 : f32
    %4 = vector.broadcast %cst_2 : f32 to vector<32x1xf32>
    %5 = arith.divf %3, %4 : vector<32x1xf32>
    %6 = vector.broadcast %5 : vector<32x1xf32> to vector<32x128xf32>
    %7 = arith.subf %1, %6 : vector<32x128xf32>
    %8 = arith.mulf %7, %7 : vector<32x128xf32>
    %cst_3 = arith.constant dense<0.000000e+00> : vector<32xf32>
    %9 = vector.multi_reduction <add>, %8, %cst_3 [1] : vector<32x128xf32> to vector<32xf32>
    %10 = vector.shape_cast %9 : vector<32xf32> to vector<32x1xf32>
    %cst_4 = arith.constant 1.280000e+02 : f32
    %11 = vector.broadcast %cst_4 : f32 to vector<32x1xf32>
    %12 = arith.divf %10, %11 : vector<32x1xf32>
    %13 = vector.broadcast %5 : vector<32x1xf32> to vector<32x128xf32>
    %14 = arith.subf %1, %13 : vector<32x128xf32>
    %cst_5 = arith.constant 9.99999974E-6 : f32
    %15 = vector.broadcast %cst_5 : f32 to vector<32x1xf32>
    %16 = arith.addf %12, %15 : vector<32x1xf32>
    %17 = math.rsqrt %16 : vector<32x1xf32>
    %18 = vector.broadcast %17 : vector<32x1xf32> to vector<32x128xf32>
    %19 = arith.mulf %14, %18 : vector<32x128xf32>
    %c0_6 = arith.constant 0 : index
    %c0_7 = arith.constant 0 : index
    %20 = vector.load %arg2[%c0_6, %c0_7] : memref<1x128xf32, #tpu.memory_space<vmem>>, vector<1x128xf32>
    %21 = vector.shape_cast %20 : vector<1x128xf32> to vector<128xf32>
    %22 = vector.shape_cast %21 : vector<128xf32> to vector<1x128xf32>
    %23 = vector.broadcast %22 : vector<1x128xf32> to vector<32x128xf32>
    %24 = arith.mulf %19, %23 : vector<32x128xf32>
    %c0_8 = arith.constant 0 : index
    %c0_9 = arith.constant 0 : index
    %25 = vector.load %arg3[%c0_8, %c0_9] : memref<1x128xf32, #tpu.memory_space<vmem>>, vector<1x128xf32>
    %26 = vector.shape_cast %25 : vector<1x128xf32> to vector<128xf32>
    %27 = vector.shape_cast %26 : vector<128xf32> to vector<1x128xf32>
    %28 = vector.broadcast %27 : vector<1x128xf32> to vector<32x128xf32>
    %29 = arith.addf %24, %28 : vector<32x128xf32>
    %c0_10 = arith.constant 0 : index
    %c0_11 = arith.constant 0 : index
    %30 = vector.load %arg4[%c0_10, %c0_11] : memref<128x128xf32, #tpu.memory_space<vmem>>, vector<128x128xf32>
    %cst_12 = arith.constant dense<0.000000e+00> : vector<32x128xf32>
    %31 = tpu.matmul %29, %30, %cst_12 {dimension_numbers = #tpu.dot_dimension_numbers<[1], [0], [0], [1], [0, 0, 1, 1], [], []>} : vector<32x128xf32>, vector<128x128xf32>, vector<32x128xf32> -> vector<32x128xf32>
    %32 = vector.shape_cast %31 : vector<32x128xf32> to vector<4x8x128xf32>
    %c0_13 = arith.constant 0 : index
    %c0_14 = arith.constant 0 : index
    %33 = vector.load %arg5[%c0_13, %c0_14] : memref<128x256xf32, #tpu.memory_space<vmem>>, vector<128x256xf32>
    %cst_15 = arith.constant dense<0.000000e+00> : vector<32x256xf32>
    %34 = tpu.matmul %29, %33, %cst_15 {dimension_numbers = #tpu.dot_dimension_numbers<[1], [0], [0], [1], [0, 0, 1, 1], [], []>} : vector<32x128xf32>, vector<128x256xf32>, vector<32x256xf32> -> vector<32x256xf32>
    %35 = vector.extract_strided_slice %34 {offsets = [0, 0], sizes = [32, 128], strides = [1, 1]} : vector<32x256xf32> to vector<32x128xf32>
    %36 = vector.shape_cast %35 : vector<32x128xf32> to vector<4x8x128xf32>
    %37 = vector.extract_strided_slice %34 {offsets = [0, 128], sizes = [32, 128], strides = [1, 1]} : vector<32x256xf32> to vector<32x128xf32>
    %38 = vector.shape_cast %37 : vector<32x128xf32> to vector<4x8x128xf32>
    %39 = vector.extract_strided_slice %32 {offsets = [0, 0, 0], sizes = [4, 8, 32], strides = [1, 1, 1]} : vector<4x8x128xf32> to vector<4x8x32xf32>
    %40 = vector.extract_strided_slice %36 {offsets = [0, 0, 0], sizes = [4, 8, 32], strides = [1, 1, 1]} : vector<4x8x128xf32> to vector<4x8x32xf32>
    "tpu.trace_start"() <{level = 10 : i32, message = "bnd,bmd->bnm"}> : () -> ()
    %cst_16 = arith.constant dense<0.000000e+00> : vector<4x8x8xf32>
    %41 = tpu.matmul %39, %40, %cst_16 {dimension_numbers = #tpu.dot_dimension_numbers<[2], [2], [1], [1], [0, 0, 0, 1, 1, 1], [0], [0]>} : vector<4x8x32xf32>, vector<4x8x32xf32>, vector<4x8x8xf32> -> vector<4x8x8xf32>
    "tpu.trace_stop"() : () -> ()
    %cst_17 = arith.constant dense<0xFF800000> : vector<4x8xf32>
    %42 = vector.multi_reduction <maximumf>, %41, %cst_17 [2] : vector<4x8x8xf32> to vector<4x8xf32>
    %43 = vector.shape_cast %42 : vector<4x8xf32> to vector<4x8x1xf32>
    %44 = vector.broadcast %43 : vector<4x8x1xf32> to vector<4x8x8xf32>
    %45 = arith.subf %41, %44 : vector<4x8x8xf32>
    %46 = math.exp %45 : vector<4x8x8xf32>
    %cst_18 = arith.constant dense<0.000000e+00> : vector<4x8xf32>
    %47 = vector.multi_reduction <add>, %46, %cst_18 [2] : vector<4x8x8xf32> to vector<4x8xf32>
    %48 = vector.shape_cast %47 : vector<4x8xf32> to vector<4x8x1xf32>
    %cst_19 = arith.constant 1.000000e+00 : f32
    %49 = vector.broadcast %cst_19 : f32 to vector<4x8x1xf32>
    %50 = arith.divf %49, %48 : vector<4x8x1xf32>
    %51 = vector.extract_strided_slice %38 {offsets = [0, 0, 0], sizes = [4, 8, 32], strides = [1, 1, 1]} : vector<4x8x128xf32> to vector<4x8x32xf32>
    "tpu.trace_start"() <{level = 10 : i32, message = "bnm,bmd->bnd"}> : () -> ()
    %cst_20 = arith.constant dense<0.000000e+00> : vector<4x8x32xf32>
    %52 = tpu.matmul %46, %51, %cst_20 {dimension_numbers = #tpu.dot_dimension_numbers<[2], [1], [1], [2], [0, 0, 0, 1, 1, 2], [0], [0]>} : vector<4x8x8xf32>, vector<4x8x32xf32>, vector<4x8x32xf32> -> vector<4x8x32xf32>
    "tpu.trace_stop"() : () -> ()
    %53 = vector.broadcast %50 : vector<4x8x1xf32> to vector<4x8x32xf32>
    %54 = arith.mulf %52, %53 : vector<4x8x32xf32>
    %c0_21 = arith.constant 0 : index
    %c0_22 = arith.constant 0 : index
    %c0_23 = arith.constant 0 : index
    %55 = vector.load %arg15[%c0_21, %c0_22, %c0_23] : memref<4x8x128xf32, #tpu.memory_space<vmem>>, vector<4x8x32xf32>
    tpu.vector_store %arg15[%c0_21, %c0_22, %c0_23], %54 {strides = array<i32>} : memref<4x8x128xf32, #tpu.memory_space<vmem>>, vector<4x8x32xf32>,
    %56 = vector.extract_strided_slice %32 {offsets = [0, 0, 32], sizes = [4, 8, 32], strides = [1, 1, 1]} : vector<4x8x128xf32> to vector<4x8x32xf32>
    %57 = vector.extract_strided_slice %36 {offsets = [0, 0, 32], sizes = [4, 8, 32], strides = [1, 1, 1]} : vector<4x8x128xf32> to vector<4x8x32xf32>
    "tpu.trace_start"() <{level = 10 : i32, message = "bnd,bmd->bnm"}> : () -> ()
    %cst_24 = arith.constant dense<0.000000e+00> : vector<4x8x8xf32>
    %58 = tpu.matmul %56, %57, %cst_24 {dimension_numbers = #tpu.dot_dimension_numbers<[2], [2], [1], [1], [0, 0, 0, 1, 1, 1], [0], [0]>} : vector<4x8x32xf32>, vector<4x8x32xf32>, vector<4x8x8xf32> -> vector<4x8x8xf32>
    "tpu.trace_stop"() : () -> ()
    %cst_25 = arith.constant dense<0xFF800000> : vector<4x8xf32>
    %59 = vector.multi_reduction <maximumf>, %58, %cst_25 [2] : vector<4x8x8xf32> to vector<4x8xf32>
    %60 = vector.shape_cast %59 : vector<4x8xf32> to vector<4x8x1xf32>
    %61 = vector.broadcast %60 : vector<4x8x1xf32> to vector<4x8x8xf32>
    %62 = arith.subf %58, %61 : vector<4x8x8xf32>
    %63 = math.exp %62 : vector<4x8x8xf32>
    %cst_26 = arith.constant dense<0.000000e+00> : vector<4x8xf32>
    %64 = vector.multi_reduction <add>, %63, %cst_26 [2] : vector<4x8x8xf32> to vector<4x8xf32>
    %65 = vector.shape_cast %64 : vector<4x8xf32> to vector<4x8x1xf32>
    %cst_27 = arith.constant 1.000000e+00 : f32
    %66 = vector.broadcast %cst_27 : f32 to vector<4x8x1xf32>
    %67 = arith.divf %66, %65 : vector<4x8x1xf32>
    %68 = vector.extract_strided_slice %38 {offsets = [0, 0, 32], sizes = [4, 8, 32], strides = [1, 1, 1]} : vector<4x8x128xf32> to vector<4x8x32xf32>
    "tpu.trace_start"() <{level = 10 : i32, message = "bnm,bmd->bnd"}> : () -> ()
    %cst_28 = arith.constant dense<0.000000e+00> : vector<4x8x32xf32>
    %69 = tpu.matmul %63, %68, %cst_28 {dimension_numbers = #tpu.dot_dimension_numbers<[2], [1], [1], [2], [0, 0, 0, 1, 1, 2], [0], [0]>} : vector<4x8x8xf32>, vector<4x8x32xf32>, vector<4x8x32xf32> -> vector<4x8x32xf32>
    "tpu.trace_stop"() : () -> ()
    %70 = vector.broadcast %67 : vector<4x8x1xf32> to vector<4x8x32xf32>
    %71 = arith.mulf %69, %70 : vector<4x8x32xf32>
    %c0_29 = arith.constant 0 : index
    %c0_30 = arith.constant 0 : index
    %c32 = arith.constant 32 : index
    %72 = vector.load %arg15[%c0_29, %c0_30, %c32] : memref<4x8x128xf32, #tpu.memory_space<vmem>>, vector<4x8x32xf32>
    tpu.vector_store %arg15[%c0_29, %c0_30, %c32], %71 {strides = array<i32>} : memref<4x8x128xf32, #tpu.memory_space<vmem>>, vector<4x8x32xf32>,
    %73 = vector.extract_strided_slice %32 {offsets = [0, 0, 64], sizes = [4, 8, 32], strides = [1, 1, 1]} : vector<4x8x128xf32> to vector<4x8x32xf32>
    %74 = vector.extract_strided_slice %36 {offsets = [0, 0, 64], sizes = [4, 8, 32], strides = [1, 1, 1]} : vector<4x8x128xf32> to vector<4x8x32xf32>
    "tpu.trace_start"() <{level = 10 : i32, message = "bnd,bmd->bnm"}> : () -> ()
    %cst_31 = arith.constant dense<0.000000e+00> : vector<4x8x8xf32>
    %75 = tpu.matmul %73, %74, %cst_31 {dimension_numbers = #tpu.dot_dimension_numbers<[2], [2], [1], [1], [0, 0, 0, 1, 1, 1], [0], [0]>} : vector<4x8x32xf32>, vector<4x8x32xf32>, vector<4x8x8xf32> -> vector<4x8x8xf32>
    "tpu.trace_stop"() : () -> ()
    %cst_32 = arith.constant dense<0xFF800000> : vector<4x8xf32>
    %76 = vector.multi_reduction <maximumf>, %75, %cst_32 [2] : vector<4x8x8xf32> to vector<4x8xf32>
    %77 = vector.shape_cast %76 : vector<4x8xf32> to vector<4x8x1xf32>
    %78 = vector.broadcast %77 : vector<4x8x1xf32> to vector<4x8x8xf32>
    %79 = arith.subf %75, %78 : vector<4x8x8xf32>
    %80 = math.exp %79 : vector<4x8x8xf32>
    %cst_33 = arith.constant dense<0.000000e+00> : vector<4x8xf32>
    %81 = vector.multi_reduction <add>, %80, %cst_33 [2] : vector<4x8x8xf32> to vector<4x8xf32>
    %82 = vector.shape_cast %81 : vector<4x8xf32> to vector<4x8x1xf32>
    %cst_34 = arith.constant 1.000000e+00 : f32
    %83 = vector.broadcast %cst_34 : f32 to vector<4x8x1xf32>
    %84 = arith.divf %83, %82 : vector<4x8x1xf32>
    %85 = vector.extract_strided_slice %38 {offsets = [0, 0, 64], sizes = [4, 8, 32], strides = [1, 1, 1]} : vector<4x8x128xf32> to vector<4x8x32xf32>
    "tpu.trace_start"() <{level = 10 : i32, message = "bnm,bmd->bnd"}> : () -> ()
    %cst_35 = arith.constant dense<0.000000e+00> : vector<4x8x32xf32>
    %86 = tpu.matmul %80, %85, %cst_35 {dimension_numbers = #tpu.dot_dimension_numbers<[2], [1], [1], [2], [0, 0, 0, 1, 1, 2], [0], [0]>} : vector<4x8x8xf32>, vector<4x8x32xf32>, vector<4x8x32xf32> -> vector<4x8x32xf32>
    "tpu.trace_stop"() : () -> ()
    %87 = vector.broadcast %84 : vector<4x8x1xf32> to vector<4x8x32xf32>
    %88 = arith.mulf %86, %87 : vector<4x8x32xf32>
    %c0_36 = arith.constant 0 : index
    %c0_37 = arith.constant 0 : index
    %c64 = arith.constant 64 : index
    %89 = vector.load %arg15[%c0_36, %c0_37, %c64] : memref<4x8x128xf32, #tpu.memory_space<vmem>>, vector<4x8x32xf32>
    tpu.vector_store %arg15[%c0_36, %c0_37, %c64], %88 {strides = array<i32>} : memref<4x8x128xf32, #tpu.memory_space<vmem>>, vector<4x8x32xf32>,
    %90 = vector.extract_strided_slice %32 {offsets = [0, 0, 96], sizes = [4, 8, 32], strides = [1, 1, 1]} : vector<4x8x128xf32> to vector<4x8x32xf32>
    %91 = vector.extract_strided_slice %36 {offsets = [0, 0, 96], sizes = [4, 8, 32], strides = [1, 1, 1]} : vector<4x8x128xf32> to vector<4x8x32xf32>
    "tpu.trace_start"() <{level = 10 : i32, message = "bnd,bmd->bnm"}> : () -> ()
    %cst_38 = arith.constant dense<0.000000e+00> : vector<4x8x8xf32>
    %92 = tpu.matmul %90, %91, %cst_38 {dimension_numbers = #tpu.dot_dimension_numbers<[2], [2], [1], [1], [0, 0, 0, 1, 1, 1], [0], [0]>} : vector<4x8x32xf32>, vector<4x8x32xf32>, vector<4x8x8xf32> -> vector<4x8x8xf32>
    "tpu.trace_stop"() : () -> ()
    %cst_39 = arith.constant dense<0xFF800000> : vector<4x8xf32>
    %93 = vector.multi_reduction <maximumf>, %92, %cst_39 [2] : vector<4x8x8xf32> to vector<4x8xf32>
    %94 = vector.shape_cast %93 : vector<4x8xf32> to vector<4x8x1xf32>
    %95 = vector.broadcast %94 : vector<4x8x1xf32> to vector<4x8x8xf32>
    %96 = arith.subf %92, %95 : vector<4x8x8xf32>
    %97 = math.exp %96 : vector<4x8x8xf32>
    %cst_40 = arith.constant dense<0.000000e+00> : vector<4x8xf32>
    %98 = vector.multi_reduction <add>, %97, %cst_40 [2] : vector<4x8x8xf32> to vector<4x8xf32>
    %99 = vector.shape_cast %98 : vector<4x8xf32> to vector<4x8x1xf32>
    %cst_41 = arith.constant 1.000000e+00 : f32
    %100 = vector.broadcast %cst_41 : f32 to vector<4x8x1xf32>
    %101 = arith.divf %100, %99 : vector<4x8x1xf32>
    %102 = vector.extract_strided_slice %38 {offsets = [0, 0, 96], sizes = [4, 8, 32], strides = [1, 1, 1]} : vector<4x8x128xf32> to vector<4x8x32xf32>
    "tpu.trace_start"() <{level = 10 : i32, message = "bnm,bmd->bnd"}> : () -> ()
    %cst_42 = arith.constant dense<0.000000e+00> : vector<4x8x32xf32>
    %103 = tpu.matmul %97, %102, %cst_42 {dimension_numbers = #tpu.dot_dimension_numbers<[2], [1], [1], [2], [0, 0, 0, 1, 1, 2], [0], [0]>} : vector<4x8x8xf32>, vector<4x8x32xf32>, vector<4x8x32xf32> -> vector<4x8x32xf32>
    "tpu.trace_stop"() : () -> ()
    %104 = vector.broadcast %101 : vector<4x8x1xf32> to vector<4x8x32xf32>
    %105 = arith.mulf %103, %104 : vector<4x8x32xf32>
    %c0_43 = arith.constant 0 : index
    %c0_44 = arith.constant 0 : index
    %c96 = arith.constant 96 : index
    %106 = vector.load %arg15[%c0_43, %c0_44, %c96] : memref<4x8x128xf32, #tpu.memory_space<vmem>>, vector<4x8x32xf32>
    tpu.vector_store %arg15[%c0_43, %c0_44, %c96], %105 {strides = array<i32>} : memref<4x8x128xf32, #tpu.memory_space<vmem>>, vector<4x8x32xf32>,
    %c0_45 = arith.constant 0 : index
    %c0_46 = arith.constant 0 : index
    %c0_47 = arith.constant 0 : index
    %107 = vector.load %arg15[%c0_45, %c0_46, %c0_47] : memref<4x8x128xf32, #tpu.memory_space<vmem>>, vector<4x8x128xf32>
    %108 = vector.shape_cast %107 : vector<4x8x128xf32> to vector<32x128xf32>
    %c0_48 = arith.constant 0 : index
    %c0_49 = arith.constant 0 : index
    %109 = vector.load %arg6[%c0_48, %c0_49] : memref<128x128xf32, #tpu.memory_space<vmem>>, vector<128x128xf32>
    %cst_50 = arith.constant dense<0.000000e+00> : vector<32x128xf32>
    %110 = tpu.matmul %108, %109, %cst_50 {dimension_numbers = #tpu.dot_dimension_numbers<[1], [0], [0], [1], [0, 0, 1, 1], [], []>} : vector<32x128xf32>, vector<128x128xf32>, vector<32x128xf32> -> vector<32x128xf32>
    %c0_51 = arith.constant 0 : index
    %c0_52 = arith.constant 0 : index
    %111 = vector.load %arg7[%c0_51, %c0_52] : memref<1x128xf32, #tpu.memory_space<vmem>>, vector<1x128xf32>
    %112 = vector.shape_cast %111 : vector<1x128xf32> to vector<128xf32>
    %113 = vector.shape_cast %112 : vector<128xf32> to vector<1x128xf32>
    %114 = vector.broadcast %113 : vector<1x128xf32> to vector<32x128xf32>
    %115 = arith.addf %110, %114 : vector<32x128xf32>
    %116 = arith.addf %1, %115 : vector<32x128xf32>
    %cst_53 = arith.constant dense<0.000000e+00> : vector<32xf32>
    %117 = vector.multi_reduction <add>, %116, %cst_53 [1] : vector<32x128xf32> to vector<32xf32>
    %118 = vector.shape_cast %117 : vector<32xf32> to vector<32x1xf32>
    %cst_54 = arith.constant 1.280000e+02 : f32
    %119 = vector.broadcast %cst_54 : f32 to vector<32x1xf32>
    %120 = arith.divf %118, %119 : vector<32x1xf32>
    %121 = vector.broadcast %120 : vector<32x1xf32> to vector<32x128xf32>
    %122 = arith.subf %116, %121 : vector<32x128xf32>
    %123 = arith.mulf %122, %122 : vector<32x128xf32>
    %cst_55 = arith.constant dense<0.000000e+00> : vector<32xf32>
    %124 = vector.multi_reduction <add>, %123, %cst_55 [1] : vector<32x128xf32> to vector<32xf32>
    %125 = vector.shape_cast %124 : vector<32xf32> to vector<32x1xf32>
    %cst_56 = arith.constant 1.280000e+02 : f32
    %126 = vector.broadcast %cst_56 : f32 to vector<32x1xf32>
    %127 = arith.divf %125, %126 : vector<32x1xf32>
    %128 = vector.broadcast %120 : vector<32x1xf32> to vector<32x128xf32>
    %129 = arith.subf %116, %128 : vector<32x128xf32>
    %cst_57 = arith.constant 9.99999974E-6 : f32
    %130 = vector.broadcast %cst_57 : f32 to vector<32x1xf32>
    %131 = arith.addf %127, %130 : vector<32x1xf32>
    %132 = math.rsqrt %131 : vector<32x1xf32>
    %133 = vector.broadcast %132 : vector<32x1xf32> to vector<32x128xf32>
    %134 = arith.mulf %129, %133 : vector<32x128xf32>
    %c0_58 = arith.constant 0 : index
    %c0_59 = arith.constant 0 : index
    %135 = vector.load %arg8[%c0_58, %c0_59] : memref<1x128xf32, #tpu.memory_space<vmem>>, vector<1x128xf32>
    %136 = vector.shape_cast %135 : vector<1x128xf32> to vector<128xf32>
    %137 = vector.shape_cast %136 : vector<128xf32> to vector<1x128xf32>
    %138 = vector.broadcast %137 : vector<1x128xf32> to vector<32x128xf32>
    %139 = arith.mulf %134, %138 : vector<32x128xf32>
    %c0_60 = arith.constant 0 : index
    %c0_61 = arith.constant 0 : index
    %140 = vector.load %arg9[%c0_60, %c0_61] : memref<1x128xf32, #tpu.memory_space<vmem>>, vector<1x128xf32>
    %141 = vector.shape_cast %140 : vector<1x128xf32> to vector<128xf32>
    %142 = vector.shape_cast %141 : vector<128xf32> to vector<1x128xf32>
    %143 = vector.broadcast %142 : vector<1x128xf32> to vector<32x128xf32>
    %144 = arith.addf %139, %143 : vector<32x128xf32>
    %c0_62 = arith.constant 0 : index
    %c0_63 = arith.constant 0 : index
    %145 = vector.load %arg10[%c0_62, %c0_63] : memref<128x512xf32, #tpu.memory_space<vmem>>, vector<128x512xf32>
    %cst_64 = arith.constant dense<0.000000e+00> : vector<32x512xf32>
    %146 = tpu.matmul %144, %145, %cst_64 {dimension_numbers = #tpu.dot_dimension_numbers<[1], [0], [0], [1], [0, 0, 1, 1], [], []>} : vector<32x128xf32>, vector<128x512xf32>, vector<32x512xf32> -> vector<32x512xf32>
    %c0_65 = arith.constant 0 : index
    %c0_66 = arith.constant 0 : index
    %147 = vector.load %arg11[%c0_65, %c0_66] : memref<1x512xf32, #tpu.memory_space<vmem>>, vector<1x512xf32>
    %148 = vector.shape_cast %147 : vector<1x512xf32> to vector<512xf32>
    %149 = vector.shape_cast %148 : vector<512xf32> to vector<1x512xf32>
    %150 = vector.broadcast %149 : vector<1x512xf32> to vector<32x512xf32>
    %151 = arith.addf %146, %150 : vector<32x512xf32>
    %cst_67 = arith.constant 0.000000e+00 : f32
    %152 = vector.broadcast %cst_67 : f32 to vector<32x512xf32>
    %153 = arith.maximumf %151, %152 : vector<32x512xf32>
    %c0_68 = arith.constant 0 : index
    %c0_69 = arith.constant 0 : index
    %154 = vector.load %arg12[%c0_68, %c0_69] : memref<512x128xf32, #tpu.memory_space<vmem>>, vector<512x128xf32>
    %cst_70 = arith.constant dense<0.000000e+00> : vector<32x128xf32>
    %155 = tpu.matmul %153, %154, %cst_70 {dimension_numbers = #tpu.dot_dimension_numbers<[1], [0], [0], [1], [0, 0, 1, 1], [], []>} : vector<32x512xf32>, vector<512x128xf32>, vector<32x128xf32> -> vector<32x128xf32>
    %c0_71 = arith.constant 0 : index
    %c0_72 = arith.constant 0 : index
    %156 = vector.load %arg13[%c0_71, %c0_72] : memref<1x128xf32, #tpu.memory_space<vmem>>, vector<1x128xf32>
    %157 = vector.shape_cast %156 : vector<1x128xf32> to vector<128xf32>
    %158 = vector.shape_cast %157 : vector<128xf32> to vector<1x128xf32>
    %159 = vector.broadcast %158 : vector<1x128xf32> to vector<32x128xf32>
    %160 = arith.addf %155, %159 : vector<32x128xf32>
    %161 = arith.addf %116, %160 : vector<32x128xf32>
    %162 = vector.shape_cast %161 : vector<32x128xf32> to vector<4x8x128xf32>
    %c0_73 = arith.constant 0 : index
    %c0_74 = arith.constant 0 : index
    %c0_75 = arith.constant 0 : index
    %163 = vector.load %arg14[%c0_73, %c0_74, %c0_75] : memref<4x8x128xf32, #tpu.memory_space<vmem>>, vector<4x8x128xf32>
    tpu.vector_store %arg14[%c0_73, %c0_74, %c0_75], %162 {strides = array<i32>} : memref<4x8x128xf32, #tpu.memory_space<vmem>>, vector<4x8x128xf32>,
    return
  }
  func.func @transform_0(%arg0: i32) -> (i32, i32, i32) {
    %c0_i32 = arith.constant 0 : i32
    %c0_i32_0 = arith.constant 0 : i32
    %c0_i32_1 = arith.constant 0 : i32
    return %arg0, %c0_i32, %c0_i32_0 : i32, i32, i32
  }
  func.func @transform_1(%arg0: i32) -> (i32, i32) {
    %c0_i32 = arith.constant 0 : i32
    %c0_i32_0 = arith.constant 0 : i32
    %c0_i32_1 = arith.constant 0 : i32
    return %c0_i32, %c0_i32_0 : i32, i32
  }
  func.func @transform_2(%arg0: i32) -> (i32, i32) {
    %c0_i32 = arith.constant 0 : i32
    %c0_i32_0 = arith.constant 0 : i32
    %c0_i32_1 = arith.constant 0 : i32
    return %c0_i32, %c0_i32_0 : i32, i32
  }
  func.func @transform_3(%arg0: i32) -> (i32, i32) {
    %c0_i32 = arith.constant 0 : i32
    %c0_i32_0 = arith.constant 0 : i32
    %c0_i32_1 = arith.constant 0 : i32
    return %c0_i32, %c0_i32_0 : i32, i32
  }
  func.func @transform_4(%arg0: i32) -> (i32, i32) {
    %c0_i32 = arith.constant 0 : i32
    %c0_i32_0 = arith.constant 0 : i32
    %c0_i32_1 = arith.constant 0 : i32
    return %c0_i32, %c0_i32_0 : i32, i32
  }
  func.func @transform_5(%arg0: i32) -> (i32, i32) {
    %c0_i32 = arith.constant 0 : i32
    %c0_i32_0 = arith.constant 0 : i32
    %c0_i32_1 = arith.constant 0 : i32
    return %c0_i32, %c0_i32_0 : i32, i32
  }
  func.func @transform_6(%arg0: i32) -> (i32, i32) {
    %c0_i32 = arith.constant 0 : i32
    %c0_i32_0 = arith.constant 0 : i32
    %c0_i32_1 = arith.constant 0 : i32
    return %c0_i32, %c0_i32_0 : i32, i32
  }
  func.func @transform_7(%arg0: i32) -> (i32, i32) {
    %c0_i32 = arith.constant 0 : i32
    %c0_i32_0 = arith.constant 0 : i32
    %c0_i32_1 = arith.constant 0 : i32
    return %c0_i32, %c0_i32_0 : i32, i32
  }
  func.func @transform_8(%arg0: i32) -> (i32, i32) {
    %c0_i32 = arith.constant 0 : i32
    %c0_i32_0 = arith.constant 0 : i32
    %c0_i32_1 = arith.constant 0 : i32
    return %c0_i32, %c0_i32_0 : i32, i32
  }
  func.func @transform_9(%arg0: i32) -> (i32, i32) {
    %c0_i32 = arith.constant 0 : i32
    %c0_i32_0 = arith.constant 0 : i32
    %c0_i32_1 = arith.constant 0 : i32
    return %c0_i32, %c0_i32_0 : i32, i32
  }
  func.func @transform_10(%arg0: i32) -> (i32, i32) {
    %c0_i32 = arith.constant 0 : i32
    %c0_i32_0 = arith.constant 0 : i32
    %c0_i32_1 = arith.constant 0 : i32
    return %c0_i32, %c0_i32_0 : i32, i32
  }
  func.func @transform_11(%arg0: i32) -> (i32, i32) {
    %c0_i32 = arith.constant 0 : i32
    %c0_i32_0 = arith.constant 0 : i32
    %c0_i32_1 = arith.constant 0 : i32
    return %c0_i32, %c0_i32_0 : i32, i32
  }
  func.func @transform_12(%arg0: i32) -> (i32, i32) {
    %c0_i32 = arith.constant 0 : i32
    %c0_i32_0 = arith.constant 0 : i32
    %c0_i32_1 = arith.constant 0 : i32
    return %c0_i32, %c0_i32_0 : i32, i32
  }
  func.func @transform_13(%arg0: i32) -> (i32, i32, i32) {
    %c0_i32 = arith.constant 0 : i32
    %c0_i32_0 = arith.constant 0 : i32
    %c0_i32_1 = arith.constant 0 : i32
    return %arg0, %c0_i32, %c0_i32_0 : i32, i32, i32
  }
}

</mosaic_0001>

<llo_original>
// kernel: tpu_custom_call.1
$region0: #{tpu_custom_call.1}
  #allocation0 [shape = 'u32[]', space=smem, size = 0x4, offset = 0x4, fixed_abs, tag = 'smem constant byte address 0x4 - core index']
  #allocation1 [shape = 'u32[144,128]{1,0:T(1,128)}', space=vmem, size = 0x12000, scoped, tag = 'internal scratch']
  #allocation2 [shape = 'f32[4,8,128]{2,1,0:T(8,128)}', space=vmem, size = 0x4000, scoped, tag = 'scratch operand']
  %s0 = inlined_call_operand.hbm [shape: f32[4,8,128], index: 0, kind: input, shape index: {}]
  %s1 = inlined_call_operand.vmem [shape: f32[1,128], index: 1, kind: input, shape index: {}]
  %s2 = inlined_call_operand.vmem [shape: f32[1,128], index: 2, kind: input, shape index: {}]
  %s3 = inlined_call_operand.hbm [shape: f32[128,128], index: 3, kind: input, shape index: {}]
  %s4 = inlined_call_operand.hbm [shape: f32[128,256], index: 4, kind: input, shape index: {}]
  %s5 = inlined_call_operand.hbm [shape: f32[128,128], index: 5, kind: input, shape index: {}]
  %s6 = inlined_call_operand.vmem [shape: f32[1,128], index: 6, kind: input, shape index: {}]
  %s7 = inlined_call_operand.vmem [shape: f32[1,128], index: 7, kind: input, shape index: {}]
  %s8 = inlined_call_operand.vmem [shape: f32[1,128], index: 8, kind: input, shape index: {}]
  %s9 = inlined_call_operand.hbm [shape: f32[128,512], index: 9, kind: input, shape index: {}]
  %s10 = inlined_call_operand.vmem [shape: f32[1,512], index: 10, kind: input, shape index: {}]
  %s11 = inlined_call_operand.hbm [shape: f32[512,128], index: 11, kind: input, shape index: {}]
  %s12 = inlined_call_operand.vmem [shape: f32[1,128], index: 12, kind: input, shape index: {}]
  %s13 = inlined_call_operand.hbm [shape: f32[4,8,128], index: 13, kind: output, shape index: {}]
  %s14 = sld [smem:[#allocation0]]
  $region86: #{tpu_custom_call.1} parent=0
    _
  %s16 = ssub.s32 1, %s14
  %s17 = scalar_select 0, %s16, %s14
  $region1: #{tpu_custom_call.1} parent=0
    #allocation3 [shape = 'u8[16384]{0}', space=vmem, size = 0x4000, scoped, tag = 'input window, operand 0, single buffered']
    #allocation4 [shape = 's32[1]{0}', space=sflag, size = 0x4, scoped, tag = 'scoped memory for tpu_custom_call.1']
    #allocation5 [shape = 's32[1]{0}', space=sflag, size = 0x4, scoped, tag = 'scoped memory for tpu_custom_call.1']
    #allocation6 [shape = 'u8[65536]{0}', space=vmem, size = 0x10000, scoped, tag = 'input window, operand 3, single buffered']
    #allocation7 [shape = 's32[1]{0}', space=sflag, size = 0x4, scoped, tag = 'scoped memory for tpu_custom_call.1']
    #allocation8 [shape = 'u8[131072]{0}', space=vmem, size = 0x20000, scoped, tag = 'input window, operand 4, single buffered']
    #allocation9 [shape = 'u8[65536]{0}', space=vmem, size = 0x10000, scoped, tag = 'input window, operand 5, single buffered']
    #allocation10 [shape = 's32[1]{0}', space=sflag, size = 0x4, scoped, tag = 'scoped memory for tpu_custom_call.1']
    #allocation11 [shape = 'u8[262144]{0}', space=vmem, size = 0x40000, scoped, tag = 'input window, operand 9, single buffered']
    #allocation12 [shape = 'u8[262144]{0}', space=vmem, size = 0x40000, scoped, tag = 'input window, operand 11, single buffered']
    #allocation13 [shape = 's32[1]{0}', space=sflag, size = 0x4, scoped, tag = 'scoped memory for tpu_custom_call.1']
    #allocation14 [shape = 'u8[16384]{0}', space=vmem, size = 0x4000, scoped, tag = 'output window, operand 0, single buffered']
    %18 = vsyncpa [#allocation4], 0
    %19 = vsyncpa [#allocation7], 0
    %20 = vsyncpa [#allocation10], 0
    %21 = vsyncpa [#allocation13], 0
    %22 = vsyncpa [#allocation5], 0
    // Predicated region
    $region2: #{tpu_custom_call.1} parent=1 // pred_check
      _
    $region3: #{tpu_custom_call.1} parent=1 // pred_check_branch
      %24 = sbr.rel (0) target = $region5
    $region4: #{tpu_custom_call.1} parent=1 // pred_region
      %s26 = ssub.s32 512, 512
      %27 = vsyncadd [#allocation4], %s26
      %s28 = sshll.u32 [#allocation3], 4
      %s29 = int_to_ptr.vmem [resolvable:$true] %s28
      %34 = dma.hbm_to_vmem [thread:$0]  %s0, 512, %s29, [#allocation4], 128, 128, 8
    $region5: #{tpu_custom_call.1} parent=1 // pred_fallthru
      _
    // Predicated region
    $region6: #{tpu_custom_call.1} parent=1 // pred_check
      _
    $region7: #{tpu_custom_call.1} parent=1 // pred_check_branch
      %36 = sbr.rel (0) target = $region9
    $region8: #{tpu_custom_call.1} parent=1 // pred_region
      _
    $region9: #{tpu_custom_call.1} parent=1 // pred_fallthru
      _
    // Predicated region
    $region10: #{tpu_custom_call.1} parent=1 // pred_check
      _
    $region11: #{tpu_custom_call.1} parent=1 // pred_check_branch
      %38 = sbr.rel (0) target = $region13
    $region12: #{tpu_custom_call.1} parent=1 // pred_region
      _
    $region13: #{tpu_custom_call.1} parent=1 // pred_fallthru
      _
    // Predicated region
    $region14: #{tpu_custom_call.1} parent=1 // pred_check
      _
    $region15: #{tpu_custom_call.1} parent=1 // pred_check_branch
      %40 = sbr.rel (0) target = $region17
    $region16: #{tpu_custom_call.1} parent=1 // pred_region
      %s42 = ssub.s32 2048, 2048
      %43 = vsyncadd [#allocation7], %s42
      %s44 = sshll.u32 [#allocation6], 4
      %s45 = int_to_ptr.vmem [resolvable:$true] %s44
      %50 = dma.hbm_to_vmem [thread:$0]  %s3, 2048, %s45, [#allocation7], 128, 128, 8
    $region17: #{tpu_custom_call.1} parent=1 // pred_fallthru
      _
    // Predicated region
    $region18: #{tpu_custom_call.1} parent=1 // pred_check
      _
    $region19: #{tpu_custom_call.1} parent=1 // pred_check_branch
      %52 = sbr.rel (0) target = $region21
    $region20: #{tpu_custom_call.1} parent=1 // pred_region
      %s54 = ssub.s32 4096, 4096
      %55 = vsyncadd [#allocation7], %s54
      %s56 = sshll.u32 [#allocation8], 4
      %s57 = int_to_ptr.vmem [resolvable:$true] %s56
      %62 = dma.hbm_to_vmem [thread:$0]  %s4, 4096, %s57, [#allocation7], 256, 256, 16
    $region21: #{tpu_custom_call.1} parent=1 // pred_fallthru
      _
    // Predicated region
    $region22: #{tpu_custom_call.1} parent=1 // pred_check
      _
    $region23: #{tpu_custom_call.1} parent=1 // pred_check_branch
      %64 = sbr.rel (0) target = $region25
    $region24: #{tpu_custom_call.1} parent=1 // pred_region
      %s66 = ssub.s32 2048, 2048
      %67 = vsyncadd [#allocation10], %s66
      %s68 = sshll.u32 [#allocation9], 4
      %s69 = int_to_ptr.vmem [resolvable:$true] %s68
      %74 = dma.hbm_to_vmem [thread:$0]  %s5, 2048, %s69, [#allocation10], 128, 128, 8
    $region25: #{tpu_custom_call.1} parent=1 // pred_fallthru
      _
    // Predicated region
    $region26: #{tpu_custom_call.1} parent=1 // pred_check
      _
    $region27: #{tpu_custom_call.1} parent=1 // pred_check_branch
      %76 = sbr.rel (0) target = $region29
    $region28: #{tpu_custom_call.1} parent=1 // pred_region
      _
    $region29: #{tpu_custom_call.1} parent=1 // pred_fallthru
      _
    // Predicated region
    $region30: #{tpu_custom_call.1} parent=1 // pred_check
      _
    $region31: #{tpu_custom_call.1} parent=1 // pred_check_branch
      %78 = sbr.rel (0) target = $region33
    $region32: #{tpu_custom_call.1} parent=1 // pred_region
      _
    $region33: #{tpu_custom_call.1} parent=1 // pred_fallthru
      _
    // Predicated region
    $region34: #{tpu_custom_call.1} parent=1 // pred_check
      _
    $region35: #{tpu_custom_call.1} parent=1 // pred_check_branch
      %80 = sbr.rel (0) target = $region37
    $region36: #{tpu_custom_call.1} parent=1 // pred_region
      _
    $region37: #{tpu_custom_call.1} parent=1 // pred_fallthru
      _
    // Predicated region
    $region38: #{tpu_custom_call.1} parent=1 // pred_check
      _
    $region39: #{tpu_custom_call.1} parent=1 // pred_check_branch
      %82 = sbr.rel (0) target = $region41
    $region40: #{tpu_custom_call.1} parent=1 // pred_region
      %s84 = ssub.s32 8192, 8192
      %85 = vsyncadd [#allocation10], %s84
      %s86 = sshll.u32 [#allocation11], 4
      %s87 = int_to_ptr.vmem [resolvable:$true] %s86
      %92 = dma.hbm_to_vmem [thread:$0]  %s9, 8192, %s87, [#allocation10], 512, 512, 32
    $region41: #{tpu_custom_call.1} parent=1 // pred_fallthru
      _
    // Predicated region
    $region42: #{tpu_custom_call.1} parent=1 // pred_check
      _
    $region43: #{tpu_custom_call.1} parent=1 // pred_check_branch
      %94 = sbr.rel (0) target = $region45
    $region44: #{tpu_custom_call.1} parent=1 // pred_region
      _
    $region45: #{tpu_custom_call.1} parent=1 // pred_fallthru
      _
    // Predicated region
    $region46: #{tpu_custom_call.1} parent=1 // pred_check
      _
    $region47: #{tpu_custom_call.1} parent=1 // pred_check_branch
      %96 = sbr.rel (0) target = $region49
    $region48: #{tpu_custom_call.1} parent=1 // pred_region
      %s98 = ssub.s32 8192, 8192
      %99 = vsyncadd [#allocation13], %s98
      %s100 = sshll.u32 [#allocation12], 4
      %s101 = int_to_ptr.vmem [resolvable:$true] %s100
      %106 = dma.hbm_to_vmem [thread:$0]  %s11, 8192, %s101, [#allocation13], 128, 128, 8
    $region49: #{tpu_custom_call.1} parent=1 // pred_fallthru
      _
    // Predicated region
    $region50: #{tpu_custom_call.1} parent=1 // pred_check
      _
    $region51: #{tpu_custom_call.1} parent=1 // pred_check_branch
      %108 = sbr.rel (0) target = $region53
    $region52: #{tpu_custom_call.1} parent=1 // pred_region
      _
    $region53: #{tpu_custom_call.1} parent=1 // pred_fallthru
      _
    // Predicated region
    $region54: #{tpu_custom_call.1} parent=1 // pred_check
      _
    $region55: #{tpu_custom_call.1} parent=1 // pred_check_branch
      %110 = sbr.rel (0) target = $region57
    $region56: #{tpu_custom_call.1} parent=1 // pred_region
      %111 = dma.done [#allocation4], 512
    $region57: #{tpu_custom_call.1} parent=1 // pred_fallthru
      _
    // Predicated region
    $region58: #{tpu_custom_call.1} parent=1 // pred_check
      _
    $region59: #{tpu_custom_call.1} parent=1 // pred_check_branch
      %113 = sbr.rel (0) target = $region61
    $region60: #{tpu_custom_call.1} parent=1 // pred_region
      %114 = dma.done [#allocation7], 2048
    $region61: #{tpu_custom_call.1} parent=1 // pred_fallthru
      _
    // Predicated region
    $region62: #{tpu_custom_call.1} parent=1 // pred_check
      _
    $region63: #{tpu_custom_call.1} parent=1 // pred_check_branch
      %116 = sbr.rel (0) target = $region65
    $region64: #{tpu_custom_call.1} parent=1 // pred_region
      %117 = dma.done [#allocation7], 4096
    $region65: #{tpu_custom_call.1} parent=1 // pred_fallthru
      _
    // Predicated region
    $region66: #{tpu_custom_call.1} parent=1 // pred_check
      _
    $region67: #{tpu_custom_call.1} parent=1 // pred_check_branch
      %119 = sbr.rel (0) target = $region69
    $region68: #{tpu_custom_call.1} parent=1 // pred_region
      %120 = dma.done [#allocation10], 2048
    $region69: #{tpu_custom_call.1} parent=1 // pred_fallthru
      _
    // Predicated region
    $region70: #{tpu_custom_call.1} parent=1 // pred_check
      _
    $region71: #{tpu_custom_call.1} parent=1 // pred_check_branch
      %122 = sbr.rel (0) target = $region73
    $region72: #{tpu_custom_call.1} parent=1 // pred_region
      %123 = dma.done [#allocation10], 8192
    $region73: #{tpu_custom_call.1} parent=1 // pred_fallthru
      _
    // Predicated region
    $region74: #{tpu_custom_call.1} parent=1 // pred_check
      _
    $region75: #{tpu_custom_call.1} parent=1 // pred_check_branch
      %125 = sbr.rel (0) target = $region77
    $region76: #{tpu_custom_call.1} parent=1 // pred_region
      %126 = dma.done [#allocation13], 8192
    $region77: #{tpu_custom_call.1} parent=1 // pred_fallthru
      _
    %v127 = vld [vmem:[#allocation3] sm:$0xff]
    %v128 = vld [vmem:[#allocation3 + $0x8] sm:$0xff]
    %v129 = vld [vmem:[#allocation3 + $0x10] sm:$0xff]
    %v130 = vld [vmem:[#allocation3 + $0x18] sm:$0xff]
    %131 = vadd.xlane.f32.xlu0 %v127
    %v132 = vpop.xlane.xlu0 %131
    %133 = vadd.xlane.f32.xlu0 %v128
    %v134 = vpop.xlane.xlu0 %133
    %135 = vadd.xlane.f32.xlu0 %v129
    %v136 = vpop.xlane.xlu0 %135
    %137 = vadd.xlane.f32.xlu0 %v130
    %v138 = vpop.xlane.xlu0 %137
    %v139 = vrcp.pop 128.0
    %v140 = vmul.f32 %v132, %v139
    %v141 = vmul.f32 %v134, %v139
    %v142 = vmul.f32 %v136, %v139
    %v143 = vmul.f32 %v138, %v139
    %v144 = vsub.f32 %v127, %v140
    %v145 = vsub.f32 %v128, %v141
    %v146 = vsub.f32 %v129, %v142
    %v147 = vsub.f32 %v130, %v143
    %v148 = vmul.f32 %v144, %v144
    %v149 = vmul.f32 %v145, %v145
    %v150 = vmul.f32 %v146, %v146
    %v151 = vmul.f32 %v147, %v147
    %152 = vadd.xlane.f32.xlu0 %v148
    %v153 = vpop.xlane.xlu0 %152
    %154 = vadd.xlane.f32.xlu0 %v149
    %v155 = vpop.xlane.xlu0 %154
    %156 = vadd.xlane.f32.xlu0 %v150
    %v157 = vpop.xlane.xlu0 %156
    %158 = vadd.xlane.f32.xlu0 %v151
    %v159 = vpop.xlane.xlu0 %158
    %v160 = vmul.f32 %v153, %v139
    %v161 = vmul.f32 %v155, %v139
    %v162 = vmul.f32 %v157, %v139
    %v163 = vmul.f32 %v159, %v139
    %v164 = vadd.f32 %v160, 1e-05
    %v165 = vadd.f32 %v161, 1e-05
    %v166 = vadd.f32 %v162, 1e-05
    %v167 = vadd.f32 %v163, 1e-05
    %v168 = vrsqrt.pop %v164
    %v169 = vrsqrt.pop %v165
    %v170 = vrsqrt.pop %v166
    %v171 = vrsqrt.pop %v167
    %v172 = vmul.f32 %v144, %v168
    %v173 = vmul.f32 %v145, %v169
    %v174 = vmul.f32 %v146, %v170
    %v175 = vmul.f32 %v147, %v171
    %v176 = vld [vmem:[%s1] sm:$0x1]
    %v178 = vlaneseq
    %v179 = vshrl.u32 %v178, 7
    %v180 = vsub.s32 0, %v179
    %v181 = vrot.slane %v176, %v180
    %v183 = vmul.f32 %v172, %v181
    %v184 = vmul.f32 %v173, %v181
    %v185 = vmul.f32 %v174, %v181
    %v186 = vmul.f32 %v175, %v181
    %v187 = vld [vmem:[%s2] sm:$0x1]
    %v189 = vlaneseq
    %v190 = vshrl.u32 %v189, 7
    %v191 = vsub.s32 0, %v190
    %v192 = vrot.slane %v187, %v191
    %v194 = vadd.f32 %v183, %v192
    %v195 = vadd.f32 %v184, %v192
    %v196 = vadd.f32 %v185, %v192
    %v197 = vadd.f32 %v186, %v192
    %v198 = vld [vmem:[#allocation6] sm:$0xff]
    %v199 = vld [vmem:[#allocation6 + $0x8] sm:$0xff]
    %v200 = vld [vmem:[#allocation6 + $0x10] sm:$0xff]
    %v201 = vld [vmem:[#allocation6 + $0x18] sm:$0xff]
    %v202 = vld [vmem:[#allocation6 + $0x20] sm:$0xff]
    %v203 = vld [vmem:[#allocation6 + $0x28] sm:$0xff]
    %v204 = vld [vmem:[#allocation6 + $0x30] sm:$0xff]
    %v205 = vld [vmem:[#allocation6 + $0x38] sm:$0xff]
    %v206 = vld [vmem:[#allocation6 + $0x40] sm:$0xff]
    %v207 = vld [vmem:[#allocation6 + $0x48] sm:$0xff]
    %v208 = vld [vmem:[#allocation6 + $0x50] sm:$0xff]
    %v209 = vld [vmem:[#allocation6 + $0x58] sm:$0xff]
    %v210 = vld [vmem:[#allocation6 + $0x60] sm:$0xff]
    %v211 = vld [vmem:[#allocation6 + $0x68] sm:$0xff]
    %v212 = vld [vmem:[#allocation6 + $0x70] sm:$0xff]
    %v213 = vld [vmem:[#allocation6 + $0x78] sm:$0xff]
    %214 = vmatprep.subr.mxu0 0.0
    %215 = vmatpush1.msra.mxu0 %v213
    %216 = vmatprep.subr.mxu0 0.0
    %217 = vmatpush1.msra.mxu0 %v212
    %218 = vmatprep.subr.mxu0 0.0
    %219 = vmatpush1.msra.mxu0 %v211
    %220 = vmatprep.subr.mxu0 0.0
    %221 = vmatpush1.msra.mxu0 %v210
    %222 = vmatprep.subr.mxu0 0.0
    %223 = vmatpush1.msra.mxu0 %v209
    %224 = vmatprep.subr.mxu0 0.0
    %225 = vmatpush1.msra.mxu0 %v208
    %226 = vmatprep.subr.mxu0 0.0
    %227 = vmatpush1.msra.mxu0 %v207
    %228 = vmatprep.subr.mxu0 0.0
    %229 = vmatpush1.msra.mxu0 %v206
    %230 = vmatprep.subr.mxu0 0.0
    %231 = vmatpush1.msra.mxu0 %v205
    %232 = vmatprep.subr.mxu0 0.0
    %233 = vmatpush1.msra.mxu0 %v204
    %234 = vmatprep.subr.mxu0 0.0
    %235 = vmatpush1.msra.mxu0 %v203
    %236 = vmatprep.subr.mxu0 0.0
    %237 = vmatpush1.msra.mxu0 %v202
    %238 = vmatprep.subr.mxu0 0.0
    %239 = vmatpush1.msra.mxu0 %v201
    %240 = vmatprep.subr.mxu0 0.0
    %241 = vmatpush1.msra.mxu0 %v200
    %242 = vmatprep.subr.mxu0 0.0
    %243 = vmatpush1.msra.mxu0 %v199
    %244 = vmatprep.subr.mxu0 0.0
    %245 = vmatpush1.msra.mxu0 %v198
    %246 = vmatprep.subr.mxu0 0.0
    %247 = vmatpush2.msra.mxu0 0.0
    %248 = vmatprep.subr.mxu0 0.0
    %249 = vmatpush2.msra.mxu0 0.0
    %250 = vmatprep.subr.mxu0 0.0
    %251 = vmatpush2.msra.mxu0 0.0
    %252 = vmatprep.subr.mxu0 0.0
    %253 = vmatpush2.msra.mxu0 0.0
    %254 = vmatprep.subr.mxu0 0.0
    %255 = vmatpush2.msra.mxu0 0.0
    %256 = vmatprep.subr.mxu0 0.0
    %257 = vmatpush2.msra.mxu0 0.0
    %258 = vmatprep.subr.mxu0 0.0
    %259 = vmatpush2.msra.mxu0 0.0
    %260 = vmatprep.subr.mxu0 0.0
    %261 = vmatpush2.msra.mxu0 0.0
    %262 = vmatprep.subr.mxu0 0.0
    %263 = vmatpush2.msra.mxu0 0.0
    %264 = vmatprep.subr.mxu0 0.0
    %265 = vmatpush2.msra.mxu0 0.0
    %266 = vmatprep.subr.mxu0 0.0
    %267 = vmatpush2.msra.mxu0 0.0
    %268 = vmatprep.subr.mxu0 0.0
    %269 = vmatpush2.msra.mxu0 0.0
    %270 = vmatprep.subr.mxu0 0.0
    %271 = vmatpush2.msra.mxu0 0.0
    %272 = vmatprep.subr.mxu0 0.0
    %273 = vmatpush2.msra.mxu0 0.0
    %274 = vmatprep.subr.mxu0 0.0
    %275 = vmatpush2.msra.mxu0 0.0
    %276 = vmatprep.subr.mxu0 0.0
    %277 = vmatpush2.msra.mxu0 0.0
    %278 = vmatprep.mubr.f32.mxu0 0.0
    %279 = vmatmul.mubr.f32.gmra.mxu0 %v194
    %v280 = vpop.f32.mrf.mxu0
    %v281 = vadd.f32 0.0, %v280
    %v282 = vpop.f32.mrf.mxu0
    %283 = vmatprep.mubr.f32.mxu0 0.0
    %284 = vmatmul.mubr.f32.gmra.mxu0 %v195
    %v285 = vpop.f32.mrf.mxu0
    %v286 = vadd.f32 0.0, %v285
    %v287 = vpop.f32.mrf.mxu0
    %288 = vmatprep.mubr.f32.mxu0 0.0
    %289 = vmatmul.mubr.f32.gmra.mxu0 %v196
    %v290 = vpop.f32.mrf.mxu0
    %v291 = vadd.f32 0.0, %v290
    %v292 = vpop.f32.mrf.mxu0
    %293 = vmatprep.mubr.f32.mxu0 0.0
    %294 = vmatmul.mubr.f32.gmra.mxu0 %v197
    %v295 = vpop.f32.mrf.mxu0
    %v296 = vadd.f32 0.0, %v295
    %v297 = vpop.f32.mrf.mxu0
    %298 = vdwg.mxu0
    %v299 = vld [vmem:[#allocation8] sm:$0xff]
    %v300 = vld [vmem:[#allocation8 + $0x8] sm:$0xff]
    %v301 = vld [vmem:[#allocation8 + $0x10] sm:$0xff]
    %v302 = vld [vmem:[#allocation8 + $0x18] sm:$0xff]
    %v303 = vld [vmem:[#allocation8 + $0x20] sm:$0xff]
    %v304 = vld [vmem:[#allocation8 + $0x28] sm:$0xff]
    %v305 = vld [vmem:[#allocation8 + $0x30] sm:$0xff]
    %v306 = vld [vmem:[#allocation8 + $0x38] sm:$0xff]
    %v307 = vld [vmem:[#allocation8 + $0x40] sm:$0xff]
    %v308 = vld [vmem:[#allocation8 + $0x48] sm:$0xff]
    %v309 = vld [vmem:[#allocation8 + $0x50] sm:$0xff]
    %v310 = vld [vmem:[#allocation8 + $0x58] sm:$0xff]
    %v311 = vld [vmem:[#allocation8 + $0x60] sm:$0xff]
    %v312 = vld [vmem:[#allocation8 + $0x68] sm:$0xff]
    %v313 = vld [vmem:[#allocation8 + $0x70] sm:$0xff]
    %v314 = vld [vmem:[#allocation8 + $0x78] sm:$0xff]
    %v315 = vld [vmem:[#allocation8 + $0x80] sm:$0xff]
    %v316 = vld [vmem:[#allocation8 + $0x88] sm:$0xff]
    %v317 = vld [vmem:[#allocation8 + $0x90] sm:$0xff]
    %v318 = vld [vmem:[#allocation8 + $0x98] sm:$0xff]
    %v319 = vld [vmem:[#allocation8 + $0xa0] sm:$0xff]
    %v320 = vld [vmem:[#allocation8 + $0xa8] sm:$0xff]
    %v321 = vld [vmem:[#allocation8 + $0xb0] sm:$0xff]
    %v322 = vld [vmem:[#allocation8 + $0xb8] sm:$0xff]
    %v323 = vld [vmem:[#allocation8 + $0xc0] sm:$0xff]
    %v324 = vld [vmem:[#allocation8 + $0xc8] sm:$0xff]
    %v325 = vld [vmem:[#allocation8 + $0xd0] sm:$0xff]
    %v326 = vld [vmem:[#allocation8 + $0xd8] sm:$0xff]
    %v327 = vld [vmem:[#allocation8 + $0xe0] sm:$0xff]
    %v328 = vld [vmem:[#allocation8 + $0xe8] sm:$0xff]
    %v329 = vld [vmem:[#allocation8 + $0xf0] sm:$0xff]
    %v330 = vld [vmem:[#allocation8 + $0xf8] sm:$0xff]
    %331 = vmatprep.subr.mxu0 %v330
    %332 = vmatpush1.msra.mxu0 %v329
    %333 = vmatprep.subr.mxu0 %v328
    %334 = vmatpush1.msra.mxu0 %v327
    %335 = vmatprep.subr.mxu0 %v326
    %336 = vmatpush1.msra.mxu0 %v325
    %337 = vmatprep.subr.mxu0 %v324
    %338 = vmatpush1.msra.mxu0 %v323
    %339 = vmatprep.subr.mxu0 %v322
    %340 = vmatpush1.msra.mxu0 %v321
    %341 = vmatprep.subr.mxu0 %v320
    %342 = vmatpush1.msra.mxu0 %v319
    %343 = vmatprep.subr.mxu0 %v318
    %344 = vmatpush1.msra.mxu0 %v317
    %345 = vmatprep.subr.mxu0 %v316
    %346 = vmatpush1.msra.mxu0 %v315
    %347 = vmatprep.subr.mxu0 %v314
    %348 = vmatpush1.msra.mxu0 %v313
    %349 = vmatprep.subr.mxu0 %v312
    %350 = vmatpush1.msra.mxu0 %v311
    %351 = vmatprep.subr.mxu0 %v310
    %352 = vmatpush1.msra.mxu0 %v309
    %353 = vmatprep.subr.mxu0 %v308
    %354 = vmatpush1.msra.mxu0 %v307
    %355 = vmatprep.subr.mxu0 %v306
    %356 = vmatpush1.msra.mxu0 %v305
    %357 = vmatprep.subr.mxu0 %v304
    %358 = vmatpush1.msra.mxu0 %v303
    %359 = vmatprep.subr.mxu0 %v302
    %360 = vmatpush1.msra.mxu0 %v301
    %361 = vmatprep.subr.mxu0 %v300
    %362 = vmatpush1.msra.mxu0 %v299
    %363 = vmatprep.subr.mxu0 0.0
    %364 = vmatpush2.msra.mxu0 0.0
    %365 = vmatprep.subr.mxu0 0.0
    %366 = vmatpush2.msra.mxu0 0.0
    %367 = vmatprep.subr.mxu0 0.0
    %368 = vmatpush2.msra.mxu0 0.0
    %369 = vmatprep.subr.mxu0 0.0
    %370 = vmatpush2.msra.mxu0 0.0
    %371 = vmatprep.subr.mxu0 0.0
    %372 = vmatpush2.msra.mxu0 0.0
    %373 = vmatprep.subr.mxu0 0.0
    %374 = vmatpush2.msra.mxu0 0.0
    %375 = vmatprep.subr.mxu0 0.0
    %376 = vmatpush2.msra.mxu0 0.0
    %377 = vmatprep.subr.mxu0 0.0
    %378 = vmatpush2.msra.mxu0 0.0
    %379 = vmatprep.subr.mxu0 0.0
    %380 = vmatpush2.msra.mxu0 0.0
    %381 = vmatprep.subr.mxu0 0.0
    %382 = vmatpush2.msra.mxu0 0.0
    %383 = vmatprep.subr.mxu0 0.0
    %384 = vmatpush2.msra.mxu0 0.0
    %385 = vmatprep.subr.mxu0 0.0
    %386 = vmatpush2.msra.mxu0 0.0
    %387 = vmatprep.subr.mxu0 0.0
    %388 = vmatpush2.msra.mxu0 0.0
    %389 = vmatprep.subr.mxu0 0.0
    %390 = vmatpush2.msra.mxu0 0.0
    %391 = vmatprep.subr.mxu0 0.0
    %392 = vmatpush2.msra.mxu0 0.0
    %393 = vmatprep.subr.mxu0 0.0
    %394 = vmatpush2.msra.mxu0 0.0
    %395 = vmatprep.mubr.f32.mxu0 0.0
    %396 = vmatmul.mubr.f32.gmra.mxu0 %v194
    %v397 = vpop.f32.mrf.mxu0
    %v398 = vadd.f32 0.0, %v397
    %v399 = vpop.f32.mrf.mxu0
    %v400 = vadd.f32 0.0, %v399
    %401 = vmatprep.mubr.f32.mxu0 0.0
    %402 = vmatmul.mubr.f32.gmra.mxu0 %v195
    %v403 = vpop.f32.mrf.mxu0
    %v404 = vadd.f32 0.0, %v403
    %v405 = vpop.f32.mrf.mxu0
    %v406 = vadd.f32 0.0, %v405
    %407 = vmatprep.mubr.f32.mxu0 0.0
    %408 = vmatmul.mubr.f32.gmra.mxu0 %v196
    %v409 = vpop.f32.mrf.mxu0
    %v410 = vadd.f32 0.0, %v409
    %v411 = vpop.f32.mrf.mxu0
    %v412 = vadd.f32 0.0, %v411
    %413 = vmatprep.mubr.f32.mxu0 0.0
    %414 = vmatmul.mubr.f32.gmra.mxu0 %v197
    %v415 = vpop.f32.mrf.mxu0
    %v416 = vadd.f32 0.0, %v415
    %v417 = vpop.f32.mrf.mxu0
    %v418 = vadd.f32 0.0, %v417
    %419 = vdwg.mxu0
    %vm420 = vcmask 261120
    %v422 = vsel %vm420, %v281, 0
    %v425 = vsel %vm420, %v398, 0
    %427 = vmatprep.subr.mxu0 0.0
    %428 = vmatpush1.xpose.msra.mxu0 0.0
    %429 = vmatprep.subr.mxu0 0.0
    %430 = vmatpush1.xpose.msra.mxu0 0.0
    %431 = vmatprep.subr.mxu0 0.0
    %432 = vmatpush1.xpose.msra.mxu0 0.0
    %433 = vmatprep.subr.mxu0 0.0
    %434 = vmatpush1.xpose.msra.mxu0 0.0
    %435 = vmatprep.subr.mxu0 0.0
    %436 = vmatpush1.xpose.msra.mxu0 0.0
    %437 = vmatprep.subr.mxu0 0.0
    %438 = vmatpush1.xpose.msra.mxu0 0.0
    %439 = vmatprep.subr.mxu0 0.0
    %440 = vmatpush1.xpose.msra.mxu0 0.0
    %441 = vmatprep.subr.mxu0 0.0
    %442 = vmatpush1.xpose.msra.mxu0 0.0
    %443 = vmatprep.subr.mxu0 0.0
    %444 = vmatpush1.xpose.msra.mxu0 0.0
    %445 = vmatprep.subr.mxu0 0.0
    %446 = vmatpush1.xpose.msra.mxu0 0.0
    %447 = vmatprep.subr.mxu0 0.0
    %448 = vmatpush1.xpose.msra.mxu0 0.0
    %449 = vmatprep.subr.mxu0 0.0
    %450 = vmatpush1.xpose.msra.mxu0 0.0
    %451 = vmatprep.subr.mxu0 0.0
    %452 = vmatpush1.xpose.msra.mxu0 0.0
    %453 = vmatprep.subr.mxu0 0.0
    %454 = vmatpush1.xpose.msra.mxu0 0.0
    %455 = vmatprep.subr.mxu0 0.0
    %456 = vmatpush1.xpose.msra.mxu0 0.0
    %457 = vmatprep.subr.mxu0 0.0
    %458 = vmatpush1.xpose.msra.mxu0 %v425
    %459 = vmatprep.subr.mxu0 0.0
    %460 = vmatpush2.xpose.msra.mxu0 0.0
    %461 = vmatprep.subr.mxu0 0.0
    %462 = vmatpush2.xpose.msra.mxu0 0.0
    %463 = vmatprep.subr.mxu0 0.0
    %464 = vmatpush2.xpose.msra.mxu0 0.0
    %465 = vmatprep.subr.mxu0 0.0
    %466 = vmatpush2.xpose.msra.mxu0 0.0
    %467 = vmatprep.subr.mxu0 0.0
    %468 = vmatpush2.xpose.msra.mxu0 0.0
    %469 = vmatprep.subr.mxu0 0.0
    %470 = vmatpush2.xpose.msra.mxu0 0.0
    %471 = vmatprep.subr.mxu0 0.0
    %472 = vmatpush2.xpose.msra.mxu0 0.0
    %473 = vmatprep.subr.mxu0 0.0
    %474 = vmatpush2.xpose.msra.mxu0 0.0
    %475 = vmatprep.subr.mxu0 0.0
    %476 = vmatpush2.xpose.msra.mxu0 0.0
    %477 = vmatprep.subr.mxu0 0.0
    %478 = vmatpush2.xpose.msra.mxu0 0.0
    %479 = vmatprep.subr.mxu0 0.0
    %480 = vmatpush2.xpose.msra.mxu0 0.0
    %481 = vmatprep.subr.mxu0 0.0
    %482 = vmatpush2.xpose.msra.mxu0 0.0
    %483 = vmatprep.subr.mxu0 0.0
    %484 = vmatpush2.xpose.msra.mxu0 0.0
    %485 = vmatprep.subr.mxu0 0.0
    %486 = vmatpush2.xpose.msra.mxu0 0.0
    %487 = vmatprep.subr.mxu0 0.0
    %488 = vmatpush2.xpose.msra.mxu0 0.0
    %489 = vmatprep.subr.mxu0 0.0
    %490 = vmatpush2.xpose.msra.mxu0 0.0
    %491 = vmatprep.mubr.f32.mxu0 0.0
    %492 = vmatmul.mubr.f32.gmra.mxu0 %v422
    %v493 = vpop.f32.mrf.mxu0
    %v494 = vadd.f32 0.0, %v493
    %v495 = vpop.f32.mrf.mxu0
    %496 = vdwg.mxu0
    %v498 = vsel %vm420, %v286, 0
    %v501 = vsel %vm420, %v404, 0
    %503 = vmatprep.subr.mxu0 0.0
    %504 = vmatpush1.xpose.msra.mxu0 0.0
    %505 = vmatprep.subr.mxu0 0.0
    %506 = vmatpush1.xpose.msra.mxu0 0.0
    %507 = vmatprep.subr.mxu0 0.0
    %508 = vmatpush1.xpose.msra.mxu0 0.0
    %509 = vmatprep.subr.mxu0 0.0
    %510 = vmatpush1.xpose.msra.mxu0 0.0
    %511 = vmatprep.subr.mxu0 0.0
    %512 = vmatpush1.xpose.msra.mxu0 0.0
    %513 = vmatprep.subr.mxu0 0.0
    %514 = vmatpush1.xpose.msra.mxu0 0.0
    %515 = vmatprep.subr.mxu0 0.0
    %516 = vmatpush1.xpose.msra.mxu0 0.0
    %517 = vmatprep.subr.mxu0 0.0
    %518 = vmatpush1.xpose.msra.mxu0 0.0
    %519 = vmatprep.subr.mxu0 0.0
    %520 = vmatpush1.xpose.msra.mxu0 0.0
    %521 = vmatprep.subr.mxu0 0.0
    %522 = vmatpush1.xpose.msra.mxu0 0.0
    %523 = vmatprep.subr.mxu0 0.0
    %524 = vmatpush1.xpose.msra.mxu0 0.0
    %525 = vmatprep.subr.mxu0 0.0
    %526 = vmatpush1.xpose.msra.mxu0 0.0
    %527 = vmatprep.subr.mxu0 0.0
    %528 = vmatpush1.xpose.msra.mxu0 0.0
    %529 = vmatprep.subr.mxu0 0.0
    %530 = vmatpush1.xpose.msra.mxu0 0.0
    %531 = vmatprep.subr.mxu0 0.0
    %532 = vmatpush1.xpose.msra.mxu0 0.0
    %533 = vmatprep.subr.mxu0 0.0
    %534 = vmatpush1.xpose.msra.mxu0 %v501
    %535 = vmatprep.subr.mxu0 0.0
    %536 = vmatpush2.xpose.msra.mxu0 0.0
    %537 = vmatprep.subr.mxu0 0.0
    %538 = vmatpush2.xpose.msra.mxu0 0.0
    %539 = vmatprep.subr.mxu0 0.0
    %540 = vmatpush2.xpose.msra.mxu0 0.0
    %541 = vmatprep.subr.mxu0 0.0
    %542 = vmatpush2.xpose.msra.mxu0 0.0
    %543 = vmatprep.subr.mxu0 0.0
    %544 = vmatpush2.xpose.msra.mxu0 0.0
    %545 = vmatprep.subr.mxu0 0.0
    %546 = vmatpush2.xpose.msra.mxu0 0.0
    %547 = vmatprep.subr.mxu0 0.0
    %548 = vmatpush2.xpose.msra.mxu0 0.0
    %549 = vmatprep.subr.mxu0 0.0
    %550 = vmatpush2.xpose.msra.mxu0 0.0
    %551 = vmatprep.subr.mxu0 0.0
    %552 = vmatpush2.xpose.msra.mxu0 0.0
    %553 = vmatprep.subr.mxu0 0.0
    %554 = vmatpush2.xpose.msra.mxu0 0.0
    %555 = vmatprep.subr.mxu0 0.0
    %556 = vmatpush2.xpose.msra.mxu0 0.0
    %557 = vmatprep.subr.mxu0 0.0
    %558 = vmatpush2.xpose.msra.mxu0 0.0
    %559 = vmatprep.subr.mxu0 0.0
    %560 = vmatpush2.xpose.msra.mxu0 0.0
    %561 = vmatprep.subr.mxu0 0.0
    %562 = vmatpush2.xpose.msra.mxu0 0.0
    %563 = vmatprep.subr.mxu0 0.0
    %564 = vmatpush2.xpose.msra.mxu0 0.0
    %565 = vmatprep.subr.mxu0 0.0
    %566 = vmatpush2.xpose.msra.mxu0 0.0
    %567 = vmatprep.mubr.f32.mxu0 0.0
    %568 = vmatmul.mubr.f32.gmra.mxu0 %v498
    %v569 = vpop.f32.mrf.mxu0
    %v570 = vadd.f32 0.0, %v569
    %v571 = vpop.f32.mrf.mxu0
    %572 = vdwg.mxu0
    %v574 = vsel %vm420, %v291, 0
    %v577 = vsel %vm420, %v410, 0
    %579 = vmatprep.subr.mxu0 0.0
    %580 = vmatpush1.xpose.msra.mxu0 0.0
    %581 = vmatprep.subr.mxu0 0.0
    %582 = vmatpush1.xpose.msra.mxu0 0.0
    %583 = vmatprep.subr.mxu0 0.0
    %584 = vmatpush1.xpose.msra.mxu0 0.0
    %585 = vmatprep.subr.mxu0 0.0
    %586 = vmatpush1.xpose.msra.mxu0 0.0
    %587 = vmatprep.subr.mxu0 0.0
    %588 = vmatpush1.xpose.msra.mxu0 0.0
    %589 = vmatprep.subr.mxu0 0.0
    %590 = vmatpush1.xpose.msra.mxu0 0.0
    %591 = vmatprep.subr.mxu0 0.0
    %592 = vmatpush1.xpose.msra.mxu0 0.0
    %593 = vmatprep.subr.mxu0 0.0
    %594 = vmatpush1.xpose.msra.mxu0 0.0
    %595 = vmatprep.subr.mxu0 0.0
    %596 = vmatpush1.xpose.msra.mxu0 0.0
    %597 = vmatprep.subr.mxu0 0.0
    %598 = vmatpush1.xpose.msra.mxu0 0.0
    %599 = vmatprep.subr.mxu0 0.0
    %600 = vmatpush1.xpose.msra.mxu0 0.0
    %601 = vmatprep.subr.mxu0 0.0
    %602 = vmatpush1.xpose.msra.mxu0 0.0
    %603 = vmatprep.subr.mxu0 0.0
    %604 = vmatpush1.xpose.msra.mxu0 0.0
    %605 = vmatprep.subr.mxu0 0.0
    %606 = vmatpush1.xpose.msra.mxu0 0.0
    %607 = vmatprep.subr.mxu0 0.0
    %608 = vmatpush1.xpose.msra.mxu0 0.0
    %609 = vmatprep.subr.mxu0 0.0
    %610 = vmatpush1.xpose.msra.mxu0 %v577
    %611 = vmatprep.subr.mxu0 0.0
    %612 = vmatpush2.xpose.msra.mxu0 0.0
    %613 = vmatprep.subr.mxu0 0.0
    %614 = vmatpush2.xpose.msra.mxu0 0.0
    %615 = vmatprep.subr.mxu0 0.0
    %616 = vmatpush2.xpose.msra.mxu0 0.0
    %617 = vmatprep.subr.mxu0 0.0
    %618 = vmatpush2.xpose.msra.mxu0 0.0
    %619 = vmatprep.subr.mxu0 0.0
    %620 = vmatpush2.xpose.msra.mxu0 0.0
    %621 = vmatprep.subr.mxu0 0.0
    %622 = vmatpush2.xpose.msra.mxu0 0.0
    %623 = vmatprep.subr.mxu0 0.0
    %624 = vmatpush2.xpose.msra.mxu0 0.0
    %625 = vmatprep.subr.mxu0 0.0
    %626 = vmatpush2.xpose.msra.mxu0 0.0
    %627 = vmatprep.subr.mxu0 0.0
    %628 = vmatpush2.xpose.msra.mxu0 0.0
    %629 = vmatprep.subr.mxu0 0.0
    %630 = vmatpush2.xpose.msra.mxu0 0.0
    %631 = vmatprep.subr.mxu0 0.0
    %632 = vmatpush2.xpose.msra.mxu0 0.0
    %633 = vmatprep.subr.mxu0 0.0
    %634 = vmatpush2.xpose.msra.mxu0 0.0
    %635 = vmatprep.subr.mxu0 0.0
    %636 = vmatpush2.xpose.msra.mxu0 0.0
    %637 = vmatprep.subr.mxu0 0.0
    %638 = vmatpush2.xpose.msra.mxu0 0.0
    %639 = vmatprep.subr.mxu0 0.0
    %640 = vmatpush2.xpose.msra.mxu0 0.0
    %641 = vmatprep.subr.mxu0 0.0
    %642 = vmatpush2.xpose.msra.mxu0 0.0
    %643 = vmatprep.mubr.f32.mxu0 0.0
    %644 = vmatmul.mubr.f32.gmra.mxu0 %v574
    %v645 = vpop.f32.mrf.mxu0
    %v646 = vadd.f32 0.0, %v645
    %v647 = vpop.f32.mrf.mxu0
    %648 = vdwg.mxu0
    %v650 = vsel %vm420, %v296, 0
    %v653 = vsel %vm420, %v416, 0
    %655 = vmatprep.subr.mxu0 0.0
    %656 = vmatpush1.xpose.msra.mxu0 0.0
    %657 = vmatprep.subr.mxu0 0.0
    %658 = vmatpush1.xpose.msra.mxu0 0.0
    %659 = vmatprep.subr.mxu0 0.0
    %660 = vmatpush1.xpose.msra.mxu0 0.0
    %661 = vmatprep.subr.mxu0 0.0
    %662 = vmatpush1.xpose.msra.mxu0 0.0
    %663 = vmatprep.subr.mxu0 0.0
    %664 = vmatpush1.xpose.msra.mxu0 0.0
    %665 = vmatprep.subr.mxu0 0.0
    %666 = vmatpush1.xpose.msra.mxu0 0.0
    %667 = vmatprep.subr.mxu0 0.0
    %668 = vmatpush1.xpose.msra.mxu0 0.0
    %669 = vmatprep.subr.mxu0 0.0
    %670 = vmatpush1.xpose.msra.mxu0 0.0
    %671 = vmatprep.subr.mxu0 0.0
    %672 = vmatpush1.xpose.msra.mxu0 0.0
    %673 = vmatprep.subr.mxu0 0.0
    %674 = vmatpush1.xpose.msra.mxu0 0.0
    %675 = vmatprep.subr.mxu0 0.0
    %676 = vmatpush1.xpose.msra.mxu0 0.0
    %677 = vmatprep.subr.mxu0 0.0
    %678 = vmatpush1.xpose.msra.mxu0 0.0
    %679 = vmatprep.subr.mxu0 0.0
    %680 = vmatpush1.xpose.msra.mxu0 0.0
    %681 = vmatprep.subr.mxu0 0.0
    %682 = vmatpush1.xpose.msra.mxu0 0.0
    %683 = vmatprep.subr.mxu0 0.0
    %684 = vmatpush1.xpose.msra.mxu0 0.0
    %685 = vmatprep.subr.mxu0 0.0
    %686 = vmatpush1.xpose.msra.mxu0 %v653
    %687 = vmatprep.subr.mxu0 0.0
    %688 = vmatpush2.xpose.msra.mxu0 0.0
    %689 = vmatprep.subr.mxu0 0.0
    %690 = vmatpush2.xpose.msra.mxu0 0.0
    %691 = vmatprep.subr.mxu0 0.0
    %692 = vmatpush2.xpose.msra.mxu0 0.0
    %693 = vmatprep.subr.mxu0 0.0
    %694 = vmatpush2.xpose.msra.mxu0 0.0
    %695 = vmatprep.subr.mxu0 0.0
    %696 = vmatpush2.xpose.msra.mxu0 0.0
    %697 = vmatprep.subr.mxu0 0.0
    %698 = vmatpush2.xpose.msra.mxu0 0.0
    %699 = vmatprep.subr.mxu0 0.0
    %700 = vmatpush2.xpose.msra.mxu0 0.0
    %701 = vmatprep.subr.mxu0 0.0
    %702 = vmatpush2.xpose.msra.mxu0 0.0
    %703 = vmatprep.subr.mxu0 0.0
    %704 = vmatpush2.xpose.msra.mxu0 0.0
    %705 = vmatprep.subr.mxu0 0.0
    %706 = vmatpush2.xpose.msra.mxu0 0.0
    %707 = vmatprep.subr.mxu0 0.0
    %708 = vmatpush2.xpose.msra.mxu0 0.0
    %709 = vmatprep.subr.mxu0 0.0
    %710 = vmatpush2.xpose.msra.mxu0 0.0
    %711 = vmatprep.subr.mxu0 0.0
    %712 = vmatpush2.xpose.msra.mxu0 0.0
    %713 = vmatprep.subr.mxu0 0.0
    %714 = vmatpush2.xpose.msra.mxu0 0.0
    %715 = vmatprep.subr.mxu0 0.0
    %716 = vmatpush2.xpose.msra.mxu0 0.0
    %717 = vmatprep.subr.mxu0 0.0
    %718 = vmatpush2.xpose.msra.mxu0 0.0
    %719 = vmatprep.mubr.f32.mxu0 0.0
    %720 = vmatmul.mubr.f32.gmra.mxu0 %v650
    %v721 = vpop.f32.mrf.mxu0
    %v722 = vadd.f32 0.0, %v721
    %v723 = vpop.f32.mrf.mxu0
    %724 = vdwg.mxu0
    %vm725 = vcmask 64512
    %v726 = vsel %vm725, %v494, -inf
    %727 = vmax.xlane.f32.xlu0 %v726
    %v728 = vpop.xlane.xlu0 %727
    %v729 = vsel %vm725, %v570, -inf
    %730 = vmax.xlane.f32.xlu0 %v729
    %v731 = vpop.xlane.xlu0 %730
    %v732 = vsel %vm725, %v646, -inf
    %733 = vmax.xlane.f32.xlu0 %v732
    %v734 = vpop.xlane.xlu0 %733
    %v735 = vsel %vm725, %v722, -inf
    %736 = vmax.xlane.f32.xlu0 %v735
    %v737 = vpop.xlane.xlu0 %736
    %v738 = vsub.f32 %v494, %v728
    %v739 = vsub.f32 %v570, %v731
    %v740 = vsub.f32 %v646, %v734
    %v741 = vsub.f32 %v722, %v737
    %v742 = vmul.f32 %v738, 1.442695
    %v743 = vpow.pop %v742
    %v744 = vmul.f32 %v739, 1.442695
    %v745 = vpow.pop %v744
    %v746 = vmul.f32 %v740, 1.442695
    %v747 = vpow.pop %v746
    %v748 = vmul.f32 %v741, 1.442695
    %v749 = vpow.pop %v748
    %v750 = vsel %vm725, %v743, 0.0
    %751 = vadd.xlane.f32.xlu0 %v750
    %v752 = vpop.xlane.xlu0 %751
    %v753 = vsel %vm725, %v745, 0.0
    %754 = vadd.xlane.f32.xlu0 %v753
    %v755 = vpop.xlane.xlu0 %754
    %v756 = vsel %vm725, %v747, 0.0
    %757 = vadd.xlane.f32.xlu0 %v756
    %v758 = vpop.xlane.xlu0 %757
    %v759 = vsel %vm725, %v749, 0.0
    %760 = vadd.xlane.f32.xlu0 %v759
    %v761 = vpop.xlane.xlu0 %760
    %v762 = vrcp.pop %v752
    %v763 = vmul.f32 1.0, %v762
    %v764 = vrcp.pop %v755
    %v765 = vmul.f32 1.0, %v764
    %v766 = vrcp.pop %v758
    %v767 = vmul.f32 1.0, %v766
    %v768 = vrcp.pop %v761
    %v769 = vmul.f32 1.0, %v768
    %v771 = vsel %vm725, %v743, 0
    %773 = vmatprep.subr.mxu0 0.0
    %774 = vmatpush1.msra.mxu0 0.0
    %775 = vmatprep.subr.mxu0 0.0
    %776 = vmatpush1.msra.mxu0 0.0
    %777 = vmatprep.subr.mxu0 0.0
    %778 = vmatpush1.msra.mxu0 0.0
    %779 = vmatprep.subr.mxu0 0.0
    %780 = vmatpush1.msra.mxu0 0.0
    %781 = vmatprep.subr.mxu0 0.0
    %782 = vmatpush1.msra.mxu0 0.0
    %783 = vmatprep.subr.mxu0 0.0
    %784 = vmatpush1.msra.mxu0 0.0
    %785 = vmatprep.subr.mxu0 0.0
    %786 = vmatpush1.msra.mxu0 0.0
    %787 = vmatprep.subr.mxu0 0.0
    %788 = vmatpush1.msra.mxu0 0.0
    %789 = vmatprep.subr.mxu0 0.0
    %790 = vmatpush1.msra.mxu0 0.0
    %791 = vmatprep.subr.mxu0 0.0
    %792 = vmatpush1.msra.mxu0 0.0
    %793 = vmatprep.subr.mxu0 0.0
    %794 = vmatpush1.msra.mxu0 0.0
    %795 = vmatprep.subr.mxu0 0.0
    %796 = vmatpush1.msra.mxu0 0.0
    %797 = vmatprep.subr.mxu0 0.0
    %798 = vmatpush1.msra.mxu0 0.0
    %799 = vmatprep.subr.mxu0 0.0
    %800 = vmatpush1.msra.mxu0 0.0
    %801 = vmatprep.subr.mxu0 0.0
    %802 = vmatpush1.msra.mxu0 0.0
    %803 = vmatprep.subr.mxu0 0.0
    %804 = vmatpush1.msra.mxu0 %v400
    %805 = vmatprep.subr.mxu0 0.0
    %806 = vmatpush2.msra.mxu0 0.0
    %807 = vmatprep.subr.mxu0 0.0
    %808 = vmatpush2.msra.mxu0 0.0
    %809 = vmatprep.subr.mxu0 0.0
    %810 = vmatpush2.msra.mxu0 0.0
    %811 = vmatprep.subr.mxu0 0.0
    %812 = vmatpush2.msra.mxu0 0.0
    %813 = vmatprep.subr.mxu0 0.0
    %814 = vmatpush2.msra.mxu0 0.0
    %815 = vmatprep.subr.mxu0 0.0
    %816 = vmatpush2.msra.mxu0 0.0
    %817 = vmatprep.subr.mxu0 0.0
    %818 = vmatpush2.msra.mxu0 0.0
    %819 = vmatprep.subr.mxu0 0.0
    %820 = vmatpush2.msra.mxu0 0.0
    %821 = vmatprep.subr.mxu0 0.0
    %822 = vmatpush2.msra.mxu0 0.0
    %823 = vmatprep.subr.mxu0 0.0
    %824 = vmatpush2.msra.mxu0 0.0
    %825 = vmatprep.subr.mxu0 0.0
    %826 = vmatpush2.msra.mxu0 0.0
    %827 = vmatprep.subr.mxu0 0.0
    %828 = vmatpush2.msra.mxu0 0.0
    %829 = vmatprep.subr.mxu0 0.0
    %830 = vmatpush2.msra.mxu0 0.0
    %831 = vmatprep.subr.mxu0 0.0
    %832 = vmatpush2.msra.mxu0 0.0
    %833 = vmatprep.subr.mxu0 0.0
    %834 = vmatpush2.msra.mxu0 0.0
    %835 = vmatprep.subr.mxu0 0.0
    %836 = vmatpush2.msra.mxu0 0.0
    %837 = vmatprep.mubr.f32.mxu0 0.0
    %838 = vmatmul.mubr.f32.gmra.mxu0 %v771
    %v839 = vpop.f32.mrf.mxu0
    %v840 = vadd.f32 0.0, %v839
    %v841 = vpop.f32.mrf.mxu0
    %842 = vdwg.mxu0
    %v844 = vsel %vm725, %v745, 0
    %846 = vmatprep.subr.mxu0 0.0
    %847 = vmatpush1.msra.mxu0 0.0
    %848 = vmatprep.subr.mxu0 0.0
    %849 = vmatpush1.msra.mxu0 0.0
    %850 = vmatprep.subr.mxu0 0.0
    %851 = vmatpush1.msra.mxu0 0.0
    %852 = vmatprep.subr.mxu0 0.0
    %853 = vmatpush1.msra.mxu0 0.0
    %854 = vmatprep.subr.mxu0 0.0
    %855 = vmatpush1.msra.mxu0 0.0
    %856 = vmatprep.subr.mxu0 0.0
    %857 = vmatpush1.msra.mxu0 0.0
    %858 = vmatprep.subr.mxu0 0.0
    %859 = vmatpush1.msra.mxu0 0.0
    %860 = vmatprep.subr.mxu0 0.0
    %861 = vmatpush1.msra.mxu0 0.0
    %862 = vmatprep.subr.mxu0 0.0
    %863 = vmatpush1.msra.mxu0 0.0
    %864 = vmatprep.subr.mxu0 0.0
    %865 = vmatpush1.msra.mxu0 0.0
    %866 = vmatprep.subr.mxu0 0.0
    %867 = vmatpush1.msra.mxu0 0.0
    %868 = vmatprep.subr.mxu0 0.0
    %869 = vmatpush1.msra.mxu0 0.0
    %870 = vmatprep.subr.mxu0 0.0
    %871 = vmatpush1.msra.mxu0 0.0
    %872 = vmatprep.subr.mxu0 0.0
    %873 = vmatpush1.msra.mxu0 0.0
    %874 = vmatprep.subr.mxu0 0.0
    %875 = vmatpush1.msra.mxu0 0.0
    %876 = vmatprep.subr.mxu0 0.0
    %877 = vmatpush1.msra.mxu0 %v406
    %878 = vmatprep.subr.mxu0 0.0
    %879 = vmatpush2.msra.mxu0 0.0
    %880 = vmatprep.subr.mxu0 0.0
    %881 = vmatpush2.msra.mxu0 0.0
    %882 = vmatprep.subr.mxu0 0.0
    %883 = vmatpush2.msra.mxu0 0.0
    %884 = vmatprep.subr.mxu0 0.0
    %885 = vmatpush2.msra.mxu0 0.0
    %886 = vmatprep.subr.mxu0 0.0
    %887 = vmatpush2.msra.mxu0 0.0
    %888 = vmatprep.subr.mxu0 0.0
    %889 = vmatpush2.msra.mxu0 0.0
    %890 = vmatprep.subr.mxu0 0.0
    %891 = vmatpush2.msra.mxu0 0.0
    %892 = vmatprep.subr.mxu0 0.0
    %893 = vmatpush2.msra.mxu0 0.0
    %894 = vmatprep.subr.mxu0 0.0
    %895 = vmatpush2.msra.mxu0 0.0
    %896 = vmatprep.subr.mxu0 0.0
    %897 = vmatpush2.msra.mxu0 0.0
    %898 = vmatprep.subr.mxu0 0.0
    %899 = vmatpush2.msra.mxu0 0.0
    %900 = vmatprep.subr.mxu0 0.0
    %901 = vmatpush2.msra.mxu0 0.0
    %902 = vmatprep.subr.mxu0 0.0
    %903 = vmatpush2.msra.mxu0 0.0
    %904 = vmatprep.subr.mxu0 0.0
    %905 = vmatpush2.msra.mxu0 0.0
    %906 = vmatprep.subr.mxu0 0.0
    %907 = vmatpush2.msra.mxu0 0.0
    %908 = vmatprep.subr.mxu0 0.0
    %909 = vmatpush2.msra.mxu0 0.0
    %910 = vmatprep.mubr.f32.mxu0 0.0
    %911 = vmatmul.mubr.f32.gmra.mxu0 %v844
    %v912 = vpop.f32.mrf.mxu0
    %v913 = vadd.f32 0.0, %v912
    %v914 = vpop.f32.mrf.mxu0
    %915 = vdwg.mxu0
    %v917 = vsel %vm725, %v747, 0
    %919 = vmatprep.subr.mxu0 0.0
    %920 = vmatpush1.msra.mxu0 0.0
    %921 = vmatprep.subr.mxu0 0.0
    %922 = vmatpush1.msra.mxu0 0.0
    %923 = vmatprep.subr.mxu0 0.0
    %924 = vmatpush1.msra.mxu0 0.0
    %925 = vmatprep.subr.mxu0 0.0
    %926 = vmatpush1.msra.mxu0 0.0
    %927 = vmatprep.subr.mxu0 0.0
    %928 = vmatpush1.msra.mxu0 0.0
    %929 = vmatprep.subr.mxu0 0.0
    %930 = vmatpush1.msra.mxu0 0.0
    %931 = vmatprep.subr.mxu0 0.0
    %932 = vmatpush1.msra.mxu0 0.0
    %933 = vmatprep.subr.mxu0 0.0
    %934 = vmatpush1.msra.mxu0 0.0
    %935 = vmatprep.subr.mxu0 0.0
    %936 = vmatpush1.msra.mxu0 0.0
    %937 = vmatprep.subr.mxu0 0.0
    %938 = vmatpush1.msra.mxu0 0.0
    %939 = vmatprep.subr.mxu0 0.0
    %940 = vmatpush1.msra.mxu0 0.0
    %941 = vmatprep.subr.mxu0 0.0
    %942 = vmatpush1.msra.mxu0 0.0
    %943 = vmatprep.subr.mxu0 0.0
    %944 = vmatpush1.msra.mxu0 0.0
    %945 = vmatprep.subr.mxu0 0.0
    %946 = vmatpush1.msra.mxu0 0.0
    %947 = vmatprep.subr.mxu0 0.0
    %948 = vmatpush1.msra.mxu0 0.0
    %949 = vmatprep.subr.mxu0 0.0
    %950 = vmatpush1.msra.mxu0 %v412
    %951 = vmatprep.subr.mxu0 0.0
    %952 = vmatpush2.msra.mxu0 0.0
    %953 = vmatprep.subr.mxu0 0.0
    %954 = vmatpush2.msra.mxu0 0.0
    %955 = vmatprep.subr.mxu0 0.0
    %956 = vmatpush2.msra.mxu0 0.0
    %957 = vmatprep.subr.mxu0 0.0
    %958 = vmatpush2.msra.mxu0 0.0
    %959 = vmatprep.subr.mxu0 0.0
    %960 = vmatpush2.msra.mxu0 0.0
    %961 = vmatprep.subr.mxu0 0.0
    %962 = vmatpush2.msra.mxu0 0.0
    %963 = vmatprep.subr.mxu0 0.0
    %964 = vmatpush2.msra.mxu0 0.0
    %965 = vmatprep.subr.mxu0 0.0
    %966 = vmatpush2.msra.mxu0 0.0
    %967 = vmatprep.subr.mxu0 0.0
    %968 = vmatpush2.msra.mxu0 0.0
    %969 = vmatprep.subr.mxu0 0.0
    %970 = vmatpush2.msra.mxu0 0.0
    %971 = vmatprep.subr.mxu0 0.0
    %972 = vmatpush2.msra.mxu0 0.0
    %973 = vmatprep.subr.mxu0 0.0
    %974 = vmatpush2.msra.mxu0 0.0
    %975 = vmatprep.subr.mxu0 0.0
    %976 = vmatpush2.msra.mxu0 0.0
    %977 = vmatprep.subr.mxu0 0.0
    %978 = vmatpush2.msra.mxu0 0.0
    %979 = vmatprep.subr.mxu0 0.0
    %980 = vmatpush2.msra.mxu0 0.0
    %981 = vmatprep.subr.mxu0 0.0
    %982 = vmatpush2.msra.mxu0 0.0
    %983 = vmatprep.mubr.f32.mxu0 0.0
    %984 = vmatmul.mubr.f32.gmra.mxu0 %v917
    %v985 = vpop.f32.mrf.mxu0
    %v986 = vadd.f32 0.0, %v985
    %v987 = vpop.f32.mrf.mxu0
    %988 = vdwg.mxu0
    %v990 = vsel %vm725, %v749, 0
    %992 = vmatprep.subr.mxu0 0.0
    %993 = vmatpush1.msra.mxu0 0.0
    %994 = vmatprep.subr.mxu0 0.0
    %995 = vmatpush1.msra.mxu0 0.0
    %996 = vmatprep.subr.mxu0 0.0
    %997 = vmatpush1.msra.mxu0 0.0
    %998 = vmatprep.subr.mxu0 0.0
    %999 = vmatpush1.msra.mxu0 0.0
    %1000 = vmatprep.subr.mxu0 0.0
    %1001 = vmatpush1.msra.mxu0 0.0
    %1002 = vmatprep.subr.mxu0 0.0
    %1003 = vmatpush1.msra.mxu0 0.0
    %1004 = vmatprep.subr.mxu0 0.0
    %1005 = vmatpush1.msra.mxu0 0.0
    %1006 = vmatprep.subr.mxu0 0.0
    %1007 = vmatpush1.msra.mxu0 0.0
    %1008 = vmatprep.subr.mxu0 0.0
    %1009 = vmatpush1.msra.mxu0 0.0
    %1010 = vmatprep.subr.mxu0 0.0
    %1011 = vmatpush1.msra.mxu0 0.0
    %1012 = vmatprep.subr.mxu0 0.0
    %1013 = vmatpush1.msra.mxu0 0.0
    %1014 = vmatprep.subr.mxu0 0.0
    %1015 = vmatpush1.msra.mxu0 0.0
    %1016 = vmatprep.subr.mxu0 0.0
    %1017 = vmatpush1.msra.mxu0 0.0
    %1018 = vmatprep.subr.mxu0 0.0
    %1019 = vmatpush1.msra.mxu0 0.0
    %1020 = vmatprep.subr.mxu0 0.0
    %1021 = vmatpush1.msra.mxu0 0.0
    %1022 = vmatprep.subr.mxu0 0.0
    %1023 = vmatpush1.msra.mxu0 %v418
    %1024 = vmatprep.subr.mxu0 0.0
    %1025 = vmatpush2.msra.mxu0 0.0
    %1026 = vmatprep.subr.mxu0 0.0
    %1027 = vmatpush2.msra.mxu0 0.0
    %1028 = vmatprep.subr.mxu0 0.0
    %1029 = vmatpush2.msra.mxu0 0.0
    %1030 = vmatprep.subr.mxu0 0.0
    %1031 = vmatpush2.msra.mxu0 0.0
    %1032 = vmatprep.subr.mxu0 0.0
    %1033 = vmatpush2.msra.mxu0 0.0
    %1034 = vmatprep.subr.mxu0 0.0
    %1035 = vmatpush2.msra.mxu0 0.0
    %1036 = vmatprep.subr.mxu0 0.0
    %1037 = vmatpush2.msra.mxu0 0.0
    %1038 = vmatprep.subr.mxu0 0.0
    %1039 = vmatpush2.msra.mxu0 0.0
    %1040 = vmatprep.subr.mxu0 0.0
    %1041 = vmatpush2.msra.mxu0 0.0
    %1042 = vmatprep.subr.mxu0 0.0
    %1043 = vmatpush2.msra.mxu0 0.0
    %1044 = vmatprep.subr.mxu0 0.0
    %1045 = vmatpush2.msra.mxu0 0.0
    %1046 = vmatprep.subr.mxu0 0.0
    %1047 = vmatpush2.msra.mxu0 0.0
    %1048 = vmatprep.subr.mxu0 0.0
    %1049 = vmatpush2.msra.mxu0 0.0
    %1050 = vmatprep.subr.mxu0 0.0
    %1051 = vmatpush2.msra.mxu0 0.0
    %1052 = vmatprep.subr.mxu0 0.0
    %1053 = vmatpush2.msra.mxu0 0.0
    %1054 = vmatprep.subr.mxu0 0.0
    %1055 = vmatpush2.msra.mxu0 0.0
    %1056 = vmatprep.mubr.f32.mxu0 0.0
    %1057 = vmatmul.mubr.f32.gmra.mxu0 %v990
    %v1058 = vpop.f32.mrf.mxu0
    %v1059 = vadd.f32 0.0, %v1058
    %v1060 = vpop.f32.mrf.mxu0
    %1061 = vdwg.mxu0
    %v1062 = vmul.f32 %v840, %v763
    %v1063 = vmul.f32 %v913, %v765
    %v1064 = vmul.f32 %v986, %v767
    %v1065 = vmul.f32 %v1059, %v769
    %1066 = vst.msk [vmem:[#allocation2] sm:$0xff] %vm420, %v1062
    %1067 = vst.msk [vmem:[#allocation2 + $0x8] sm:$0xff] %vm420, %v1063
    %1068 = vst.msk [vmem:[#allocation2 + $0x10] sm:$0xff] %vm420, %v1064
    %1069 = vst.msk [vmem:[#allocation2 + $0x18] sm:$0xff] %vm420, %v1065
    %1070 = vrot.lane.b32.xlu0 %v281, 96
    %v1071 = vpop.permute.xlu0 %1070
    %1072 = vrot.lane.b32.xlu0 %v398, 96
    %v1073 = vpop.permute.xlu0 %1072
    %v1074 = vsel %vm420, %v1071, 0
    %v1076 = vsel %vm420, %v1073, 0
    %1078 = vmatprep.subr.mxu0 0.0
    %1079 = vmatpush1.xpose.msra.mxu0 0.0
    %1080 = vmatprep.subr.mxu0 0.0
    %1081 = vmatpush1.xpose.msra.mxu0 0.0
    %1082 = vmatprep.subr.mxu0 0.0
    %1083 = vmatpush1.xpose.msra.mxu0 0.0
    %1084 = vmatprep.subr.mxu0 0.0
    %1085 = vmatpush1.xpose.msra.mxu0 0.0
    %1086 = vmatprep.subr.mxu0 0.0
    %1087 = vmatpush1.xpose.msra.mxu0 0.0
    %1088 = vmatprep.subr.mxu0 0.0
    %1089 = vmatpush1.xpose.msra.mxu0 0.0
    %1090 = vmatprep.subr.mxu0 0.0
    %1091 = vmatpush1.xpose.msra.mxu0 0.0
    %1092 = vmatprep.subr.mxu0 0.0
    %1093 = vmatpush1.xpose.msra.mxu0 0.0
    %1094 = vmatprep.subr.mxu0 0.0
    %1095 = vmatpush1.xpose.msra.mxu0 0.0
    %1096 = vmatprep.subr.mxu0 0.0
    %1097 = vmatpush1.xpose.msra.mxu0 0.0
    %1098 = vmatprep.subr.mxu0 0.0
    %1099 = vmatpush1.xpose.msra.mxu0 0.0
    %1100 = vmatprep.subr.mxu0 0.0
    %1101 = vmatpush1.xpose.msra.mxu0 0.0
    %1102 = vmatprep.subr.mxu0 0.0
    %1103 = vmatpush1.xpose.msra.mxu0 0.0
    %1104 = vmatprep.subr.mxu0 0.0
    %1105 = vmatpush1.xpose.msra.mxu0 0.0
    %1106 = vmatprep.subr.mxu0 0.0
    %1107 = vmatpush1.xpose.msra.mxu0 0.0
    %1108 = vmatprep.subr.mxu0 0.0
    %1109 = vmatpush1.xpose.msra.mxu0 %v1076
    %1110 = vmatprep.subr.mxu0 0.0
    %1111 = vmatpush2.xpose.msra.mxu0 0.0
    %1112 = vmatprep.subr.mxu0 0.0
    %1113 = vmatpush2.xpose.msra.mxu0 0.0
    %1114 = vmatprep.subr.mxu0 0.0
    %1115 = vmatpush2.xpose.msra.mxu0 0.0
    %1116 = vmatprep.subr.mxu0 0.0
    %1117 = vmatpush2.xpose.msra.mxu0 0.0
    %1118 = vmatprep.subr.mxu0 0.0
    %1119 = vmatpush2.xpose.msra.mxu0 0.0
    %1120 = vmatprep.subr.mxu0 0.0
    %1121 = vmatpush2.xpose.msra.mxu0 0.0
    %1122 = vmatprep.subr.mxu0 0.0
    %1123 = vmatpush2.xpose.msra.mxu0 0.0
    %1124 = vmatprep.subr.mxu0 0.0
    %1125 = vmatpush2.xpose.msra.mxu0 0.0
    %1126 = vmatprep.subr.mxu0 0.0
    %1127 = vmatpush2.xpose.msra.mxu0 0.0
    %1128 = vmatprep.subr.mxu0 0.0
    %1129 = vmatpush2.xpose.msra.mxu0 0.0
    %1130 = vmatprep.subr.mxu0 0.0
    %1131 = vmatpush2.xpose.msra.mxu0 0.0
    %1132 = vmatprep.subr.mxu0 0.0
    %1133 = vmatpush2.xpose.msra.mxu0 0.0
    %1134 = vmatprep.subr.mxu0 0.0
    %1135 = vmatpush2.xpose.msra.mxu0 0.0
    %1136 = vmatprep.subr.mxu0 0.0
    %1137 = vmatpush2.xpose.msra.mxu0 0.0
    %1138 = vmatprep.subr.mxu0 0.0
    %1139 = vmatpush2.xpose.msra.mxu0 0.0
    %1140 = vmatprep.subr.mxu0 0.0
    %1141 = vmatpush2.xpose.msra.mxu0 0.0
    %1142 = vmatprep.mubr.f32.mxu0 0.0
    %1143 = vmatmul.mubr.f32.gmra.mxu0 %v1074
    %v1144 = vpop.f32.mrf.mxu0
    %v1145 = vadd.f32 0.0, %v1144
    %v1146 = vpop.f32.mrf.mxu0
    %1147 = vdwg.mxu0
    %1148 = vrot.lane.b32.xlu0 %v286, 96
    %v1149 = vpop.permute.xlu0 %1148
    %1150 = vrot.lane.b32.xlu0 %v404, 96
    %v1151 = vpop.permute.xlu0 %1150
    %v1152 = vsel %vm420, %v1149, 0
    %v1154 = vsel %vm420, %v1151, 0
    %1156 = vmatprep.subr.mxu0 0.0
    %1157 = vmatpush1.xpose.msra.mxu0 0.0
    %1158 = vmatprep.subr.mxu0 0.0
    %1159 = vmatpush1.xpose.msra.mxu0 0.0
    %1160 = vmatprep.subr.mxu0 0.0
    %1161 = vmatpush1.xpose.msra.mxu0 0.0
    %1162 = vmatprep.subr.mxu0 0.0
    %1163 = vmatpush1.xpose.msra.mxu0 0.0
    %1164 = vmatprep.subr.mxu0 0.0
    %1165 = vmatpush1.xpose.msra.mxu0 0.0
    %1166 = vmatprep.subr.mxu0 0.0
    %1167 = vmatpush1.xpose.msra.mxu0 0.0
    %1168 = vmatprep.subr.mxu0 0.0
    %1169 = vmatpush1.xpose.msra.mxu0 0.0
    %1170 = vmatprep.subr.mxu0 0.0
    %1171 = vmatpush1.xpose.msra.mxu0 0.0
    %1172 = vmatprep.subr.mxu0 0.0
    %1173 = vmatpush1.xpose.msra.mxu0 0.0
    %1174 = vmatprep.subr.mxu0 0.0
    %1175 = vmatpush1.xpose.msra.mxu0 0.0
    %1176 = vmatprep.subr.mxu0 0.0
    %1177 = vmatpush1.xpose.msra.mxu0 0.0
    %1178 = vmatprep.subr.mxu0 0.0
    %1179 = vmatpush1.xpose.msra.mxu0 0.0
    %1180 = vmatprep.subr.mxu0 0.0
    %1181 = vmatpush1.xpose.msra.mxu0 0.0
    %1182 = vmatprep.subr.mxu0 0.0
    %1183 = vmatpush1.xpose.msra.mxu0 0.0
    %1184 = vmatprep.subr.mxu0 0.0
    %1185 = vmatpush1.xpose.msra.mxu0 0.0
    %1186 = vmatprep.subr.mxu0 0.0
    %1187 = vmatpush1.xpose.msra.mxu0 %v1154
    %1188 = vmatprep.subr.mxu0 0.0
    %1189 = vmatpush2.xpose.msra.mxu0 0.0
    %1190 = vmatprep.subr.mxu0 0.0
    %1191 = vmatpush2.xpose.msra.mxu0 0.0
    %1192 = vmatprep.subr.mxu0 0.0
    %1193 = vmatpush2.xpose.msra.mxu0 0.0
    %1194 = vmatprep.subr.mxu0 0.0
    %1195 = vmatpush2.xpose.msra.mxu0 0.0
    %1196 = vmatprep.subr.mxu0 0.0
    %1197 = vmatpush2.xpose.msra.mxu0 0.0
    %1198 = vmatprep.subr.mxu0 0.0
    %1199 = vmatpush2.xpose.msra.mxu0 0.0
    %1200 = vmatprep.subr.mxu0 0.0
    %1201 = vmatpush2.xpose.msra.mxu0 0.0
    %1202 = vmatprep.subr.mxu0 0.0
    %1203 = vmatpush2.xpose.msra.mxu0 0.0
    %1204 = vmatprep.subr.mxu0 0.0
    %1205 = vmatpush2.xpose.msra.mxu0 0.0
    %1206 = vmatprep.subr.mxu0 0.0
    %1207 = vmatpush2.xpose.msra.mxu0 0.0
    %1208 = vmatprep.subr.mxu0 0.0
    %1209 = vmatpush2.xpose.msra.mxu0 0.0
    %1210 = vmatprep.subr.mxu0 0.0
    %1211 = vmatpush2.xpose.msra.mxu0 0.0
    %1212 = vmatprep.subr.mxu0 0.0
    %1213 = vmatpush2.xpose.msra.mxu0 0.0
    %1214 = vmatprep.subr.mxu0 0.0
    %1215 = vmatpush2.xpose.msra.mxu0 0.0
    %1216 = vmatprep.subr.mxu0 0.0
    %1217 = vmatpush2.xpose.msra.mxu0 0.0
    %1218 = vmatprep.subr.mxu0 0.0
    %1219 = vmatpush2.xpose.msra.mxu0 0.0
    %1220 = vmatprep.mubr.f32.mxu0 0.0
    %1221 = vmatmul.mubr.f32.gmra.mxu0 %v1152
    %v1222 = vpop.f32.mrf.mxu0
    %v1223 = vadd.f32 0.0, %v1222
    %v1224 = vpop.f32.mrf.mxu0
    %1225 = vdwg.mxu0
    %1226 = vrot.lane.b32.xlu0 %v291, 96
    %v1227 = vpop.permute.xlu0 %1226
    %1228 = vrot.lane.b32.xlu0 %v410, 96
    %v1229 = vpop.permute.xlu0 %1228
    %v1230 = vsel %vm420, %v1227, 0
    %v1232 = vsel %vm420, %v1229, 0
    %1234 = vmatprep.subr.mxu0 0.0
    %1235 = vmatpush1.xpose.msra.mxu0 0.0
    %1236 = vmatprep.subr.mxu0 0.0
    %1237 = vmatpush1.xpose.msra.mxu0 0.0
    %1238 = vmatprep.subr.mxu0 0.0
    %1239 = vmatpush1.xpose.msra.mxu0 0.0
    %1240 = vmatprep.subr.mxu0 0.0
    %1241 = vmatpush1.xpose.msra.mxu0 0.0
    %1242 = vmatprep.subr.mxu0 0.0
    %1243 = vmatpush1.xpose.msra.mxu0 0.0
    %1244 = vmatprep.subr.mxu0 0.0
    %1245 = vmatpush1.xpose.msra.mxu0 0.0
    %1246 = vmatprep.subr.mxu0 0.0
    %1247 = vmatpush1.xpose.msra.mxu0 0.0
    %1248 = vmatprep.subr.mxu0 0.0
    %1249 = vmatpush1.xpose.msra.mxu0 0.0
    %1250 = vmatprep.subr.mxu0 0.0
    %1251 = vmatpush1.xpose.msra.mxu0 0.0
    %1252 = vmatprep.subr.mxu0 0.0
    %1253 = vmatpush1.xpose.msra.mxu0 0.0
    %1254 = vmatprep.subr.mxu0 0.0
    %1255 = vmatpush1.xpose.msra.mxu0 0.0
    %1256 = vmatprep.subr.mxu0 0.0
    %1257 = vmatpush1.xpose.msra.mxu0 0.0
    %1258 = vmatprep.subr.mxu0 0.0
    %1259 = vmatpush1.xpose.msra.mxu0 0.0
    %1260 = vmatprep.subr.mxu0 0.0
    %1261 = vmatpush1.xpose.msra.mxu0 0.0
    %1262 = vmatprep.subr.mxu0 0.0
    %1263 = vmatpush1.xpose.msra.mxu0 0.0
    %1264 = vmatprep.subr.mxu0 0.0
    %1265 = vmatpush1.xpose.msra.mxu0 %v1232
    %1266 = vmatprep.subr.mxu0 0.0
    %1267 = vmatpush2.xpose.msra.mxu0 0.0
    %1268 = vmatprep.subr.mxu0 0.0
    %1269 = vmatpush2.xpose.msra.mxu0 0.0
    %1270 = vmatprep.subr.mxu0 0.0
    %1271 = vmatpush2.xpose.msra.mxu0 0.0
    %1272 = vmatprep.subr.mxu0 0.0
    %1273 = vmatpush2.xpose.msra.mxu0 0.0
    %1274 = vmatprep.subr.mxu0 0.0
    %1275 = vmatpush2.xpose.msra.mxu0 0.0
    %1276 = vmatprep.subr.mxu0 0.0
    %1277 = vmatpush2.xpose.msra.mxu0 0.0
    %1278 = vmatprep.subr.mxu0 0.0
    %1279 = vmatpush2.xpose.msra.mxu0 0.0
    %1280 = vmatprep.subr.mxu0 0.0
    %1281 = vmatpush2.xpose.msra.mxu0 0.0
    %1282 = vmatprep.subr.mxu0 0.0
    %1283 = vmatpush2.xpose.msra.mxu0 0.0
    %1284 = vmatprep.subr.mxu0 0.0
    %1285 = vmatpush2.xpose.msra.mxu0 0.0
    %1286 = vmatprep.subr.mxu0 0.0
    %1287 = vmatpush2.xpose.msra.mxu0 0.0
    %1288 = vmatprep.subr.mxu0 0.0
    %1289 = vmatpush2.xpose.msra.mxu0 0.0
    %1290 = vmatprep.subr.mxu0 0.0
    %1291 = vmatpush2.xpose.msra.mxu0 0.0
    %1292 = vmatprep.subr.mxu0 0.0
    %1293 = vmatpush2.xpose.msra.mxu0 0.0
    %1294 = vmatprep.subr.mxu0 0.0
    %1295 = vmatpush2.xpose.msra.mxu0 0.0
    %1296 = vmatprep.subr.mxu0 0.0
    %1297 = vmatpush2.xpose.msra.mxu0 0.0
    %1298 = vmatprep.mubr.f32.mxu0 0.0
    %1299 = vmatmul.mubr.f32.gmra.mxu0 %v1230
    %v1300 = vpop.f32.mrf.mxu0
    %v1301 = vadd.f32 0.0, %v1300
    %v1302 = vpop.f32.mrf.mxu0
    %1303 = vdwg.mxu0
    %1304 = vrot.lane.b32.xlu0 %v296, 96
    %v1305 = vpop.permute.xlu0 %1304
    %1306 = vrot.lane.b32.xlu0 %v416, 96
    %v1307 = vpop.permute.xlu0 %1306
    %v1308 = vsel %vm420, %v1305, 0
    %v1310 = vsel %vm420, %v1307, 0
    %1312 = vmatprep.subr.mxu0 0.0
    %1313 = vmatpush1.xpose.msra.mxu0 0.0
    %1314 = vmatprep.subr.mxu0 0.0
    %1315 = vmatpush1.xpose.msra.mxu0 0.0
    %1316 = vmatprep.subr.mxu0 0.0
    %1317 = vmatpush1.xpose.msra.mxu0 0.0
    %1318 = vmatprep.subr.mxu0 0.0
    %1319 = vmatpush1.xpose.msra.mxu0 0.0
    %1320 = vmatprep.subr.mxu0 0.0
    %1321 = vmatpush1.xpose.msra.mxu0 0.0
    %1322 = vmatprep.subr.mxu0 0.0
    %1323 = vmatpush1.xpose.msra.mxu0 0.0
    %1324 = vmatprep.subr.mxu0 0.0
    %1325 = vmatpush1.xpose.msra.mxu0 0.0
    %1326 = vmatprep.subr.mxu0 0.0
    %1327 = vmatpush1.xpose.msra.mxu0 0.0
    %1328 = vmatprep.subr.mxu0 0.0
    %1329 = vmatpush1.xpose.msra.mxu0 0.0
    %1330 = vmatprep.subr.mxu0 0.0
    %1331 = vmatpush1.xpose.msra.mxu0 0.0
    %1332 = vmatprep.subr.mxu0 0.0
    %1333 = vmatpush1.xpose.msra.mxu0 0.0
    %1334 = vmatprep.subr.mxu0 0.0
    %1335 = vmatpush1.xpose.msra.mxu0 0.0
    %1336 = vmatprep.subr.mxu0 0.0
    %1337 = vmatpush1.xpose.msra.mxu0 0.0
    %1338 = vmatprep.subr.mxu0 0.0
    %1339 = vmatpush1.xpose.msra.mxu0 0.0
    %1340 = vmatprep.subr.mxu0 0.0
    %1341 = vmatpush1.xpose.msra.mxu0 0.0
    %1342 = vmatprep.subr.mxu0 0.0
    %1343 = vmatpush1.xpose.msra.mxu0 %v1310
    %1344 = vmatprep.subr.mxu0 0.0
    %1345 = vmatpush2.xpose.msra.mxu0 0.0
    %1346 = vmatprep.subr.mxu0 0.0
    %1347 = vmatpush2.xpose.msra.mxu0 0.0
    %1348 = vmatprep.subr.mxu0 0.0
    %1349 = vmatpush2.xpose.msra.mxu0 0.0
    %1350 = vmatprep.subr.mxu0 0.0
    %1351 = vmatpush2.xpose.msra.mxu0 0.0
    %1352 = vmatprep.subr.mxu0 0.0
    %1353 = vmatpush2.xpose.msra.mxu0 0.0
    %1354 = vmatprep.subr.mxu0 0.0
    %1355 = vmatpush2.xpose.msra.mxu0 0.0
    %1356 = vmatprep.subr.mxu0 0.0
    %1357 = vmatpush2.xpose.msra.mxu0 0.0
    %1358 = vmatprep.subr.mxu0 0.0
    %1359 = vmatpush2.xpose.msra.mxu0 0.0
    %1360 = vmatprep.subr.mxu0 0.0
    %1361 = vmatpush2.xpose.msra.mxu0 0.0
    %1362 = vmatprep.subr.mxu0 0.0
    %1363 = vmatpush2.xpose.msra.mxu0 0.0
    %1364 = vmatprep.subr.mxu0 0.0
    %1365 = vmatpush2.xpose.msra.mxu0 0.0
    %1366 = vmatprep.subr.mxu0 0.0
    %1367 = vmatpush2.xpose.msra.mxu0 0.0
    %1368 = vmatprep.subr.mxu0 0.0
    %1369 = vmatpush2.xpose.msra.mxu0 0.0
    %1370 = vmatprep.subr.mxu0 0.0
    %1371 = vmatpush2.xpose.msra.mxu0 0.0
    %1372 = vmatprep.subr.mxu0 0.0
    %1373 = vmatpush2.xpose.msra.mxu0 0.0
    %1374 = vmatprep.subr.mxu0 0.0
    %1375 = vmatpush2.xpose.msra.mxu0 0.0
    %1376 = vmatprep.mubr.f32.mxu0 0.0
    %1377 = vmatmul.mubr.f32.gmra.mxu0 %v1308
    %v1378 = vpop.f32.mrf.mxu0
    %v1379 = vadd.f32 0.0, %v1378
    %v1380 = vpop.f32.mrf.mxu0
    %1381 = vdwg.mxu0
    %v1382 = vsel %vm725, %v1145, -inf
    %1383 = vmax.xlane.f32.xlu0 %v1382
    %v1384 = vpop.xlane.xlu0 %1383
    %v1385 = vsel %vm725, %v1223, -inf
    %1386 = vmax.xlane.f32.xlu0 %v1385
    %v1387 = vpop.xlane.xlu0 %1386
    %v1388 = vsel %vm725, %v1301, -inf
    %1389 = vmax.xlane.f32.xlu0 %v1388
    %v1390 = vpop.xlane.xlu0 %1389
    %v1391 = vsel %vm725, %v1379, -inf
    %1392 = vmax.xlane.f32.xlu0 %v1391
    %v1393 = vpop.xlane.xlu0 %1392
    %v1394 = vsub.f32 %v1145, %v1384
    %v1395 = vsub.f32 %v1223, %v1387
    %v1396 = vsub.f32 %v1301, %v1390
    %v1397 = vsub.f32 %v1379, %v1393
    %v1398 = vmul.f32 %v1394, 1.442695
    %v1399 = vpow.pop %v1398
    %v1400 = vmul.f32 %v1395, 1.442695
    %v1401 = vpow.pop %v1400
    %v1402 = vmul.f32 %v1396, 1.442695
    %v1403 = vpow.pop %v1402
    %v1404 = vmul.f32 %v1397, 1.442695
    %v1405 = vpow.pop %v1404
    %v1406 = vsel %vm725, %v1399, 0.0
    %1407 = vadd.xlane.f32.xlu0 %v1406
    %v1408 = vpop.xlane.xlu0 %1407
    %v1409 = vsel %vm725, %v1401, 0.0
    %1410 = vadd.xlane.f32.xlu0 %v1409
    %v1411 = vpop.xlane.xlu0 %1410
    %v1412 = vsel %vm725, %v1403, 0.0
    %1413 = vadd.xlane.f32.xlu0 %v1412
    %v1414 = vpop.xlane.xlu0 %1413
    %v1415 = vsel %vm725, %v1405, 0.0
    %1416 = vadd.xlane.f32.xlu0 %v1415
    %v1417 = vpop.xlane.xlu0 %1416
    %v1418 = vrcp.pop %v1408
    %v1419 = vmul.f32 1.0, %v1418
    %v1420 = vrcp.pop %v1411
    %v1421 = vmul.f32 1.0, %v1420
    %v1422 = vrcp.pop %v1414
    %v1423 = vmul.f32 1.0, %v1422
    %v1424 = vrcp.pop %v1417
    %v1425 = vmul.f32 1.0, %v1424
    %1427 = vrot.lane.b32.xlu0 %v400, 96
    %v1428 = vpop.permute.xlu0 %1427
    %v1431 = vsel %vm725, %v1399, 0
    %1433 = vmatprep.subr.mxu0 0.0
    %1434 = vmatpush1.msra.mxu0 0.0
    %1435 = vmatprep.subr.mxu0 0.0
    %1436 = vmatpush1.msra.mxu0 0.0
    %1437 = vmatprep.subr.mxu0 0.0
    %1438 = vmatpush1.msra.mxu0 0.0
    %1439 = vmatprep.subr.mxu0 0.0
    %1440 = vmatpush1.msra.mxu0 0.0
    %1441 = vmatprep.subr.mxu0 0.0
    %1442 = vmatpush1.msra.mxu0 0.0
    %1443 = vmatprep.subr.mxu0 0.0
    %1444 = vmatpush1.msra.mxu0 0.0
    %1445 = vmatprep.subr.mxu0 0.0
    %1446 = vmatpush1.msra.mxu0 0.0
    %1447 = vmatprep.subr.mxu0 0.0
    %1448 = vmatpush1.msra.mxu0 0.0
    %1449 = vmatprep.subr.mxu0 0.0
    %1450 = vmatpush1.msra.mxu0 0.0
    %1451 = vmatprep.subr.mxu0 0.0
    %1452 = vmatpush1.msra.mxu0 0.0
    %1453 = vmatprep.subr.mxu0 0.0
    %1454 = vmatpush1.msra.mxu0 0.0
    %1455 = vmatprep.subr.mxu0 0.0
    %1456 = vmatpush1.msra.mxu0 0.0
    %1457 = vmatprep.subr.mxu0 0.0
    %1458 = vmatpush1.msra.mxu0 0.0
    %1459 = vmatprep.subr.mxu0 0.0
    %1460 = vmatpush1.msra.mxu0 0.0
    %1461 = vmatprep.subr.mxu0 0.0
    %1462 = vmatpush1.msra.mxu0 0.0
    %1463 = vmatprep.subr.mxu0 0.0
    %1464 = vmatpush1.msra.mxu0 %v1428
    %1465 = vmatprep.subr.mxu0 0.0
    %1466 = vmatpush2.msra.mxu0 0.0
    %1467 = vmatprep.subr.mxu0 0.0
    %1468 = vmatpush2.msra.mxu0 0.0
    %1469 = vmatprep.subr.mxu0 0.0
    %1470 = vmatpush2.msra.mxu0 0.0
    %1471 = vmatprep.subr.mxu0 0.0
    %1472 = vmatpush2.msra.mxu0 0.0
    %1473 = vmatprep.subr.mxu0 0.0
    %1474 = vmatpush2.msra.mxu0 0.0
    %1475 = vmatprep.subr.mxu0 0.0
    %1476 = vmatpush2.msra.mxu0 0.0
    %1477 = vmatprep.subr.mxu0 0.0
    %1478 = vmatpush2.msra.mxu0 0.0
    %1479 = vmatprep.subr.mxu0 0.0
    %1480 = vmatpush2.msra.mxu0 0.0
    %1481 = vmatprep.subr.mxu0 0.0
    %1482 = vmatpush2.msra.mxu0 0.0
    %1483 = vmatprep.subr.mxu0 0.0
    %1484 = vmatpush2.msra.mxu0 0.0
    %1485 = vmatprep.subr.mxu0 0.0
    %1486 = vmatpush2.msra.mxu0 0.0
    %1487 = vmatprep.subr.mxu0 0.0
    %1488 = vmatpush2.msra.mxu0 0.0
    %1489 = vmatprep.subr.mxu0 0.0
    %1490 = vmatpush2.msra.mxu0 0.0
    %1491 = vmatprep.subr.mxu0 0.0
    %1492 = vmatpush2.msra.mxu0 0.0
    %1493 = vmatprep.subr.mxu0 0.0
    %1494 = vmatpush2.msra.mxu0 0.0
    %1495 = vmatprep.subr.mxu0 0.0
    %1496 = vmatpush2.msra.mxu0 0.0
    %1497 = vmatprep.mubr.f32.mxu0 0.0
    %1498 = vmatmul.mubr.f32.gmra.mxu0 %v1431
    %v1499 = vpop.f32.mrf.mxu0
    %v1500 = vadd.f32 0.0, %v1499
    %v1501 = vpop.f32.mrf.mxu0
    %1502 = vdwg.mxu0
    %1504 = vrot.lane.b32.xlu0 %v406, 96
    %v1505 = vpop.permute.xlu0 %1504
    %v1508 = vsel %vm725, %v1401, 0
    %1510 = vmatprep.subr.mxu0 0.0
    %1511 = vmatpush1.msra.mxu0 0.0
    %1512 = vmatprep.subr.mxu0 0.0
    %1513 = vmatpush1.msra.mxu0 0.0
    %1514 = vmatprep.subr.mxu0 0.0
    %1515 = vmatpush1.msra.mxu0 0.0
    %1516 = vmatprep.subr.mxu0 0.0
    %1517 = vmatpush1.msra.mxu0 0.0
    %1518 = vmatprep.subr.mxu0 0.0
    %1519 = vmatpush1.msra.mxu0 0.0
    %1520 = vmatprep.subr.mxu0 0.0
    %1521 = vmatpush1.msra.mxu0 0.0
    %1522 = vmatprep.subr.mxu0 0.0
    %1523 = vmatpush1.msra.mxu0 0.0
    %1524 = vmatprep.subr.mxu0 0.0
    %1525 = vmatpush1.msra.mxu0 0.0
    %1526 = vmatprep.subr.mxu0 0.0
    %1527 = vmatpush1.msra.mxu0 0.0
    %1528 = vmatprep.subr.mxu0 0.0
    %1529 = vmatpush1.msra.mxu0 0.0
    %1530 = vmatprep.subr.mxu0 0.0
    %1531 = vmatpush1.msra.mxu0 0.0
    %1532 = vmatprep.subr.mxu0 0.0
    %1533 = vmatpush1.msra.mxu0 0.0
    %1534 = vmatprep.subr.mxu0 0.0
    %1535 = vmatpush1.msra.mxu0 0.0
    %1536 = vmatprep.subr.mxu0 0.0
    %1537 = vmatpush1.msra.mxu0 0.0
    %1538 = vmatprep.subr.mxu0 0.0
    %1539 = vmatpush1.msra.mxu0 0.0
    %1540 = vmatprep.subr.mxu0 0.0
    %1541 = vmatpush1.msra.mxu0 %v1505
    %1542 = vmatprep.subr.mxu0 0.0
    %1543 = vmatpush2.msra.mxu0 0.0
    %1544 = vmatprep.subr.mxu0 0.0
    %1545 = vmatpush2.msra.mxu0 0.0
    %1546 = vmatprep.subr.mxu0 0.0
    %1547 = vmatpush2.msra.mxu0 0.0
    %1548 = vmatprep.subr.mxu0 0.0
    %1549 = vmatpush2.msra.mxu0 0.0
    %1550 = vmatprep.subr.mxu0 0.0
    %1551 = vmatpush2.msra.mxu0 0.0
    %1552 = vmatprep.subr.mxu0 0.0
    %1553 = vmatpush2.msra.mxu0 0.0
    %1554 = vmatprep.subr.mxu0 0.0
    %1555 = vmatpush2.msra.mxu0 0.0
    %1556 = vmatprep.subr.mxu0 0.0
    %1557 = vmatpush2.msra.mxu0 0.0
    %1558 = vmatprep.subr.mxu0 0.0
    %1559 = vmatpush2.msra.mxu0 0.0
    %1560 = vmatprep.subr.mxu0 0.0
    %1561 = vmatpush2.msra.mxu0 0.0
    %1562 = vmatprep.subr.mxu0 0.0
    %1563 = vmatpush2.msra.mxu0 0.0
    %1564 = vmatprep.subr.mxu0 0.0
    %1565 = vmatpush2.msra.mxu0 0.0
    %1566 = vmatprep.subr.mxu0 0.0
    %1567 = vmatpush2.msra.mxu0 0.0
    %1568 = vmatprep.subr.mxu0 0.0
    %1569 = vmatpush2.msra.mxu0 0.0
    %1570 = vmatprep.subr.mxu0 0.0
    %1571 = vmatpush2.msra.mxu0 0.0
    %1572 = vmatprep.subr.mxu0 0.0
    %1573 = vmatpush2.msra.mxu0 0.0
    %1574 = vmatprep.mubr.f32.mxu0 0.0
    %1575 = vmatmul.mubr.f32.gmra.mxu0 %v1508
    %v1576 = vpop.f32.mrf.mxu0
    %v1577 = vadd.f32 0.0, %v1576
    %v1578 = vpop.f32.mrf.mxu0
    %1579 = vdwg.mxu0
    %1581 = vrot.lane.b32.xlu0 %v412, 96
    %v1582 = vpop.permute.xlu0 %1581
    %v1585 = vsel %vm725, %v1403, 0
    %1587 = vmatprep.subr.mxu0 0.0
    %1588 = vmatpush1.msra.mxu0 0.0
    %1589 = vmatprep.subr.mxu0 0.0
    %1590 = vmatpush1.msra.mxu0 0.0
    %1591 = vmatprep.subr.mxu0 0.0
    %1592 = vmatpush1.msra.mxu0 0.0
    %1593 = vmatprep.subr.mxu0 0.0
    %1594 = vmatpush1.msra.mxu0 0.0
    %1595 = vmatprep.subr.mxu0 0.0
    %1596 = vmatpush1.msra.mxu0 0.0
    %1597 = vmatprep.subr.mxu0 0.0
    %1598 = vmatpush1.msra.mxu0 0.0
    %1599 = vmatprep.subr.mxu0 0.0
    %1600 = vmatpush1.msra.mxu0 0.0
    %1601 = vmatprep.subr.mxu0 0.0
    %1602 = vmatpush1.msra.mxu0 0.0
    %1603 = vmatprep.subr.mxu0 0.0
    %1604 = vmatpush1.msra.mxu0 0.0
    %1605 = vmatprep.subr.mxu0 0.0
    %1606 = vmatpush1.msra.mxu0 0.0
    %1607 = vmatprep.subr.mxu0 0.0
    %1608 = vmatpush1.msra.mxu0 0.0
    %1609 = vmatprep.subr.mxu0 0.0
    %1610 = vmatpush1.msra.mxu0 0.0
    %1611 = vmatprep.subr.mxu0 0.0
    %1612 = vmatpush1.msra.mxu0 0.0
    %1613 = vmatprep.subr.mxu0 0.0
    %1614 = vmatpush1.msra.mxu0 0.0
    %1615 = vmatprep.subr.mxu0 0.0
    %1616 = vmatpush1.msra.mxu0 0.0
    %1617 = vmatprep.subr.mxu0 0.0
    %1618 = vmatpush1.msra.mxu0 %v1582
    %1619 = vmatprep.subr.mxu0 0.0
    %1620 = vmatpush2.msra.mxu0 0.0
    %1621 = vmatprep.subr.mxu0 0.0
    %1622 = vmatpush2.msra.mxu0 0.0
    %1623 = vmatprep.subr.mxu0 0.0
    %1624 = vmatpush2.msra.mxu0 0.0
    %1625 = vmatprep.subr.mxu0 0.0
    %1626 = vmatpush2.msra.mxu0 0.0
    %1627 = vmatprep.subr.mxu0 0.0
    %1628 = vmatpush2.msra.mxu0 0.0
    %1629 = vmatprep.subr.mxu0 0.0
    %1630 = vmatpush2.msra.mxu0 0.0
    %1631 = vmatprep.subr.mxu0 0.0
    %1632 = vmatpush2.msra.mxu0 0.0
    %1633 = vmatprep.subr.mxu0 0.0
    %1634 = vmatpush2.msra.mxu0 0.0
    %1635 = vmatprep.subr.mxu0 0.0
    %1636 = vmatpush2.msra.mxu0 0.0
    %1637 = vmatprep.subr.mxu0 0.0
    %1638 = vmatpush2.msra.mxu0 0.0
    %1639 = vmatprep.subr.mxu0 0.0
    %1640 = vmatpush2.msra.mxu0 0.0
    %1641 = vmatprep.subr.mxu0 0.0
    %1642 = vmatpush2.msra.mxu0 0.0
    %1643 = vmatprep.subr.mxu0 0.0
    %1644 = vmatpush2.msra.mxu0 0.0
    %1645 = vmatprep.subr.mxu0 0.0
    %1646 = vmatpush2.msra.mxu0 0.0
    %1647 = vmatprep.subr.mxu0 0.0
    %1648 = vmatpush2.msra.mxu0 0.0
    %1649 = vmatprep.subr.mxu0 0.0
    %1650 = vmatpush2.msra.mxu0 0.0
    %1651 = vmatprep.mubr.f32.mxu0 0.0
    %1652 = vmatmul.mubr.f32.gmra.mxu0 %v1585
    %v1653 = vpop.f32.mrf.mxu0
    %v1654 = vadd.f32 0.0, %v1653
    %v1655 = vpop.f32.mrf.mxu0
    %1656 = vdwg.mxu0
    %1658 = vrot.lane.b32.xlu0 %v418, 96
    %v1659 = vpop.permute.xlu0 %1658
    %v1662 = vsel %vm725, %v1405, 0
    %1664 = vmatprep.subr.mxu0 0.0
    %1665 = vmatpush1.msra.mxu0 0.0
    %1666 = vmatprep.subr.mxu0 0.0
    %1667 = vmatpush1.msra.mxu0 0.0
    %1668 = vmatprep.subr.mxu0 0.0
    %1669 = vmatpush1.msra.mxu0 0.0
    %1670 = vmatprep.subr.mxu0 0.0
    %1671 = vmatpush1.msra.mxu0 0.0
    %1672 = vmatprep.subr.mxu0 0.0
    %1673 = vmatpush1.msra.mxu0 0.0
    %1674 = vmatprep.subr.mxu0 0.0
    %1675 = vmatpush1.msra.mxu0 0.0
    %1676 = vmatprep.subr.mxu0 0.0
    %1677 = vmatpush1.msra.mxu0 0.0
    %1678 = vmatprep.subr.mxu0 0.0
    %1679 = vmatpush1.msra.mxu0 0.0
    %1680 = vmatprep.subr.mxu0 0.0
    %1681 = vmatpush1.msra.mxu0 0.0
    %1682 = vmatprep.subr.mxu0 0.0
    %1683 = vmatpush1.msra.mxu0 0.0
    %1684 = vmatprep.subr.mxu0 0.0
    %1685 = vmatpush1.msra.mxu0 0.0
    %1686 = vmatprep.subr.mxu0 0.0
    %1687 = vmatpush1.msra.mxu0 0.0
    %1688 = vmatprep.subr.mxu0 0.0
    %1689 = vmatpush1.msra.mxu0 0.0
    %1690 = vmatprep.subr.mxu0 0.0
    %1691 = vmatpush1.msra.mxu0 0.0
    %1692 = vmatprep.subr.mxu0 0.0
    %1693 = vmatpush1.msra.mxu0 0.0
    %1694 = vmatprep.subr.mxu0 0.0
    %1695 = vmatpush1.msra.mxu0 %v1659
    %1696 = vmatprep.subr.mxu0 0.0
    %1697 = vmatpush2.msra.mxu0 0.0
    %1698 = vmatprep.subr.mxu0 0.0
    %1699 = vmatpush2.msra.mxu0 0.0
    %1700 = vmatprep.subr.mxu0 0.0
    %1701 = vmatpush2.msra.mxu0 0.0
    %1702 = vmatprep.subr.mxu0 0.0
    %1703 = vmatpush2.msra.mxu0 0.0
    %1704 = vmatprep.subr.mxu0 0.0
    %1705 = vmatpush2.msra.mxu0 0.0
    %1706 = vmatprep.subr.mxu0 0.0
    %1707 = vmatpush2.msra.mxu0 0.0
    %1708 = vmatprep.subr.mxu0 0.0
    %1709 = vmatpush2.msra.mxu0 0.0
    %1710 = vmatprep.subr.mxu0 0.0
    %1711 = vmatpush2.msra.mxu0 0.0
    %1712 = vmatprep.subr.mxu0 0.0
    %1713 = vmatpush2.msra.mxu0 0.0
    %1714 = vmatprep.subr.mxu0 0.0
    %1715 = vmatpush2.msra.mxu0 0.0
    %1716 = vmatprep.subr.mxu0 0.0
    %1717 = vmatpush2.msra.mxu0 0.0
    %1718 = vmatprep.subr.mxu0 0.0
    %1719 = vmatpush2.msra.mxu0 0.0
    %1720 = vmatprep.subr.mxu0 0.0
    %1721 = vmatpush2.msra.mxu0 0.0
    %1722 = vmatprep.subr.mxu0 0.0
    %1723 = vmatpush2.msra.mxu0 0.0
    %1724 = vmatprep.subr.mxu0 0.0
    %1725 = vmatpush2.msra.mxu0 0.0
    %1726 = vmatprep.subr.mxu0 0.0
    %1727 = vmatpush2.msra.mxu0 0.0
    %1728 = vmatprep.mubr.f32.mxu0 0.0
    %1729 = vmatmul.mubr.f32.gmra.mxu0 %v1662
    %v1730 = vpop.f32.mrf.mxu0
    %v1731 = vadd.f32 0.0, %v1730
    %v1732 = vpop.f32.mrf.mxu0
    %1733 = vdwg.mxu0
    %v1734 = vmul.f32 %v1500, %v1419
    %v1735 = vmul.f32 %v1577, %v1421
    %v1736 = vmul.f32 %v1654, %v1423
    %v1737 = vmul.f32 %v1731, %v1425
    %1742 = vrot.lane.b32.xlu0 %v1734, 32
    %v1743 = vpop.permute.xlu0 %1742
    %1744 = vrot.lane.b32.xlu0 %v1735, 32
    %v1745 = vpop.permute.xlu0 %1744
    %1746 = vrot.lane.b32.xlu0 %v1736, 32
    %v1747 = vpop.permute.xlu0 %1746
    %1748 = vrot.lane.b32.xlu0 %v1737, 32
    %v1749 = vpop.permute.xlu0 %1748
    %vm1754 = vcmask 523520
    %1755 = vst.msk [vmem:[#allocation2] sm:$0xff] %vm1754, %v1743
    %1756 = vst.msk [vmem:[#allocation2 + $0x8] sm:$0xff] %vm1754, %v1745
    %1757 = vst.msk [vmem:[#allocation2 + $0x10] sm:$0xff] %vm1754, %v1747
    %1758 = vst.msk [vmem:[#allocation2 + $0x18] sm:$0xff] %vm1754, %v1749
    %1759 = vrot.lane.b32.xlu0 %v281, 64
    %v1760 = vpop.permute.xlu0 %1759
    %1761 = vrot.lane.b32.xlu0 %v398, 64
    %v1762 = vpop.permute.xlu0 %1761
    %v1763 = vsel %vm420, %v1760, 0
    %v1765 = vsel %vm420, %v1762, 0
    %1767 = vmatprep.subr.mxu0 0.0
    %1768 = vmatpush1.xpose.msra.mxu0 0.0
    %1769 = vmatprep.subr.mxu0 0.0
    %1770 = vmatpush1.xpose.msra.mxu0 0.0
    %1771 = vmatprep.subr.mxu0 0.0
    %1772 = vmatpush1.xpose.msra.mxu0 0.0
    %1773 = vmatprep.subr.mxu0 0.0
    %1774 = vmatpush1.xpose.msra.mxu0 0.0
    %1775 = vmatprep.subr.mxu0 0.0
    %1776 = vmatpush1.xpose.msra.mxu0 0.0
    %1777 = vmatprep.subr.mxu0 0.0
    %1778 = vmatpush1.xpose.msra.mxu0 0.0
    %1779 = vmatprep.subr.mxu0 0.0
    %1780 = vmatpush1.xpose.msra.mxu0 0.0
    %1781 = vmatprep.subr.mxu0 0.0
    %1782 = vmatpush1.xpose.msra.mxu0 0.0
    %1783 = vmatprep.subr.mxu0 0.0
    %1784 = vmatpush1.xpose.msra.mxu0 0.0
    %1785 = vmatprep.subr.mxu0 0.0
    %1786 = vmatpush1.xpose.msra.mxu0 0.0
    %1787 = vmatprep.subr.mxu0 0.0
    %1788 = vmatpush1.xpose.msra.mxu0 0.0
    %1789 = vmatprep.subr.mxu0 0.0
    %1790 = vmatpush1.xpose.msra.mxu0 0.0
    %1791 = vmatprep.subr.mxu0 0.0
    %1792 = vmatpush1.xpose.msra.mxu0 0.0
    %1793 = vmatprep.subr.mxu0 0.0
    %1794 = vmatpush1.xpose.msra.mxu0 0.0
    %1795 = vmatprep.subr.mxu0 0.0
    %1796 = vmatpush1.xpose.msra.mxu0 0.0
    %1797 = vmatprep.subr.mxu0 0.0
    %1798 = vmatpush1.xpose.msra.mxu0 %v1765
    %1799 = vmatprep.subr.mxu0 0.0
    %1800 = vmatpush2.xpose.msra.mxu0 0.0
    %1801 = vmatprep.subr.mxu0 0.0
    %1802 = vmatpush2.xpose.msra.mxu0 0.0
    %1803 = vmatprep.subr.mxu0 0.0
    %1804 = vmatpush2.xpose.msra.mxu0 0.0
    %1805 = vmatprep.subr.mxu0 0.0
    %1806 = vmatpush2.xpose.msra.mxu0 0.0
    %1807 = vmatprep.subr.mxu0 0.0
    %1808 = vmatpush2.xpose.msra.mxu0 0.0
    %1809 = vmatprep.subr.mxu0 0.0
    %1810 = vmatpush2.xpose.msra.mxu0 0.0
    %1811 = vmatprep.subr.mxu0 0.0
    %1812 = vmatpush2.xpose.msra.mxu0 0.0
    %1813 = vmatprep.subr.mxu0 0.0
    %1814 = vmatpush2.xpose.msra.mxu0 0.0
    %1815 = vmatprep.subr.mxu0 0.0
    %1816 = vmatpush2.xpose.msra.mxu0 0.0
    %1817 = vmatprep.subr.mxu0 0.0
    %1818 = vmatpush2.xpose.msra.mxu0 0.0
    %1819 = vmatprep.subr.mxu0 0.0
    %1820 = vmatpush2.xpose.msra.mxu0 0.0
    %1821 = vmatprep.subr.mxu0 0.0
    %1822 = vmatpush2.xpose.msra.mxu0 0.0
    %1823 = vmatprep.subr.mxu0 0.0
    %1824 = vmatpush2.xpose.msra.mxu0 0.0
    %1825 = vmatprep.subr.mxu0 0.0
    %1826 = vmatpush2.xpose.msra.mxu0 0.0
    %1827 = vmatprep.subr.mxu0 0.0
    %1828 = vmatpush2.xpose.msra.mxu0 0.0
    %1829 = vmatprep.subr.mxu0 0.0
    %1830 = vmatpush2.xpose.msra.mxu0 0.0
    %1831 = vmatprep.mubr.f32.mxu0 0.0
    %1832 = vmatmul.mubr.f32.gmra.mxu0 %v1763
    %v1833 = vpop.f32.mrf.mxu0
    %v1834 = vadd.f32 0.0, %v1833
    %v1835 = vpop.f32.mrf.mxu0
    %1836 = vdwg.mxu0
    %1837 = vrot.lane.b32.xlu0 %v286, 64
    %v1838 = vpop.permute.xlu0 %1837
    %1839 = vrot.lane.b32.xlu0 %v404, 64
    %v1840 = vpop.permute.xlu0 %1839
    %v1841 = vsel %vm420, %v1838, 0
    %v1843 = vsel %vm420, %v1840, 0
    %1845 = vmatprep.subr.mxu0 0.0
    %1846 = vmatpush1.xpose.msra.mxu0 0.0
    %1847 = vmatprep.subr.mxu0 0.0
    %1848 = vmatpush1.xpose.msra.mxu0 0.0
    %1849 = vmatprep.subr.mxu0 0.0
    %1850 = vmatpush1.xpose.msra.mxu0 0.0
    %1851 = vmatprep.subr.mxu0 0.0
    %1852 = vmatpush1.xpose.msra.mxu0 0.0
    %1853 = vmatprep.subr.mxu0 0.0
    %1854 = vmatpush1.xpose.msra.mxu0 0.0
    %1855 = vmatprep.subr.mxu0 0.0
    %1856 = vmatpush1.xpose.msra.mxu0 0.0
    %1857 = vmatprep.subr.mxu0 0.0
    %1858 = vmatpush1.xpose.msra.mxu0 0.0
    %1859 = vmatprep.subr.mxu0 0.0
    %1860 = vmatpush1.xpose.msra.mxu0 0.0
    %1861 = vmatprep.subr.mxu0 0.0
    %1862 = vmatpush1.xpose.msra.mxu0 0.0
    %1863 = vmatprep.subr.mxu0 0.0
    %1864 = vmatpush1.xpose.msra.mxu0 0.0
    %1865 = vmatprep.subr.mxu0 0.0
    %1866 = vmatpush1.xpose.msra.mxu0 0.0
    %1867 = vmatprep.subr.mxu0 0.0
    %1868 = vmatpush1.xpose.msra.mxu0 0.0
    %1869 = vmatprep.subr.mxu0 0.0
    %1870 = vmatpush1.xpose.msra.mxu0 0.0
    %1871 = vmatprep.subr.mxu0 0.0
    %1872 = vmatpush1.xpose.msra.mxu0 0.0
    %1873 = vmatprep.subr.mxu0 0.0
    %1874 = vmatpush1.xpose.msra.mxu0 0.0
    %1875 = vmatprep.subr.mxu0 0.0
    %1876 = vmatpush1.xpose.msra.mxu0 %v1843
    %1877 = vmatprep.subr.mxu0 0.0
    %1878 = vmatpush2.xpose.msra.mxu0 0.0
    %1879 = vmatprep.subr.mxu0 0.0
    %1880 = vmatpush2.xpose.msra.mxu0 0.0
    %1881 = vmatprep.subr.mxu0 0.0
    %1882 = vmatpush2.xpose.msra.mxu0 0.0
    %1883 = vmatprep.subr.mxu0 0.0
    %1884 = vmatpush2.xpose.msra.mxu0 0.0
    %1885 = vmatprep.subr.mxu0 0.0
    %1886 = vmatpush2.xpose.msra.mxu0 0.0
    %1887 = vmatprep.subr.mxu0 0.0
    %1888 = vmatpush2.xpose.msra.mxu0 0.0
    %1889 = vmatprep.subr.mxu0 0.0
    %1890 = vmatpush2.xpose.msra.mxu0 0.0
    %1891 = vmatprep.subr.mxu0 0.0
    %1892 = vmatpush2.xpose.msra.mxu0 0.0
    %1893 = vmatprep.subr.mxu0 0.0
    %1894 = vmatpush2.xpose.msra.mxu0 0.0
    %1895 = vmatprep.subr.mxu0 0.0
    %1896 = vmatpush2.xpose.msra.mxu0 0.0
    %1897 = vmatprep.subr.mxu0 0.0
    %1898 = vmatpush2.xpose.msra.mxu0 0.0
    %1899 = vmatprep.subr.mxu0 0.0
    %1900 = vmatpush2.xpose.msra.mxu0 0.0
    %1901 = vmatprep.subr.mxu0 0.0
    %1902 = vmatpush2.xpose.msra.mxu0 0.0
    %1903 = vmatprep.subr.mxu0 0.0
    %1904 = vmatpush2.xpose.msra.mxu0 0.0
    %1905 = vmatprep.subr.mxu0 0.0
    %1906 = vmatpush2.xpose.msra.mxu0 0.0
    %1907 = vmatprep.subr.mxu0 0.0
    %1908 = vmatpush2.xpose.msra.mxu0 0.0
    %1909 = vmatprep.mubr.f32.mxu0 0.0
    %1910 = vmatmul.mubr.f32.gmra.mxu0 %v1841
    %v1911 = vpop.f32.mrf.mxu0
    %v1912 = vadd.f32 0.0, %v1911
    %v1913 = vpop.f32.mrf.mxu0
    %1914 = vdwg.mxu0
    %1915 = vrot.lane.b32.xlu0 %v291, 64
    %v1916 = vpop.permute.xlu0 %1915
    %1917 = vrot.lane.b32.xlu0 %v410, 64
    %v1918 = vpop.permute.xlu0 %1917
    %v1919 = vsel %vm420, %v1916, 0
    %v1921 = vsel %vm420, %v1918, 0
    %1923 = vmatprep.subr.mxu0 0.0
    %1924 = vmatpush1.xpose.msra.mxu0 0.0
    %1925 = vmatprep.subr.mxu0 0.0
    %1926 = vmatpush1.xpose.msra.mxu0 0.0
    %1927 = vmatprep.subr.mxu0 0.0
    %1928 = vmatpush1.xpose.msra.mxu0 0.0
    %1929 = vmatprep.subr.mxu0 0.0
    %1930 = vmatpush1.xpose.msra.mxu0 0.0
    %1931 = vmatprep.subr.mxu0 0.0
    %1932 = vmatpush1.xpose.msra.mxu0 0.0
    %1933 = vmatprep.subr.mxu0 0.0
    %1934 = vmatpush1.xpose.msra.mxu0 0.0
    %1935 = vmatprep.subr.mxu0 0.0
    %1936 = vmatpush1.xpose.msra.mxu0 0.0
    %1937 = vmatprep.subr.mxu0 0.0
    %1938 = vmatpush1.xpose.msra.mxu0 0.0
    %1939 = vmatprep.subr.mxu0 0.0
    %1940 = vmatpush1.xpose.msra.mxu0 0.0
    %1941 = vmatprep.subr.mxu0 0.0
    %1942 = vmatpush1.xpose.msra.mxu0 0.0
    %1943 = vmatprep.subr.mxu0 0.0
    %1944 = vmatpush1.xpose.msra.mxu0 0.0
    %1945 = vmatprep.subr.mxu0 0.0
    %1946 = vmatpush1.xpose.msra.mxu0 0.0
    %1947 = vmatprep.subr.mxu0 0.0
    %1948 = vmatpush1.xpose.msra.mxu0 0.0
    %1949 = vmatprep.subr.mxu0 0.0
    %1950 = vmatpush1.xpose.msra.mxu0 0.0
    %1951 = vmatprep.subr.mxu0 0.0
    %1952 = vmatpush1.xpose.msra.mxu0 0.0
    %1953 = vmatprep.subr.mxu0 0.0
    %1954 = vmatpush1.xpose.msra.mxu0 %v1921
    %1955 = vmatprep.subr.mxu0 0.0
    %1956 = vmatpush2.xpose.msra.mxu0 0.0
    %1957 = vmatprep.subr.mxu0 0.0
    %1958 = vmatpush2.xpose.msra.mxu0 0.0
    %1959 = vmatprep.subr.mxu0 0.0
    %1960 = vmatpush2.xpose.msra.mxu0 0.0
    %1961 = vmatprep.subr.mxu0 0.0
    %1962 = vmatpush2.xpose.msra.mxu0 0.0
    %1963 = vmatprep.subr.mxu0 0.0
    %1964 = vmatpush2.xpose.msra.mxu0 0.0
    %1965 = vmatprep.subr.mxu0 0.0
    %1966 = vmatpush2.xpose.msra.mxu0 0.0
    %1967 = vmatprep.subr.mxu0 0.0
    %1968 = vmatpush2.xpose.msra.mxu0 0.0
    %1969 = vmatprep.subr.mxu0 0.0
    %1970 = vmatpush2.xpose.msra.mxu0 0.0
    %1971 = vmatprep.subr.mxu0 0.0
    %1972 = vmatpush2.xpose.msra.mxu0 0.0
    %1973 = vmatprep.subr.mxu0 0.0
    %1974 = vmatpush2.xpose.msra.mxu0 0.0
    %1975 = vmatprep.subr.mxu0 0.0
    %1976 = vmatpush2.xpose.msra.mxu0 0.0
    %1977 = vmatprep.subr.mxu0 0.0
    %1978 = vmatpush2.xpose.msra.mxu0 0.0
    %1979 = vmatprep.subr.mxu0 0.0
    %1980 = vmatpush2.xpose.msra.mxu0 0.0
    %1981 = vmatprep.subr.mxu0 0.0
    %1982 = vmatpush2.xpose.msra.mxu0 0.0
    %1983 = vmatprep.subr.mxu0 0.0
    %1984 = vmatpush2.xpose.msra.mxu0 0.0
    %1985 = vmatprep.subr.mxu0 0.0
    %1986 = vmatpush2.xpose.msra.mxu0 0.0
    %1987 = vmatprep.mubr.f32.mxu0 0.0
    %1988 = vmatmul.mubr.f32.gmra.mxu0 %v1919
    %v1989 = vpop.f32.mrf.mxu0
    %v1990 = vadd.f32 0.0, %v1989
    %v1991 = vpop.f32.mrf.mxu0
    %1992 = vdwg.mxu0
    %1993 = vrot.lane.b32.xlu0 %v296, 64
    %v1994 = vpop.permute.xlu0 %1993
    %1995 = vrot.lane.b32.xlu0 %v416, 64
    %v1996 = vpop.permute.xlu0 %1995
    %v1997 = vsel %vm420, %v1994, 0
    %v1999 = vsel %vm420, %v1996, 0
    %2001 = vmatprep.subr.mxu0 0.0
    %2002 = vmatpush1.xpose.msra.mxu0 0.0
    %2003 = vmatprep.subr.mxu0 0.0
    %2004 = vmatpush1.xpose.msra.mxu0 0.0
    %2005 = vmatprep.subr.mxu0 0.0
    %2006 = vmatpush1.xpose.msra.mxu0 0.0
    %2007 = vmatprep.subr.mxu0 0.0
    %2008 = vmatpush1.xpose.msra.mxu0 0.0
    %2009 = vmatprep.subr.mxu0 0.0
    %2010 = vmatpush1.xpose.msra.mxu0 0.0
    %2011 = vmatprep.subr.mxu0 0.0
    %2012 = vmatpush1.xpose.msra.mxu0 0.0
    %2013 = vmatprep.subr.mxu0 0.0
    %2014 = vmatpush1.xpose.msra.mxu0 0.0
    %2015 = vmatprep.subr.mxu0 0.0
    %2016 = vmatpush1.xpose.msra.mxu0 0.0
    %2017 = vmatprep.subr.mxu0 0.0
    %2018 = vmatpush1.xpose.msra.mxu0 0.0
    %2019 = vmatprep.subr.mxu0 0.0
    %2020 = vmatpush1.xpose.msra.mxu0 0.0
    %2021 = vmatprep.subr.mxu0 0.0
    %2022 = vmatpush1.xpose.msra.mxu0 0.0
    %2023 = vmatprep.subr.mxu0 0.0
    %2024 = vmatpush1.xpose.msra.mxu0 0.0
    %2025 = vmatprep.subr.mxu0 0.0
    %2026 = vmatpush1.xpose.msra.mxu0 0.0
    %2027 = vmatprep.subr.mxu0 0.0
    %2028 = vmatpush1.xpose.msra.mxu0 0.0
    %2029 = vmatprep.subr.mxu0 0.0
    %2030 = vmatpush1.xpose.msra.mxu0 0.0
    %2031 = vmatprep.subr.mxu0 0.0
    %2032 = vmatpush1.xpose.msra.mxu0 %v1999
    %2033 = vmatprep.subr.mxu0 0.0
    %2034 = vmatpush2.xpose.msra.mxu0 0.0
    %2035 = vmatprep.subr.mxu0 0.0
    %2036 = vmatpush2.xpose.msra.mxu0 0.0
    %2037 = vmatprep.subr.mxu0 0.0
    %2038 = vmatpush2.xpose.msra.mxu0 0.0
    %2039 = vmatprep.subr.mxu0 0.0
    %2040 = vmatpush2.xpose.msra.mxu0 0.0
    %2041 = vmatprep.subr.mxu0 0.0
    %2042 = vmatpush2.xpose.msra.mxu0 0.0
    %2043 = vmatprep.subr.mxu0 0.0
    %2044 = vmatpush2.xpose.msra.mxu0 0.0
    %2045 = vmatprep.subr.mxu0 0.0
    %2046 = vmatpush2.xpose.msra.mxu0 0.0
    %2047 = vmatprep.subr.mxu0 0.0
    %2048 = vmatpush2.xpose.msra.mxu0 0.0
    %2049 = vmatprep.subr.mxu0 0.0
    %2050 = vmatpush2.xpose.msra.mxu0 0.0
    %2051 = vmatprep.subr.mxu0 0.0
    %2052 = vmatpush2.xpose.msra.mxu0 0.0
    %2053 = vmatprep.subr.mxu0 0.0
    %2054 = vmatpush2.xpose.msra.mxu0 0.0
    %2055 = vmatprep.subr.mxu0 0.0
    %2056 = vmatpush2.xpose.msra.mxu0 0.0
    %2057 = vmatprep.subr.mxu0 0.0
    %2058 = vmatpush2.xpose.msra.mxu0 0.0
    %2059 = vmatprep.subr.mxu0 0.0
    %2060 = vmatpush2.xpose.msra.mxu0 0.0
    %2061 = vmatprep.subr.mxu0 0.0
    %2062 = vmatpush2.xpose.msra.mxu0 0.0
    %2063 = vmatprep.subr.mxu0 0.0
    %2064 = vmatpush2.xpose.msra.mxu0 0.0
    %2065 = vmatprep.mubr.f32.mxu0 0.0
    %2066 = vmatmul.mubr.f32.gmra.mxu0 %v1997
    %v2067 = vpop.f32.mrf.mxu0
    %v2068 = vadd.f32 0.0, %v2067
    %v2069 = vpop.f32.mrf.mxu0
    %2070 = vdwg.mxu0
    %v2071 = vsel %vm725, %v1834, -inf
    %2072 = vmax.xlane.f32.xlu0 %v2071
    %v2073 = vpop.xlane.xlu0 %2072
    %v2074 = vsel %vm725, %v1912, -inf
    %2075 = vmax.xlane.f32.xlu0 %v2074
    %v2076 = vpop.xlane.xlu0 %2075
    %v2077 = vsel %vm725, %v1990, -inf
    %2078 = vmax.xlane.f32.xlu0 %v2077
    %v2079 = vpop.xlane.xlu0 %2078
    %v2080 = vsel %vm725, %v2068, -inf
    %2081 = vmax.xlane.f32.xlu0 %v2080
    %v2082 = vpop.xlane.xlu0 %2081
    %v2083 = vsub.f32 %v1834, %v2073
    %v2084 = vsub.f32 %v1912, %v2076
    %v2085 = vsub.f32 %v1990, %v2079
    %v2086 = vsub.f32 %v2068, %v2082
    %v2087 = vmul.f32 %v2083, 1.442695
    %v2088 = vpow.pop %v2087
    %v2089 = vmul.f32 %v2084, 1.442695
    %v2090 = vpow.pop %v2089
    %v2091 = vmul.f32 %v2085, 1.442695
    %v2092 = vpow.pop %v2091
    %v2093 = vmul.f32 %v2086, 1.442695
    %v2094 = vpow.pop %v2093
    %v2095 = vsel %vm725, %v2088, 0.0
    %2096 = vadd.xlane.f32.xlu0 %v2095
    %v2097 = vpop.xlane.xlu0 %2096
    %v2098 = vsel %vm725, %v2090, 0.0
    %2099 = vadd.xlane.f32.xlu0 %v2098
    %v2100 = vpop.xlane.xlu0 %2099
    %v2101 = vsel %vm725, %v2092, 0.0
    %2102 = vadd.xlane.f32.xlu0 %v2101
    %v2103 = vpop.xlane.xlu0 %2102
    %v2104 = vsel %vm725, %v2094, 0.0
    %2105 = vadd.xlane.f32.xlu0 %v2104
    %v2106 = vpop.xlane.xlu0 %2105
    %v2107 = vrcp.pop %v2097
    %v2108 = vmul.f32 1.0, %v2107
    %v2109 = vrcp.pop %v2100
    %v2110 = vmul.f32 1.0, %v2109
    %v2111 = vrcp.pop %v2103
    %v2112 = vmul.f32 1.0, %v2111
    %v2113 = vrcp.pop %v2106
    %v2114 = vmul.f32 1.0, %v2113
    %2115 = vrot.lane.b32.xlu0 %v400, 64
    %v2116 = vpop.permute.xlu0 %2115
    %v2119 = vsel %vm725, %v2088, 0
    %2121 = vmatprep.subr.mxu0 0.0
    %2122 = vmatpush1.msra.mxu0 0.0
    %2123 = vmatprep.subr.mxu0 0.0
    %2124 = vmatpush1.msra.mxu0 0.0
    %2125 = vmatprep.subr.mxu0 0.0
    %2126 = vmatpush1.msra.mxu0 0.0
    %2127 = vmatprep.subr.mxu0 0.0
    %2128 = vmatpush1.msra.mxu0 0.0
    %2129 = vmatprep.subr.mxu0 0.0
    %2130 = vmatpush1.msra.mxu0 0.0
    %2131 = vmatprep.subr.mxu0 0.0
    %2132 = vmatpush1.msra.mxu0 0.0
    %2133 = vmatprep.subr.mxu0 0.0
    %2134 = vmatpush1.msra.mxu0 0.0
    %2135 = vmatprep.subr.mxu0 0.0
    %2136 = vmatpush1.msra.mxu0 0.0
    %2137 = vmatprep.subr.mxu0 0.0
    %2138 = vmatpush1.msra.mxu0 0.0
    %2139 = vmatprep.subr.mxu0 0.0
    %2140 = vmatpush1.msra.mxu0 0.0
    %2141 = vmatprep.subr.mxu0 0.0
    %2142 = vmatpush1.msra.mxu0 0.0
    %2143 = vmatprep.subr.mxu0 0.0
    %2144 = vmatpush1.msra.mxu0 0.0
    %2145 = vmatprep.subr.mxu0 0.0
    %2146 = vmatpush1.msra.mxu0 0.0
    %2147 = vmatprep.subr.mxu0 0.0
    %2148 = vmatpush1.msra.mxu0 0.0
    %2149 = vmatprep.subr.mxu0 0.0
    %2150 = vmatpush1.msra.mxu0 0.0
    %2151 = vmatprep.subr.mxu0 0.0
    %2152 = vmatpush1.msra.mxu0 %v2116
    %2153 = vmatprep.subr.mxu0 0.0
    %2154 = vmatpush2.msra.mxu0 0.0
    %2155 = vmatprep.subr.mxu0 0.0
    %2156 = vmatpush2.msra.mxu0 0.0
    %2157 = vmatprep.subr.mxu0 0.0
    %2158 = vmatpush2.msra.mxu0 0.0
    %2159 = vmatprep.subr.mxu0 0.0
    %2160 = vmatpush2.msra.mxu0 0.0
    %2161 = vmatprep.subr.mxu0 0.0
    %2162 = vmatpush2.msra.mxu0 0.0
    %2163 = vmatprep.subr.mxu0 0.0
    %2164 = vmatpush2.msra.mxu0 0.0
    %2165 = vmatprep.subr.mxu0 0.0
    %2166 = vmatpush2.msra.mxu0 0.0
    %2167 = vmatprep.subr.mxu0 0.0
    %2168 = vmatpush2.msra.mxu0 0.0
    %2169 = vmatprep.subr.mxu0 0.0
    %2170 = vmatpush2.msra.mxu0 0.0
    %2171 = vmatprep.subr.mxu0 0.0
    %2172 = vmatpush2.msra.mxu0 0.0
    %2173 = vmatprep.subr.mxu0 0.0
    %2174 = vmatpush2.msra.mxu0 0.0
    %2175 = vmatprep.subr.mxu0 0.0
    %2176 = vmatpush2.msra.mxu0 0.0
    %2177 = vmatprep.subr.mxu0 0.0
    %2178 = vmatpush2.msra.mxu0 0.0
    %2179 = vmatprep.subr.mxu0 0.0
    %2180 = vmatpush2.msra.mxu0 0.0
    %2181 = vmatprep.subr.mxu0 0.0
    %2182 = vmatpush2.msra.mxu0 0.0
    %2183 = vmatprep.subr.mxu0 0.0
    %2184 = vmatpush2.msra.mxu0 0.0
    %2185 = vmatprep.mubr.f32.mxu0 0.0
    %2186 = vmatmul.mubr.f32.gmra.mxu0 %v2119
    %v2187 = vpop.f32.mrf.mxu0
    %v2188 = vadd.f32 0.0, %v2187
    %v2189 = vpop.f32.mrf.mxu0
    %2190 = vdwg.mxu0
    %2191 = vrot.lane.b32.xlu0 %v406, 64
    %v2192 = vpop.permute.xlu0 %2191
    %v2195 = vsel %vm725, %v2090, 0
    %2197 = vmatprep.subr.mxu0 0.0
    %2198 = vmatpush1.msra.mxu0 0.0
    %2199 = vmatprep.subr.mxu0 0.0
    %2200 = vmatpush1.msra.mxu0 0.0
    %2201 = vmatprep.subr.mxu0 0.0
    %2202 = vmatpush1.msra.mxu0 0.0
    %2203 = vmatprep.subr.mxu0 0.0
    %2204 = vmatpush1.msra.mxu0 0.0
    %2205 = vmatprep.subr.mxu0 0.0
    %2206 = vmatpush1.msra.mxu0 0.0
    %2207 = vmatprep.subr.mxu0 0.0
    %2208 = vmatpush1.msra.mxu0 0.0
    %2209 = vmatprep.subr.mxu0 0.0
    %2210 = vmatpush1.msra.mxu0 0.0
    %2211 = vmatprep.subr.mxu0 0.0
    %2212 = vmatpush1.msra.mxu0 0.0
    %2213 = vmatprep.subr.mxu0 0.0
    %2214 = vmatpush1.msra.mxu0 0.0
    %2215 = vmatprep.subr.mxu0 0.0
    %2216 = vmatpush1.msra.mxu0 0.0
    %2217 = vmatprep.subr.mxu0 0.0
    %2218 = vmatpush1.msra.mxu0 0.0
    %2219 = vmatprep.subr.mxu0 0.0
    %2220 = vmatpush1.msra.mxu0 0.0
    %2221 = vmatprep.subr.mxu0 0.0
    %2222 = vmatpush1.msra.mxu0 0.0
    %2223 = vmatprep.subr.mxu0 0.0
    %2224 = vmatpush1.msra.mxu0 0.0
    %2225 = vmatprep.subr.mxu0 0.0
    %2226 = vmatpush1.msra.mxu0 0.0
    %2227 = vmatprep.subr.mxu0 0.0
    %2228 = vmatpush1.msra.mxu0 %v2192
    %2229 = vmatprep.subr.mxu0 0.0
    %2230 = vmatpush2.msra.mxu0 0.0
    %2231 = vmatprep.subr.mxu0 0.0
    %2232 = vmatpush2.msra.mxu0 0.0
    %2233 = vmatprep.subr.mxu0 0.0
    %2234 = vmatpush2.msra.mxu0 0.0
    %2235 = vmatprep.subr.mxu0 0.0
    %2236 = vmatpush2.msra.mxu0 0.0
    %2237 = vmatprep.subr.mxu0 0.0
    %2238 = vmatpush2.msra.mxu0 0.0
    %2239 = vmatprep.subr.mxu0 0.0
    %2240 = vmatpush2.msra.mxu0 0.0
    %2241 = vmatprep.subr.mxu0 0.0
    %2242 = vmatpush2.msra.mxu0 0.0
    %2243 = vmatprep.subr.mxu0 0.0
    %2244 = vmatpush2.msra.mxu0 0.0
    %2245 = vmatprep.subr.mxu0 0.0
    %2246 = vmatpush2.msra.mxu0 0.0
    %2247 = vmatprep.subr.mxu0 0.0
    %2248 = vmatpush2.msra.mxu0 0.0
    %2249 = vmatprep.subr.mxu0 0.0
    %2250 = vmatpush2.msra.mxu0 0.0
    %2251 = vmatprep.subr.mxu0 0.0
    %2252 = vmatpush2.msra.mxu0 0.0
    %2253 = vmatprep.subr.mxu0 0.0
    %2254 = vmatpush2.msra.mxu0 0.0
    %2255 = vmatprep.subr.mxu0 0.0
    %2256 = vmatpush2.msra.mxu0 0.0
    %2257 = vmatprep.subr.mxu0 0.0
    %2258 = vmatpush2.msra.mxu0 0.0
    %2259 = vmatprep.subr.mxu0 0.0
    %2260 = vmatpush2.msra.mxu0 0.0
    %2261 = vmatprep.mubr.f32.mxu0 0.0
    %2262 = vmatmul.mubr.f32.gmra.mxu0 %v2195
    %v2263 = vpop.f32.mrf.mxu0
    %v2264 = vadd.f32 0.0, %v2263
    %v2265 = vpop.f32.mrf.mxu0
    %2266 = vdwg.mxu0
    %2267 = vrot.lane.b32.xlu0 %v412, 64
    %v2268 = vpop.permute.xlu0 %2267
    %v2271 = vsel %vm725, %v2092, 0
    %2273 = vmatprep.subr.mxu0 0.0
    %2274 = vmatpush1.msra.mxu0 0.0
    %2275 = vmatprep.subr.mxu0 0.0
    %2276 = vmatpush1.msra.mxu0 0.0
    %2277 = vmatprep.subr.mxu0 0.0
    %2278 = vmatpush1.msra.mxu0 0.0
    %2279 = vmatprep.subr.mxu0 0.0
    %2280 = vmatpush1.msra.mxu0 0.0
    %2281 = vmatprep.subr.mxu0 0.0
    %2282 = vmatpush1.msra.mxu0 0.0
    %2283 = vmatprep.subr.mxu0 0.0
    %2284 = vmatpush1.msra.mxu0 0.0
    %2285 = vmatprep.subr.mxu0 0.0
    %2286 = vmatpush1.msra.mxu0 0.0
    %2287 = vmatprep.subr.mxu0 0.0
    %2288 = vmatpush1.msra.mxu0 0.0
    %2289 = vmatprep.subr.mxu0 0.0
    %2290 = vmatpush1.msra.mxu0 0.0
    %2291 = vmatprep.subr.mxu0 0.0
    %2292 = vmatpush1.msra.mxu0 0.0
    %2293 = vmatprep.subr.mxu0 0.0
    %2294 = vmatpush1.msra.mxu0 0.0
    %2295 = vmatprep.subr.mxu0 0.0
    %2296 = vmatpush1.msra.mxu0 0.0
    %2297 = vmatprep.subr.mxu0 0.0
    %2298 = vmatpush1.msra.mxu0 0.0
    %2299 = vmatprep.subr.mxu0 0.0
    %2300 = vmatpush1.msra.mxu0 0.0
    %2301 = vmatprep.subr.mxu0 0.0
    %2302 = vmatpush1.msra.mxu0 0.0
    %2303 = vmatprep.subr.mxu0 0.0
    %2304 = vmatpush1.msra.mxu0 %v2268
    %2305 = vmatprep.subr.mxu0 0.0
    %2306 = vmatpush2.msra.mxu0 0.0
    %2307 = vmatprep.subr.mxu0 0.0
    %2308 = vmatpush2.msra.mxu0 0.0
    %2309 = vmatprep.subr.mxu0 0.0
    %2310 = vmatpush2.msra.mxu0 0.0
    %2311 = vmatprep.subr.mxu0 0.0
    %2312 = vmatpush2.msra.mxu0 0.0
    %2313 = vmatprep.subr.mxu0 0.0
    %2314 = vmatpush2.msra.mxu0 0.0
    %2315 = vmatprep.subr.mxu0 0.0
    %2316 = vmatpush2.msra.mxu0 0.0
    %2317 = vmatprep.subr.mxu0 0.0
    %2318 = vmatpush2.msra.mxu0 0.0
    %2319 = vmatprep.subr.mxu0 0.0
    %2320 = vmatpush2.msra.mxu0 0.0
    %2321 = vmatprep.subr.mxu0 0.0
    %2322 = vmatpush2.msra.mxu0 0.0
    %2323 = vmatprep.subr.mxu0 0.0
    %2324 = vmatpush2.msra.mxu0 0.0
    %2325 = vmatprep.subr.mxu0 0.0
    %2326 = vmatpush2.msra.mxu0 0.0
    %2327 = vmatprep.subr.mxu0 0.0
    %2328 = vmatpush2.msra.mxu0 0.0
    %2329 = vmatprep.subr.mxu0 0.0
    %2330 = vmatpush2.msra.mxu0 0.0
    %2331 = vmatprep.subr.mxu0 0.0
    %2332 = vmatpush2.msra.mxu0 0.0
    %2333 = vmatprep.subr.mxu0 0.0
    %2334 = vmatpush2.msra.mxu0 0.0
    %2335 = vmatprep.subr.mxu0 0.0
    %2336 = vmatpush2.msra.mxu0 0.0
    %2337 = vmatprep.mubr.f32.mxu0 0.0
    %2338 = vmatmul.mubr.f32.gmra.mxu0 %v2271
    %v2339 = vpop.f32.mrf.mxu0
    %v2340 = vadd.f32 0.0, %v2339
    %v2341 = vpop.f32.mrf.mxu0
    %2342 = vdwg.mxu0
    %2343 = vrot.lane.b32.xlu0 %v418, 64
    %v2344 = vpop.permute.xlu0 %2343
    %v2347 = vsel %vm725, %v2094, 0
    %2349 = vmatprep.subr.mxu0 0.0
    %2350 = vmatpush1.msra.mxu0 0.0
    %2351 = vmatprep.subr.mxu0 0.0
    %2352 = vmatpush1.msra.mxu0 0.0
    %2353 = vmatprep.subr.mxu0 0.0
    %2354 = vmatpush1.msra.mxu0 0.0
    %2355 = vmatprep.subr.mxu0 0.0
    %2356 = vmatpush1.msra.mxu0 0.0
    %2357 = vmatprep.subr.mxu0 0.0
    %2358 = vmatpush1.msra.mxu0 0.0
    %2359 = vmatprep.subr.mxu0 0.0
    %2360 = vmatpush1.msra.mxu0 0.0
    %2361 = vmatprep.subr.mxu0 0.0
    %2362 = vmatpush1.msra.mxu0 0.0
    %2363 = vmatprep.subr.mxu0 0.0
    %2364 = vmatpush1.msra.mxu0 0.0
    %2365 = vmatprep.subr.mxu0 0.0
    %2366 = vmatpush1.msra.mxu0 0.0
    %2367 = vmatprep.subr.mxu0 0.0
    %2368 = vmatpush1.msra.mxu0 0.0
    %2369 = vmatprep.subr.mxu0 0.0
    %2370 = vmatpush1.msra.mxu0 0.0
    %2371 = vmatprep.subr.mxu0 0.0
    %2372 = vmatpush1.msra.mxu0 0.0
    %2373 = vmatprep.subr.mxu0 0.0
    %2374 = vmatpush1.msra.mxu0 0.0
    %2375 = vmatprep.subr.mxu0 0.0
    %2376 = vmatpush1.msra.mxu0 0.0
    %2377 = vmatprep.subr.mxu0 0.0
    %2378 = vmatpush1.msra.mxu0 0.0
    %2379 = vmatprep.subr.mxu0 0.0
    %2380 = vmatpush1.msra.mxu0 %v2344
    %2381 = vmatprep.subr.mxu0 0.0
    %2382 = vmatpush2.msra.mxu0 0.0
    %2383 = vmatprep.subr.mxu0 0.0
    %2384 = vmatpush2.msra.mxu0 0.0
    %2385 = vmatprep.subr.mxu0 0.0
    %2386 = vmatpush2.msra.mxu0 0.0
    %2387 = vmatprep.subr.mxu0 0.0
    %2388 = vmatpush2.msra.mxu0 0.0
    %2389 = vmatprep.subr.mxu0 0.0
    %2390 = vmatpush2.msra.mxu0 0.0
    %2391 = vmatprep.subr.mxu0 0.0
    %2392 = vmatpush2.msra.mxu0 0.0
    %2393 = vmatprep.subr.mxu0 0.0
    %2394 = vmatpush2.msra.mxu0 0.0
    %2395 = vmatprep.subr.mxu0 0.0
    %2396 = vmatpush2.msra.mxu0 0.0
    %2397 = vmatprep.subr.mxu0 0.0
    %2398 = vmatpush2.msra.mxu0 0.0
    %2399 = vmatprep.subr.mxu0 0.0
    %2400 = vmatpush2.msra.mxu0 0.0
    %2401 = vmatprep.subr.mxu0 0.0
    %2402 = vmatpush2.msra.mxu0 0.0
    %2403 = vmatprep.subr.mxu0 0.0
    %2404 = vmatpush2.msra.mxu0 0.0
    %2405 = vmatprep.subr.mxu0 0.0
    %2406 = vmatpush2.msra.mxu0 0.0
    %2407 = vmatprep.subr.mxu0 0.0
    %2408 = vmatpush2.msra.mxu0 0.0
    %2409 = vmatprep.subr.mxu0 0.0
    %2410 = vmatpush2.msra.mxu0 0.0
    %2411 = vmatprep.subr.mxu0 0.0
    %2412 = vmatpush2.msra.mxu0 0.0
    %2413 = vmatprep.mubr.f32.mxu0 0.0
    %2414 = vmatmul.mubr.f32.gmra.mxu0 %v2347
    %v2415 = vpop.f32.mrf.mxu0
    %v2416 = vadd.f32 0.0, %v2415
    %v2417 = vpop.f32.mrf.mxu0
    %2418 = vdwg.mxu0
    %v2419 = vmul.f32 %v2188, %v2108
    %v2420 = vmul.f32 %v2264, %v2110
    %v2421 = vmul.f32 %v2340, %v2112
    %v2422 = vmul.f32 %v2416, %v2114
    %2427 = vrot.lane.b32.xlu0 %v2419, 64
    %v2428 = vpop.permute.xlu0 %2427
    %2429 = vrot.lane.b32.xlu0 %v2420, 64
    %v2430 = vpop.permute.xlu0 %2429
    %2431 = vrot.lane.b32.xlu0 %v2421, 64
    %v2432 = vpop.permute.xlu0 %2431
    %2433 = vrot.lane.b32.xlu0 %v2422, 64
    %v2434 = vpop.permute.xlu0 %2433
    %vm2439 = vcmask 785920
    %2440 = vst.msk [vmem:[#allocation2] sm:$0xff] %vm2439, %v2428
    %2441 = vst.msk [vmem:[#allocation2 + $0x8] sm:$0xff] %vm2439, %v2430
    %2442 = vst.msk [vmem:[#allocation2 + $0x10] sm:$0xff] %vm2439, %v2432
    %2443 = vst.msk [vmem:[#allocation2 + $0x18] sm:$0xff] %vm2439, %v2434
    %2444 = vrot.lane.b32.xlu0 %v281, 32
    %v2445 = vpop.permute.xlu0 %2444
    %2446 = vrot.lane.b32.xlu0 %v398, 32
    %v2447 = vpop.permute.xlu0 %2446
    %v2448 = vsel %vm420, %v2445, 0
    %v2450 = vsel %vm420, %v2447, 0
    %2452 = vmatprep.subr.mxu0 0.0
    %2453 = vmatpush1.xpose.msra.mxu0 0.0
    %2454 = vmatprep.subr.mxu0 0.0
    %2455 = vmatpush1.xpose.msra.mxu0 0.0
    %2456 = vmatprep.subr.mxu0 0.0
    %2457 = vmatpush1.xpose.msra.mxu0 0.0
    %2458 = vmatprep.subr.mxu0 0.0
    %2459 = vmatpush1.xpose.msra.mxu0 0.0
    %2460 = vmatprep.subr.mxu0 0.0
    %2461 = vmatpush1.xpose.msra.mxu0 0.0
    %2462 = vmatprep.subr.mxu0 0.0
    %2463 = vmatpush1.xpose.msra.mxu0 0.0
    %2464 = vmatprep.subr.mxu0 0.0
    %2465 = vmatpush1.xpose.msra.mxu0 0.0
    %2466 = vmatprep.subr.mxu0 0.0
    %2467 = vmatpush1.xpose.msra.mxu0 0.0
    %2468 = vmatprep.subr.mxu0 0.0
    %2469 = vmatpush1.xpose.msra.mxu0 0.0
    %2470 = vmatprep.subr.mxu0 0.0
    %2471 = vmatpush1.xpose.msra.mxu0 0.0
    %2472 = vmatprep.subr.mxu0 0.0
    %2473 = vmatpush1.xpose.msra.mxu0 0.0
    %2474 = vmatprep.subr.mxu0 0.0
    %2475 = vmatpush1.xpose.msra.mxu0 0.0
    %2476 = vmatprep.subr.mxu0 0.0
    %2477 = vmatpush1.xpose.msra.mxu0 0.0
    %2478 = vmatprep.subr.mxu0 0.0
    %2479 = vmatpush1.xpose.msra.mxu0 0.0
    %2480 = vmatprep.subr.mxu0 0.0
    %2481 = vmatpush1.xpose.msra.mxu0 0.0
    %2482 = vmatprep.subr.mxu0 0.0
    %2483 = vmatpush1.xpose.msra.mxu0 %v2450
    %2484 = vmatprep.subr.mxu0 0.0
    %2485 = vmatpush2.xpose.msra.mxu0 0.0
    %2486 = vmatprep.subr.mxu0 0.0
    %2487 = vmatpush2.xpose.msra.mxu0 0.0
    %2488 = vmatprep.subr.mxu0 0.0
    %2489 = vmatpush2.xpose.msra.mxu0 0.0
    %2490 = vmatprep.subr.mxu0 0.0
    %2491 = vmatpush2.xpose.msra.mxu0 0.0
    %2492 = vmatprep.subr.mxu0 0.0
    %2493 = vmatpush2.xpose.msra.mxu0 0.0
    %2494 = vmatprep.subr.mxu0 0.0
    %2495 = vmatpush2.xpose.msra.mxu0 0.0
    %2496 = vmatprep.subr.mxu0 0.0
    %2497 = vmatpush2.xpose.msra.mxu0 0.0
    %2498 = vmatprep.subr.mxu0 0.0
    %2499 = vmatpush2.xpose.msra.mxu0 0.0
    %2500 = vmatprep.subr.mxu0 0.0
    %2501 = vmatpush2.xpose.msra.mxu0 0.0
    %2502 = vmatprep.subr.mxu0 0.0
    %2503 = vmatpush2.xpose.msra.mxu0 0.0
    %2504 = vmatprep.subr.mxu0 0.0
    %2505 = vmatpush2.xpose.msra.mxu0 0.0
    %2506 = vmatprep.subr.mxu0 0.0
    %2507 = vmatpush2.xpose.msra.mxu0 0.0
    %2508 = vmatprep.subr.mxu0 0.0
    %2509 = vmatpush2.xpose.msra.mxu0 0.0
    %2510 = vmatprep.subr.mxu0 0.0
    %2511 = vmatpush2.xpose.msra.mxu0 0.0
    %2512 = vmatprep.subr.mxu0 0.0
    %2513 = vmatpush2.xpose.msra.mxu0 0.0
    %2514 = vmatprep.subr.mxu0 0.0
    %2515 = vmatpush2.xpose.msra.mxu0 0.0
    %2516 = vmatprep.mubr.f32.mxu0 0.0
    %2517 = vmatmul.mubr.f32.gmra.mxu0 %v2448
    %v2518 = vpop.f32.mrf.mxu0
    %v2519 = vadd.f32 0.0, %v2518
    %v2520 = vpop.f32.mrf.mxu0
    %2521 = vdwg.mxu0
    %2522 = vrot.lane.b32.xlu0 %v286, 32
    %v2523 = vpop.permute.xlu0 %2522
    %2524 = vrot.lane.b32.xlu0 %v404, 32
    %v2525 = vpop.permute.xlu0 %2524
    %v2526 = vsel %vm420, %v2523, 0
    %v2528 = vsel %vm420, %v2525, 0
    %2530 = vmatprep.subr.mxu0 0.0
    %2531 = vmatpush1.xpose.msra.mxu0 0.0
    %2532 = vmatprep.subr.mxu0 0.0
    %2533 = vmatpush1.xpose.msra.mxu0 0.0
    %2534 = vmatprep.subr.mxu0 0.0
    %2535 = vmatpush1.xpose.msra.mxu0 0.0
    %2536 = vmatprep.subr.mxu0 0.0
    %2537 = vmatpush1.xpose.msra.mxu0 0.0
    %2538 = vmatprep.subr.mxu0 0.0
    %2539 = vmatpush1.xpose.msra.mxu0 0.0
    %2540 = vmatprep.subr.mxu0 0.0
    %2541 = vmatpush1.xpose.msra.mxu0 0.0
    %2542 = vmatprep.subr.mxu0 0.0
    %2543 = vmatpush1.xpose.msra.mxu0 0.0
    %2544 = vmatprep.subr.mxu0 0.0
    %2545 = vmatpush1.xpose.msra.mxu0 0.0
    %2546 = vmatprep.subr.mxu0 0.0
    %2547 = vmatpush1.xpose.msra.mxu0 0.0
    %2548 = vmatprep.subr.mxu0 0.0
    %2549 = vmatpush1.xpose.msra.mxu0 0.0
    %2550 = vmatprep.subr.mxu0 0.0
    %2551 = vmatpush1.xpose.msra.mxu0 0.0
    %2552 = vmatprep.subr.mxu0 0.0
    %2553 = vmatpush1.xpose.msra.mxu0 0.0
    %2554 = vmatprep.subr.mxu0 0.0
    %2555 = vmatpush1.xpose.msra.mxu0 0.0
    %2556 = vmatprep.subr.mxu0 0.0
    %2557 = vmatpush1.xpose.msra.mxu0 0.0
    %2558 = vmatprep.subr.mxu0 0.0
    %2559 = vmatpush1.xpose.msra.mxu0 0.0
    %2560 = vmatprep.subr.mxu0 0.0
    %2561 = vmatpush1.xpose.msra.mxu0 %v2528
    %2562 = vmatprep.subr.mxu0 0.0
    %2563 = vmatpush2.xpose.msra.mxu0 0.0
    %2564 = vmatprep.subr.mxu0 0.0
    %2565 = vmatpush2.xpose.msra.mxu0 0.0
    %2566 = vmatprep.subr.mxu0 0.0
    %2567 = vmatpush2.xpose.msra.mxu0 0.0
    %2568 = vmatprep.subr.mxu0 0.0
    %2569 = vmatpush2.xpose.msra.mxu0 0.0
    %2570 = vmatprep.subr.mxu0 0.0
    %2571 = vmatpush2.xpose.msra.mxu0 0.0
    %2572 = vmatprep.subr.mxu0 0.0
    %2573 = vmatpush2.xpose.msra.mxu0 0.0
    %2574 = vmatprep.subr.mxu0 0.0
    %2575 = vmatpush2.xpose.msra.mxu0 0.0
    %2576 = vmatprep.subr.mxu0 0.0
    %2577 = vmatpush2.xpose.msra.mxu0 0.0
    %2578 = vmatprep.subr.mxu0 0.0
    %2579 = vmatpush2.xpose.msra.mxu0 0.0
    %2580 = vmatprep.subr.mxu0 0.0
    %2581 = vmatpush2.xpose.msra.mxu0 0.0
    %2582 = vmatprep.subr.mxu0 0.0
    %2583 = vmatpush2.xpose.msra.mxu0 0.0
    %2584 = vmatprep.subr.mxu0 0.0
    %2585 = vmatpush2.xpose.msra.mxu0 0.0
    %2586 = vmatprep.subr.mxu0 0.0
    %2587 = vmatpush2.xpose.msra.mxu0 0.0
    %2588 = vmatprep.subr.mxu0 0.0
    %2589 = vmatpush2.xpose.msra.mxu0 0.0
    %2590 = vmatprep.subr.mxu0 0.0
    %2591 = vmatpush2.xpose.msra.mxu0 0.0
    %2592 = vmatprep.subr.mxu0 0.0
    %2593 = vmatpush2.xpose.msra.mxu0 0.0
    %2594 = vmatprep.mubr.f32.mxu0 0.0
    %2595 = vmatmul.mubr.f32.gmra.mxu0 %v2526
    %v2596 = vpop.f32.mrf.mxu0
    %v2597 = vadd.f32 0.0, %v2596
    %v2598 = vpop.f32.mrf.mxu0
    %2599 = vdwg.mxu0
    %2600 = vrot.lane.b32.xlu0 %v291, 32
    %v2601 = vpop.permute.xlu0 %2600
    %2602 = vrot.lane.b32.xlu0 %v410, 32
    %v2603 = vpop.permute.xlu0 %2602
    %v2604 = vsel %vm420, %v2601, 0
    %v2606 = vsel %vm420, %v2603, 0
    %2608 = vmatprep.subr.mxu0 0.0
    %2609 = vmatpush1.xpose.msra.mxu0 0.0
    %2610 = vmatprep.subr.mxu0 0.0
    %2611 = vmatpush1.xpose.msra.mxu0 0.0
    %2612 = vmatprep.subr.mxu0 0.0
    %2613 = vmatpush1.xpose.msra.mxu0 0.0
    %2614 = vmatprep.subr.mxu0 0.0
    %2615 = vmatpush1.xpose.msra.mxu0 0.0
    %2616 = vmatprep.subr.mxu0 0.0
    %2617 = vmatpush1.xpose.msra.mxu0 0.0
    %2618 = vmatprep.subr.mxu0 0.0
    %2619 = vmatpush1.xpose.msra.mxu0 0.0
    %2620 = vmatprep.subr.mxu0 0.0
    %2621 = vmatpush1.xpose.msra.mxu0 0.0
    %2622 = vmatprep.subr.mxu0 0.0
    %2623 = vmatpush1.xpose.msra.mxu0 0.0
    %2624 = vmatprep.subr.mxu0 0.0
    %2625 = vmatpush1.xpose.msra.mxu0 0.0
    %2626 = vmatprep.subr.mxu0 0.0
    %2627 = vmatpush1.xpose.msra.mxu0 0.0
    %2628 = vmatprep.subr.mxu0 0.0
    %2629 = vmatpush1.xpose.msra.mxu0 0.0
    %2630 = vmatprep.subr.mxu0 0.0
    %2631 = vmatpush1.xpose.msra.mxu0 0.0
    %2632 = vmatprep.subr.mxu0 0.0
    %2633 = vmatpush1.xpose.msra.mxu0 0.0
    %2634 = vmatprep.subr.mxu0 0.0
    %2635 = vmatpush1.xpose.msra.mxu0 0.0
    %2636 = vmatprep.subr.mxu0 0.0
    %2637 = vmatpush1.xpose.msra.mxu0 0.0
    %2638 = vmatprep.subr.mxu0 0.0
    %2639 = vmatpush1.xpose.msra.mxu0 %v2606
    %2640 = vmatprep.subr.mxu0 0.0
    %2641 = vmatpush2.xpose.msra.mxu0 0.0
    %2642 = vmatprep.subr.mxu0 0.0
    %2643 = vmatpush2.xpose.msra.mxu0 0.0
    %2644 = vmatprep.subr.mxu0 0.0
    %2645 = vmatpush2.xpose.msra.mxu0 0.0
    %2646 = vmatprep.subr.mxu0 0.0
    %2647 = vmatpush2.xpose.msra.mxu0 0.0
    %2648 = vmatprep.subr.mxu0 0.0
    %2649 = vmatpush2.xpose.msra.mxu0 0.0
    %2650 = vmatprep.subr.mxu0 0.0
    %2651 = vmatpush2.xpose.msra.mxu0 0.0
    %2652 = vmatprep.subr.mxu0 0.0
    %2653 = vmatpush2.xpose.msra.mxu0 0.0
    %2654 = vmatprep.subr.mxu0 0.0
    %2655 = vmatpush2.xpose.msra.mxu0 0.0
    %2656 = vmatprep.subr.mxu0 0.0
    %2657 = vmatpush2.xpose.msra.mxu0 0.0
    %2658 = vmatprep.subr.mxu0 0.0
    %2659 = vmatpush2.xpose.msra.mxu0 0.0
    %2660 = vmatprep.subr.mxu0 0.0
    %2661 = vmatpush2.xpose.msra.mxu0 0.0
    %2662 = vmatprep.subr.mxu0 0.0
    %2663 = vmatpush2.xpose.msra.mxu0 0.0
    %2664 = vmatprep.subr.mxu0 0.0
    %2665 = vmatpush2.xpose.msra.mxu0 0.0
    %2666 = vmatprep.subr.mxu0 0.0
    %2667 = vmatpush2.xpose.msra.mxu0 0.0
    %2668 = vmatprep.subr.mxu0 0.0
    %2669 = vmatpush2.xpose.msra.mxu0 0.0
    %2670 = vmatprep.subr.mxu0 0.0
    %2671 = vmatpush2.xpose.msra.mxu0 0.0
    %2672 = vmatprep.mubr.f32.mxu0 0.0
    %2673 = vmatmul.mubr.f32.gmra.mxu0 %v2604
    %v2674 = vpop.f32.mrf.mxu0
    %v2675 = vadd.f32 0.0, %v2674
    %v2676 = vpop.f32.mrf.mxu0
    %2677 = vdwg.mxu0
    %2678 = vrot.lane.b32.xlu0 %v296, 32
    %v2679 = vpop.permute.xlu0 %2678
    %2680 = vrot.lane.b32.xlu0 %v416, 32
    %v2681 = vpop.permute.xlu0 %2680
    %v2682 = vsel %vm420, %v2679, 0
    %v2684 = vsel %vm420, %v2681, 0
    %2686 = vmatprep.subr.mxu0 0.0
    %2687 = vmatpush1.xpose.msra.mxu0 0.0
    %2688 = vmatprep.subr.mxu0 0.0
    %2689 = vmatpush1.xpose.msra.mxu0 0.0
    %2690 = vmatprep.subr.mxu0 0.0
    %2691 = vmatpush1.xpose.msra.mxu0 0.0
    %2692 = vmatprep.subr.mxu0 0.0
    %2693 = vmatpush1.xpose.msra.mxu0 0.0
    %2694 = vmatprep.subr.mxu0 0.0
    %2695 = vmatpush1.xpose.msra.mxu0 0.0
    %2696 = vmatprep.subr.mxu0 0.0
    %2697 = vmatpush1.xpose.msra.mxu0 0.0
    %2698 = vmatprep.subr.mxu0 0.0
    %2699 = vmatpush1.xpose.msra.mxu0 0.0
    %2700 = vmatprep.subr.mxu0 0.0
    %2701 = vmatpush1.xpose.msra.mxu0 0.0
    %2702 = vmatprep.subr.mxu0 0.0
    %2703 = vmatpush1.xpose.msra.mxu0 0.0
    %2704 = vmatprep.subr.mxu0 0.0
    %2705 = vmatpush1.xpose.msra.mxu0 0.0
    %2706 = vmatprep.subr.mxu0 0.0
    %2707 = vmatpush1.xpose.msra.mxu0 0.0
    %2708 = vmatprep.subr.mxu0 0.0
    %2709 = vmatpush1.xpose.msra.mxu0 0.0
    %2710 = vmatprep.subr.mxu0 0.0
    %2711 = vmatpush1.xpose.msra.mxu0 0.0
    %2712 = vmatprep.subr.mxu0 0.0
    %2713 = vmatpush1.xpose.msra.mxu0 0.0
    %2714 = vmatprep.subr.mxu0 0.0
    %2715 = vmatpush1.xpose.msra.mxu0 0.0
    %2716 = vmatprep.subr.mxu0 0.0
    %2717 = vmatpush1.xpose.msra.mxu0 %v2684
    %2718 = vmatprep.subr.mxu0 0.0
    %2719 = vmatpush2.xpose.msra.mxu0 0.0
    %2720 = vmatprep.subr.mxu0 0.0
    %2721 = vmatpush2.xpose.msra.mxu0 0.0
    %2722 = vmatprep.subr.mxu0 0.0
    %2723 = vmatpush2.xpose.msra.mxu0 0.0
    %2724 = vmatprep.subr.mxu0 0.0
    %2725 = vmatpush2.xpose.msra.mxu0 0.0
    %2726 = vmatprep.subr.mxu0 0.0
    %2727 = vmatpush2.xpose.msra.mxu0 0.0
    %2728 = vmatprep.subr.mxu0 0.0
    %2729 = vmatpush2.xpose.msra.mxu0 0.0
    %2730 = vmatprep.subr.mxu0 0.0
    %2731 = vmatpush2.xpose.msra.mxu0 0.0
    %2732 = vmatprep.subr.mxu0 0.0
    %2733 = vmatpush2.xpose.msra.mxu0 0.0
    %2734 = vmatprep.subr.mxu0 0.0
    %2735 = vmatpush2.xpose.msra.mxu0 0.0
    %2736 = vmatprep.subr.mxu0 0.0
    %2737 = vmatpush2.xpose.msra.mxu0 0.0
    %2738 = vmatprep.subr.mxu0 0.0
    %2739 = vmatpush2.xpose.msra.mxu0 0.0
    %2740 = vmatprep.subr.mxu0 0.0
    %2741 = vmatpush2.xpose.msra.mxu0 0.0
    %2742 = vmatprep.subr.mxu0 0.0
    %2743 = vmatpush2.xpose.msra.mxu0 0.0
    %2744 = vmatprep.subr.mxu0 0.0
    %2745 = vmatpush2.xpose.msra.mxu0 0.0
    %2746 = vmatprep.subr.mxu0 0.0
    %2747 = vmatpush2.xpose.msra.mxu0 0.0
    %2748 = vmatprep.subr.mxu0 0.0
    %2749 = vmatpush2.xpose.msra.mxu0 0.0
    %2750 = vmatprep.mubr.f32.mxu0 0.0
    %2751 = vmatmul.mubr.f32.gmra.mxu0 %v2682
    %v2752 = vpop.f32.mrf.mxu0
    %v2753 = vadd.f32 0.0, %v2752
    %v2754 = vpop.f32.mrf.mxu0
    %2755 = vdwg.mxu0
    %v2756 = vsel %vm725, %v2519, -inf
    %2757 = vmax.xlane.f32.xlu0 %v2756
    %v2758 = vpop.xlane.xlu0 %2757
    %v2759 = vsel %vm725, %v2597, -inf
    %2760 = vmax.xlane.f32.xlu0 %v2759
    %v2761 = vpop.xlane.xlu0 %2760
    %v2762 = vsel %vm725, %v2675, -inf
    %2763 = vmax.xlane.f32.xlu0 %v2762
    %v2764 = vpop.xlane.xlu0 %2763
    %v2765 = vsel %vm725, %v2753, -inf
    %2766 = vmax.xlane.f32.xlu0 %v2765
    %v2767 = vpop.xlane.xlu0 %2766
    %v2768 = vsub.f32 %v2519, %v2758
    %v2769 = vsub.f32 %v2597, %v2761
    %v2770 = vsub.f32 %v2675, %v2764
    %v2771 = vsub.f32 %v2753, %v2767
    %v2772 = vmul.f32 %v2768, 1.442695
    %v2773 = vpow.pop %v2772
    %v2774 = vmul.f32 %v2769, 1.442695
    %v2775 = vpow.pop %v2774
    %v2776 = vmul.f32 %v2770, 1.442695
    %v2777 = vpow.pop %v2776
    %v2778 = vmul.f32 %v2771, 1.442695
    %v2779 = vpow.pop %v2778
    %v2780 = vsel %vm725, %v2773, 0.0
    %2781 = vadd.xlane.f32.xlu0 %v2780
    %v2782 = vpop.xlane.xlu0 %2781
    %v2783 = vsel %vm725, %v2775, 0.0
    %2784 = vadd.xlane.f32.xlu0 %v2783
    %v2785 = vpop.xlane.xlu0 %2784
    %v2786 = vsel %vm725, %v2777, 0.0
    %2787 = vadd.xlane.f32.xlu0 %v2786
    %v2788 = vpop.xlane.xlu0 %2787
    %v2789 = vsel %vm725, %v2779, 0.0
    %2790 = vadd.xlane.f32.xlu0 %v2789
    %v2791 = vpop.xlane.xlu0 %2790
    %v2792 = vrcp.pop %v2782
    %v2793 = vmul.f32 1.0, %v2792
    %v2794 = vrcp.pop %v2785
    %v2795 = vmul.f32 1.0, %v2794
    %v2796 = vrcp.pop %v2788
    %v2797 = vmul.f32 1.0, %v2796
    %v2798 = vrcp.pop %v2791
    %v2799 = vmul.f32 1.0, %v2798
    %2800 = vrot.lane.b32.xlu0 %v400, 32
    %v2801 = vpop.permute.xlu0 %2800
    %v2804 = vsel %vm725, %v2773, 0
    %2806 = vmatprep.subr.mxu0 0.0
    %2807 = vmatpush1.msra.mxu0 0.0
    %2808 = vmatprep.subr.mxu0 0.0
    %2809 = vmatpush1.msra.mxu0 0.0
    %2810 = vmatprep.subr.mxu0 0.0
    %2811 = vmatpush1.msra.mxu0 0.0
    %2812 = vmatprep.subr.mxu0 0.0
    %2813 = vmatpush1.msra.mxu0 0.0
    %2814 = vmatprep.subr.mxu0 0.0
    %2815 = vmatpush1.msra.mxu0 0.0
    %2816 = vmatprep.subr.mxu0 0.0
    %2817 = vmatpush1.msra.mxu0 0.0
    %2818 = vmatprep.subr.mxu0 0.0
    %2819 = vmatpush1.msra.mxu0 0.0
    %2820 = vmatprep.subr.mxu0 0.0
    %2821 = vmatpush1.msra.mxu0 0.0
    %2822 = vmatprep.subr.mxu0 0.0
    %2823 = vmatpush1.msra.mxu0 0.0
    %2824 = vmatprep.subr.mxu0 0.0
    %2825 = vmatpush1.msra.mxu0 0.0
    %2826 = vmatprep.subr.mxu0 0.0
    %2827 = vmatpush1.msra.mxu0 0.0
    %2828 = vmatprep.subr.mxu0 0.0
    %2829 = vmatpush1.msra.mxu0 0.0
    %2830 = vmatprep.subr.mxu0 0.0
    %2831 = vmatpush1.msra.mxu0 0.0
    %2832 = vmatprep.subr.mxu0 0.0
    %2833 = vmatpush1.msra.mxu0 0.0
    %2834 = vmatprep.subr.mxu0 0.0
    %2835 = vmatpush1.msra.mxu0 0.0
    %2836 = vmatprep.subr.mxu0 0.0
    %2837 = vmatpush1.msra.mxu0 %v2801
    %2838 = vmatprep.subr.mxu0 0.0
    %2839 = vmatpush2.msra.mxu0 0.0
    %2840 = vmatprep.subr.mxu0 0.0
    %2841 = vmatpush2.msra.mxu0 0.0
    %2842 = vmatprep.subr.mxu0 0.0
    %2843 = vmatpush2.msra.mxu0 0.0
    %2844 = vmatprep.subr.mxu0 0.0
    %2845 = vmatpush2.msra.mxu0 0.0
    %2846 = vmatprep.subr.mxu0 0.0
    %2847 = vmatpush2.msra.mxu0 0.0
    %2848 = vmatprep.subr.mxu0 0.0
    %2849 = vmatpush2.msra.mxu0 0.0
    %2850 = vmatprep.subr.mxu0 0.0
    %2851 = vmatpush2.msra.mxu0 0.0
    %2852 = vmatprep.subr.mxu0 0.0
    %2853 = vmatpush2.msra.mxu0 0.0
    %2854 = vmatprep.subr.mxu0 0.0
    %2855 = vmatpush2.msra.mxu0 0.0
    %2856 = vmatprep.subr.mxu0 0.0
    %2857 = vmatpush2.msra.mxu0 0.0
    %2858 = vmatprep.subr.mxu0 0.0
    %2859 = vmatpush2.msra.mxu0 0.0
    %2860 = vmatprep.subr.mxu0 0.0
    %2861 = vmatpush2.msra.mxu0 0.0
    %2862 = vmatprep.subr.mxu0 0.0
    %2863 = vmatpush2.msra.mxu0 0.0
    %2864 = vmatprep.subr.mxu0 0.0
    %2865 = vmatpush2.msra.mxu0 0.0
    %2866 = vmatprep.subr.mxu0 0.0
    %2867 = vmatpush2.msra.mxu0 0.0
    %2868 = vmatprep.subr.mxu0 0.0
    %2869 = vmatpush2.msra.mxu0 0.0
    %2870 = vmatprep.mubr.f32.mxu0 0.0
    %2871 = vmatmul.mubr.f32.gmra.mxu0 %v2804
    %v2872 = vpop.f32.mrf.mxu0
    %v2873 = vadd.f32 0.0, %v2872
    %v2874 = vpop.f32.mrf.mxu0
    %2875 = vdwg.mxu0
    %2876 = vrot.lane.b32.xlu0 %v406, 32
    %v2877 = vpop.permute.xlu0 %2876
    %v2880 = vsel %vm725, %v2775, 0
    %2882 = vmatprep.subr.mxu0 0.0
    %2883 = vmatpush1.msra.mxu0 0.0
    %2884 = vmatprep.subr.mxu0 0.0
    %2885 = vmatpush1.msra.mxu0 0.0
    %2886 = vmatprep.subr.mxu0 0.0
    %2887 = vmatpush1.msra.mxu0 0.0
    %2888 = vmatprep.subr.mxu0 0.0
    %2889 = vmatpush1.msra.mxu0 0.0
    %2890 = vmatprep.subr.mxu0 0.0
    %2891 = vmatpush1.msra.mxu0 0.0
    %2892 = vmatprep.subr.mxu0 0.0
    %2893 = vmatpush1.msra.mxu0 0.0
    %2894 = vmatprep.subr.mxu0 0.0
    %2895 = vmatpush1.msra.mxu0 0.0
    %2896 = vmatprep.subr.mxu0 0.0
    %2897 = vmatpush1.msra.mxu0 0.0
    %2898 = vmatprep.subr.mxu0 0.0
    %2899 = vmatpush1.msra.mxu0 0.0
    %2900 = vmatprep.subr.mxu0 0.0
    %2901 = vmatpush1.msra.mxu0 0.0
    %2902 = vmatprep.subr.mxu0 0.0
    %2903 = vmatpush1.msra.mxu0 0.0
    %2904 = vmatprep.subr.mxu0 0.0
    %2905 = vmatpush1.msra.mxu0 0.0
    %2906 = vmatprep.subr.mxu0 0.0
    %2907 = vmatpush1.msra.mxu0 0.0
    %2908 = vmatprep.subr.mxu0 0.0
    %2909 = vmatpush1.msra.mxu0 0.0
    %2910 = vmatprep.subr.mxu0 0.0
    %2911 = vmatpush1.msra.mxu0 0.0
    %2912 = vmatprep.subr.mxu0 0.0
    %2913 = vmatpush1.msra.mxu0 %v2877
    %2914 = vmatprep.subr.mxu0 0.0
    %2915 = vmatpush2.msra.mxu0 0.0
    %2916 = vmatprep.subr.mxu0 0.0
    %2917 = vmatpush2.msra.mxu0 0.0
    %2918 = vmatprep.subr.mxu0 0.0
    %2919 = vmatpush2.msra.mxu0 0.0
    %2920 = vmatprep.subr.mxu0 0.0
    %2921 = vmatpush2.msra.mxu0 0.0
    %2922 = vmatprep.subr.mxu0 0.0
    %2923 = vmatpush2.msra.mxu0 0.0
    %2924 = vmatprep.subr.mxu0 0.0
    %2925 = vmatpush2.msra.mxu0 0.0
    %2926 = vmatprep.subr.mxu0 0.0
    %2927 = vmatpush2.msra.mxu0 0.0
    %2928 = vmatprep.subr.mxu0 0.0
    %2929 = vmatpush2.msra.mxu0 0.0
    %2930 = vmatprep.subr.mxu0 0.0
    %2931 = vmatpush2.msra.mxu0 0.0
    %2932 = vmatprep.subr.mxu0 0.0
    %2933 = vmatpush2.msra.mxu0 0.0
    %2934 = vmatprep.subr.mxu0 0.0
    %2935 = vmatpush2.msra.mxu0 0.0
    %2936 = vmatprep.subr.mxu0 0.0
    %2937 = vmatpush2.msra.mxu0 0.0
    %2938 = vmatprep.subr.mxu0 0.0
    %2939 = vmatpush2.msra.mxu0 0.0
    %2940 = vmatprep.subr.mxu0 0.0
    %2941 = vmatpush2.msra.mxu0 0.0
    %2942 = vmatprep.subr.mxu0 0.0
    %2943 = vmatpush2.msra.mxu0 0.0
    %2944 = vmatprep.subr.mxu0 0.0
    %2945 = vmatpush2.msra.mxu0 0.0
    %2946 = vmatprep.mubr.f32.mxu0 0.0
    %2947 = vmatmul.mubr.f32.gmra.mxu0 %v2880
    %v2948 = vpop.f32.mrf.mxu0
    %v2949 = vadd.f32 0.0, %v2948
    %v2950 = vpop.f32.mrf.mxu0
    %2951 = vdwg.mxu0
    %2952 = vrot.lane.b32.xlu0 %v412, 32
    %v2953 = vpop.permute.xlu0 %2952
    %v2956 = vsel %vm725, %v2777, 0
    %2958 = vmatprep.subr.mxu0 0.0
    %2959 = vmatpush1.msra.mxu0 0.0
    %2960 = vmatprep.subr.mxu0 0.0
    %2961 = vmatpush1.msra.mxu0 0.0
    %2962 = vmatprep.subr.mxu0 0.0
    %2963 = vmatpush1.msra.mxu0 0.0
    %2964 = vmatprep.subr.mxu0 0.0
    %2965 = vmatpush1.msra.mxu0 0.0
    %2966 = vmatprep.subr.mxu0 0.0
    %2967 = vmatpush1.msra.mxu0 0.0
    %2968 = vmatprep.subr.mxu0 0.0
    %2969 = vmatpush1.msra.mxu0 0.0
    %2970 = vmatprep.subr.mxu0 0.0
    %2971 = vmatpush1.msra.mxu0 0.0
    %2972 = vmatprep.subr.mxu0 0.0
    %2973 = vmatpush1.msra.mxu0 0.0
    %2974 = vmatprep.subr.mxu0 0.0
    %2975 = vmatpush1.msra.mxu0 0.0
    %2976 = vmatprep.subr.mxu0 0.0
    %2977 = vmatpush1.msra.mxu0 0.0
    %2978 = vmatprep.subr.mxu0 0.0
    %2979 = vmatpush1.msra.mxu0 0.0
    %2980 = vmatprep.subr.mxu0 0.0
    %2981 = vmatpush1.msra.mxu0 0.0
    %2982 = vmatprep.subr.mxu0 0.0
    %2983 = vmatpush1.msra.mxu0 0.0
    %2984 = vmatprep.subr.mxu0 0.0
    %2985 = vmatpush1.msra.mxu0 0.0
    %2986 = vmatprep.subr.mxu0 0.0
    %2987 = vmatpush1.msra.mxu0 0.0
    %2988 = vmatprep.subr.mxu0 0.0
    %2989 = vmatpush1.msra.mxu0 %v2953
    %2990 = vmatprep.subr.mxu0 0.0
    %2991 = vmatpush2.msra.mxu0 0.0
    %2992 = vmatprep.subr.mxu0 0.0
    %2993 = vmatpush2.msra.mxu0 0.0
    %2994 = vmatprep.subr.mxu0 0.0
    %2995 = vmatpush2.msra.mxu0 0.0
    %2996 = vmatprep.subr.mxu0 0.0
    %2997 = vmatpush2.msra.mxu0 0.0
    %2998 = vmatprep.subr.mxu0 0.0
    %2999 = vmatpush2.msra.mxu0 0.0
    %3000 = vmatprep.subr.mxu0 0.0
    %3001 = vmatpush2.msra.mxu0 0.0
    %3002 = vmatprep.subr.mxu0 0.0
    %3003 = vmatpush2.msra.mxu0 0.0
    %3004 = vmatprep.subr.mxu0 0.0
    %3005 = vmatpush2.msra.mxu0 0.0
    %3006 = vmatprep.subr.mxu0 0.0
    %3007 = vmatpush2.msra.mxu0 0.0
    %3008 = vmatprep.subr.mxu0 0.0
    %3009 = vmatpush2.msra.mxu0 0.0
    %3010 = vmatprep.subr.mxu0 0.0
    %3011 = vmatpush2.msra.mxu0 0.0
    %3012 = vmatprep.subr.mxu0 0.0
    %3013 = vmatpush2.msra.mxu0 0.0
    %3014 = vmatprep.subr.mxu0 0.0
    %3015 = vmatpush2.msra.mxu0 0.0
    %3016 = vmatprep.subr.mxu0 0.0
    %3017 = vmatpush2.msra.mxu0 0.0
    %3018 = vmatprep.subr.mxu0 0.0
    %3019 = vmatpush2.msra.mxu0 0.0
    %3020 = vmatprep.subr.mxu0 0.0
    %3021 = vmatpush2.msra.mxu0 0.0
    %3022 = vmatprep.mubr.f32.mxu0 0.0
    %3023 = vmatmul.mubr.f32.gmra.mxu0 %v2956
    %v3024 = vpop.f32.mrf.mxu0
    %v3025 = vadd.f32 0.0, %v3024
    %v3026 = vpop.f32.mrf.mxu0
    %3027 = vdwg.mxu0
    %3028 = vrot.lane.b32.xlu0 %v418, 32
    %v3029 = vpop.permute.xlu0 %3028
    %v3032 = vsel %vm725, %v2779, 0
    %3034 = vmatprep.subr.mxu0 0.0
    %3035 = vmatpush1.msra.mxu0 0.0
    %3036 = vmatprep.subr.mxu0 0.0
    %3037 = vmatpush1.msra.mxu0 0.0
    %3038 = vmatprep.subr.mxu0 0.0
    %3039 = vmatpush1.msra.mxu0 0.0
    %3040 = vmatprep.subr.mxu0 0.0
    %3041 = vmatpush1.msra.mxu0 0.0
    %3042 = vmatprep.subr.mxu0 0.0
    %3043 = vmatpush1.msra.mxu0 0.0
    %3044 = vmatprep.subr.mxu0 0.0
    %3045 = vmatpush1.msra.mxu0 0.0
    %3046 = vmatprep.subr.mxu0 0.0
    %3047 = vmatpush1.msra.mxu0 0.0
    %3048 = vmatprep.subr.mxu0 0.0
    %3049 = vmatpush1.msra.mxu0 0.0
    %3050 = vmatprep.subr.mxu0 0.0
    %3051 = vmatpush1.msra.mxu0 0.0
    %3052 = vmatprep.subr.mxu0 0.0
    %3053 = vmatpush1.msra.mxu0 0.0
    %3054 = vmatprep.subr.mxu0 0.0
    %3055 = vmatpush1.msra.mxu0 0.0
    %3056 = vmatprep.subr.mxu0 0.0
    %3057 = vmatpush1.msra.mxu0 0.0
    %3058 = vmatprep.subr.mxu0 0.0
    %3059 = vmatpush1.msra.mxu0 0.0
    %3060 = vmatprep.subr.mxu0 0.0
    %3061 = vmatpush1.msra.mxu0 0.0
    %3062 = vmatprep.subr.mxu0 0.0
    %3063 = vmatpush1.msra.mxu0 0.0
    %3064 = vmatprep.subr.mxu0 0.0
    %3065 = vmatpush1.msra.mxu0 %v3029
    %3066 = vmatprep.subr.mxu0 0.0
    %3067 = vmatpush2.msra.mxu0 0.0
    %3068 = vmatprep.subr.mxu0 0.0
    %3069 = vmatpush2.msra.mxu0 0.0
    %3070 = vmatprep.subr.mxu0 0.0
    %3071 = vmatpush2.msra.mxu0 0.0
    %3072 = vmatprep.subr.mxu0 0.0
    %3073 = vmatpush2.msra.mxu0 0.0
    %3074 = vmatprep.subr.mxu0 0.0
    %3075 = vmatpush2.msra.mxu0 0.0
    %3076 = vmatprep.subr.mxu0 0.0
    %3077 = vmatpush2.msra.mxu0 0.0
    %3078 = vmatprep.subr.mxu0 0.0
    %3079 = vmatpush2.msra.mxu0 0.0
    %3080 = vmatprep.subr.mxu0 0.0
    %3081 = vmatpush2.msra.mxu0 0.0
    %3082 = vmatprep.subr.mxu0 0.0
    %3083 = vmatpush2.msra.mxu0 0.0
    %3084 = vmatprep.subr.mxu0 0.0
    %3085 = vmatpush2.msra.mxu0 0.0
    %3086 = vmatprep.subr.mxu0 0.0
    %3087 = vmatpush2.msra.mxu0 0.0
    %3088 = vmatprep.subr.mxu0 0.0
    %3089 = vmatpush2.msra.mxu0 0.0
    %3090 = vmatprep.subr.mxu0 0.0
    %3091 = vmatpush2.msra.mxu0 0.0
    %3092 = vmatprep.subr.mxu0 0.0
    %3093 = vmatpush2.msra.mxu0 0.0
    %3094 = vmatprep.subr.mxu0 0.0
    %3095 = vmatpush2.msra.mxu0 0.0
    %3096 = vmatprep.subr.mxu0 0.0
    %3097 = vmatpush2.msra.mxu0 0.0
    %3098 = vmatprep.mubr.f32.mxu0 0.0
    %3099 = vmatmul.mubr.f32.gmra.mxu0 %v3032
    %v3100 = vpop.f32.mrf.mxu0
    %v3101 = vadd.f32 0.0, %v3100
    %v3102 = vpop.f32.mrf.mxu0
    %3103 = vdwg.mxu0
    %v3104 = vmul.f32 %v2873, %v2793
    %v3105 = vmul.f32 %v2949, %v2795
    %v3106 = vmul.f32 %v3025, %v2797
    %v3107 = vmul.f32 %v3101, %v2799
    %3112 = vrot.lane.b32.xlu0 %v3104, 96
    %v3113 = vpop.permute.xlu0 %3112
    %3114 = vrot.lane.b32.xlu0 %v3105, 96
    %v3115 = vpop.permute.xlu0 %3114
    %3116 = vrot.lane.b32.xlu0 %v3106, 96
    %v3117 = vpop.permute.xlu0 %3116
    %3118 = vrot.lane.b32.xlu0 %v3107, 96
    %v3119 = vpop.permute.xlu0 %3118
    %vm3124 = vcmask 1048320
    %3125 = vst.msk [vmem:[#allocation2] sm:$0xff] %vm3124, %v3113
    %3126 = vst.msk [vmem:[#allocation2 + $0x8] sm:$0xff] %vm3124, %v3115
    %3127 = vst.msk [vmem:[#allocation2 + $0x10] sm:$0xff] %vm3124, %v3117
    %3128 = vst.msk [vmem:[#allocation2 + $0x18] sm:$0xff] %vm3124, %v3119
    %v3129 = vld [vmem:[#allocation2] sm:$0xff]
    %v3130 = vld [vmem:[#allocation2 + $0x8] sm:$0xff]
    %v3131 = vld [vmem:[#allocation2 + $0x10] sm:$0xff]
    %v3132 = vld [vmem:[#allocation2 + $0x18] sm:$0xff]
    %v3133 = vld [vmem:[#allocation9] sm:$0xff]
    %v3134 = vld [vmem:[#allocation9 + $0x8] sm:$0xff]
    %v3135 = vld [vmem:[#allocation9 + $0x10] sm:$0xff]
    %v3136 = vld [vmem:[#allocation9 + $0x18] sm:$0xff]
    %v3137 = vld [vmem:[#allocation9 + $0x20] sm:$0xff]
    %v3138 = vld [vmem:[#allocation9 + $0x28] sm:$0xff]
    %v3139 = vld [vmem:[#allocation9 + $0x30] sm:$0xff]
    %v3140 = vld [vmem:[#allocation9 + $0x38] sm:$0xff]
    %v3141 = vld [vmem:[#allocation9 + $0x40] sm:$0xff]
    %v3142 = vld [vmem:[#allocation9 + $0x48] sm:$0xff]
    %v3143 = vld [vmem:[#allocation9 + $0x50] sm:$0xff]
    %v3144 = vld [vmem:[#allocation9 + $0x58] sm:$0xff]
    %v3145 = vld [vmem:[#allocation9 + $0x60] sm:$0xff]
    %v3146 = vld [vmem:[#allocation9 + $0x68] sm:$0xff]
    %v3147 = vld [vmem:[#allocation9 + $0x70] sm:$0xff]
    %v3148 = vld [vmem:[#allocation9 + $0x78] sm:$0xff]
    %v3149 = vld [vmem:[%s6] sm:$0x1]
    %v3151 = vlaneseq
    %v3152 = vshrl.u32 %v3151, 7
    %v3153 = vsub.s32 0, %v3152
    %v3154 = vrot.slane %v3149, %v3153
    %3156 = vmatprep.subr.mxu0 0.0
    %3157 = vmatpush1.msra.mxu0 %v3148
    %3158 = vmatprep.subr.mxu0 0.0
    %3159 = vmatpush1.msra.mxu0 %v3147
    %3160 = vmatprep.subr.mxu0 0.0
    %3161 = vmatpush1.msra.mxu0 %v3146
    %3162 = vmatprep.subr.mxu0 0.0
    %3163 = vmatpush1.msra.mxu0 %v3145
    %3164 = vmatprep.subr.mxu0 0.0
    %3165 = vmatpush1.msra.mxu0 %v3144
    %3166 = vmatprep.subr.mxu0 0.0
    %3167 = vmatpush1.msra.mxu0 %v3143
    %3168 = vmatprep.subr.mxu0 0.0
    %3169 = vmatpush1.msra.mxu0 %v3142
    %3170 = vmatprep.subr.mxu0 0.0
    %3171 = vmatpush1.msra.mxu0 %v3141
    %3172 = vmatprep.subr.mxu0 0.0
    %3173 = vmatpush1.msra.mxu0 %v3140
    %3174 = vmatprep.subr.mxu0 0.0
    %3175 = vmatpush1.msra.mxu0 %v3139
    %3176 = vmatprep.subr.mxu0 0.0
    %3177 = vmatpush1.msra.mxu0 %v3138
    %3178 = vmatprep.subr.mxu0 0.0
    %3179 = vmatpush1.msra.mxu0 %v3137
    %3180 = vmatprep.subr.mxu0 0.0
    %3181 = vmatpush1.msra.mxu0 %v3136
    %3182 = vmatprep.subr.mxu0 0.0
    %3183 = vmatpush1.msra.mxu0 %v3135
    %3184 = vmatprep.subr.mxu0 0.0
    %3185 = vmatpush1.msra.mxu0 %v3134
    %3186 = vmatprep.subr.mxu0 0.0
    %3187 = vmatpush1.msra.mxu0 %v3133
    %3188 = vmatprep.subr.mxu0 0.0
    %3189 = vmatpush2.msra.mxu0 0.0
    %3190 = vmatprep.subr.mxu0 0.0
    %3191 = vmatpush2.msra.mxu0 0.0
    %3192 = vmatprep.subr.mxu0 0.0
    %3193 = vmatpush2.msra.mxu0 0.0
    %3194 = vmatprep.subr.mxu0 0.0
    %3195 = vmatpush2.msra.mxu0 0.0
    %3196 = vmatprep.subr.mxu0 0.0
    %3197 = vmatpush2.msra.mxu0 0.0
    %3198 = vmatprep.subr.mxu0 0.0
    %3199 = vmatpush2.msra.mxu0 0.0
    %3200 = vmatprep.subr.mxu0 0.0
    %3201 = vmatpush2.msra.mxu0 0.0
    %3202 = vmatprep.subr.mxu0 0.0
    %3203 = vmatpush2.msra.mxu0 0.0
    %3204 = vmatprep.subr.mxu0 0.0
    %3205 = vmatpush2.msra.mxu0 0.0
    %3206 = vmatprep.subr.mxu0 0.0
    %3207 = vmatpush2.msra.mxu0 0.0
    %3208 = vmatprep.subr.mxu0 0.0
    %3209 = vmatpush2.msra.mxu0 0.0
    %3210 = vmatprep.subr.mxu0 0.0
    %3211 = vmatpush2.msra.mxu0 0.0
    %3212 = vmatprep.subr.mxu0 0.0
    %3213 = vmatpush2.msra.mxu0 0.0
    %3214 = vmatprep.subr.mxu0 0.0
    %3215 = vmatpush2.msra.mxu0 0.0
    %3216 = vmatprep.subr.mxu0 0.0
    %3217 = vmatpush2.msra.mxu0 0.0
    %3218 = vmatprep.subr.mxu0 0.0
    %3219 = vmatpush2.msra.mxu0 0.0
    %3220 = vmatprep.mubr.f32.mxu0 0.0
    %3221 = vmatmul.mubr.f32.gmra.mxu0 %v3129
    %v3222 = vpop.f32.mrf.mxu0
    %v3223 = vadd.f32 %v3154, %v3222
    %v3224 = vpop.f32.mrf.mxu0
    %3225 = vmatprep.mubr.f32.mxu0 0.0
    %3226 = vmatmul.mubr.f32.gmra.mxu0 %v3130
    %v3227 = vpop.f32.mrf.mxu0
    %v3228 = vadd.f32 %v3154, %v3227
    %v3229 = vpop.f32.mrf.mxu0
    %3230 = vmatprep.mubr.f32.mxu0 0.0
    %3231 = vmatmul.mubr.f32.gmra.mxu0 %v3131
    %v3232 = vpop.f32.mrf.mxu0
    %v3233 = vadd.f32 %v3154, %v3232
    %v3234 = vpop.f32.mrf.mxu0
    %3235 = vmatprep.mubr.f32.mxu0 0.0
    %3236 = vmatmul.mubr.f32.gmra.mxu0 %v3132
    %v3237 = vpop.f32.mrf.mxu0
    %v3238 = vadd.f32 %v3154, %v3237
    %v3239 = vpop.f32.mrf.mxu0
    %3240 = vdwg.mxu0
    %v3241 = vadd.f32 %v127, %v3223
    %v3242 = vadd.f32 %v128, %v3228
    %v3243 = vadd.f32 %v129, %v3233
    %v3244 = vadd.f32 %v130, %v3238
    %3245 = vadd.xlane.f32.xlu0 %v3241
    %v3246 = vpop.xlane.xlu0 %3245
    %3247 = vadd.xlane.f32.xlu0 %v3242
    %v3248 = vpop.xlane.xlu0 %3247
    %3249 = vadd.xlane.f32.xlu0 %v3243
    %v3250 = vpop.xlane.xlu0 %3249
    %3251 = vadd.xlane.f32.xlu0 %v3244
    %v3252 = vpop.xlane.xlu0 %3251
    %v3253 = vmul.f32 %v3246, %v139
    %v3254 = vmul.f32 %v3248, %v139
    %v3255 = vmul.f32 %v3250, %v139
    %v3256 = vmul.f32 %v3252, %v139
    %v3257 = vsub.f32 %v3241, %v3253
    %v3258 = vsub.f32 %v3242, %v3254
    %v3259 = vsub.f32 %v3243, %v3255
    %v3260 = vsub.f32 %v3244, %v3256
    %v3261 = vmul.f32 %v3257, %v3257
    %v3262 = vmul.f32 %v3258, %v3258
    %v3263 = vmul.f32 %v3259, %v3259
    %v3264 = vmul.f32 %v3260, %v3260
    %3265 = vadd.xlane.f32.xlu0 %v3261
    %v3266 = vpop.xlane.xlu0 %3265
    %3267 = vadd.xlane.f32.xlu0 %v3262
    %v3268 = vpop.xlane.xlu0 %3267
    %3269 = vadd.xlane.f32.xlu0 %v3263
    %v3270 = vpop.xlane.xlu0 %3269
    %3271 = vadd.xlane.f32.xlu0 %v3264
    %v3272 = vpop.xlane.xlu0 %3271
    %v3273 = vmul.f32 %v3266, %v139
    %v3274 = vmul.f32 %v3268, %v139
    %v3275 = vmul.f32 %v3270, %v139
    %v3276 = vmul.f32 %v3272, %v139
    %v3277 = vadd.f32 %v3273, 1e-05
    %v3278 = vadd.f32 %v3274, 1e-05
    %v3279 = vadd.f32 %v3275, 1e-05
    %v3280 = vadd.f32 %v3276, 1e-05
    %v3281 = vrsqrt.pop %v3277
    %v3282 = vrsqrt.pop %v3278
    %v3283 = vrsqrt.pop %v3279
    %v3284 = vrsqrt.pop %v3280
    %v3285 = vmul.f32 %v3257, %v3281
    %v3286 = vmul.f32 %v3258, %v3282
    %v3287 = vmul.f32 %v3259, %v3283
    %v3288 = vmul.f32 %v3260, %v3284
    %v3289 = vld [vmem:[%s7] sm:$0x1]
    %v3291 = vlaneseq
    %v3292 = vshrl.u32 %v3291, 7
    %v3293 = vsub.s32 0, %v3292
    %v3294 = vrot.slane %v3289, %v3293
    %v3296 = vmul.f32 %v3285, %v3294
    %v3297 = vmul.f32 %v3286, %v3294
    %v3298 = vmul.f32 %v3287, %v3294
    %v3299 = vmul.f32 %v3288, %v3294
    %v3300 = vld [vmem:[%s8] sm:$0x1]
    %v3302 = vlaneseq
    %v3303 = vshrl.u32 %v3302, 7
    %v3304 = vsub.s32 0, %v3303
    %v3305 = vrot.slane %v3300, %v3304
    %v3307 = vadd.f32 %v3296, %v3305
    %v3308 = vadd.f32 %v3297, %v3305
    %v3309 = vadd.f32 %v3298, %v3305
    %v3310 = vadd.f32 %v3299, %v3305
    %v3311 = vld [vmem:[#allocation11] sm:$0xff]
    %v3312 = vld [vmem:[#allocation11 + $0x8] sm:$0xff]
    %v3313 = vld [vmem:[#allocation11 + $0x10] sm:$0xff]
    %v3314 = vld [vmem:[#allocation11 + $0x18] sm:$0xff]
    %v3315 = vld [vmem:[#allocation11 + $0x20] sm:$0xff]
    %v3316 = vld [vmem:[#allocation11 + $0x28] sm:$0xff]
    %v3317 = vld [vmem:[#allocation11 + $0x30] sm:$0xff]
    %v3318 = vld [vmem:[#allocation11 + $0x38] sm:$0xff]
    %v3319 = vld [vmem:[#allocation11 + $0x40] sm:$0xff]
    %v3320 = vld [vmem:[#allocation11 + $0x48] sm:$0xff]
    %v3321 = vld [vmem:[#allocation11 + $0x50] sm:$0xff]
    %v3322 = vld [vmem:[#allocation11 + $0x58] sm:$0xff]
    %v3323 = vld [vmem:[#allocation11 + $0x60] sm:$0xff]
    %v3324 = vld [vmem:[#allocation11 + $0x68] sm:$0xff]
    %v3325 = vld [vmem:[#allocation11 + $0x70] sm:$0xff]
    %v3326 = vld [vmem:[#allocation11 + $0x78] sm:$0xff]
    %v3327 = vld [vmem:[#allocation11 + $0x80] sm:$0xff]
    %v3328 = vld [vmem:[#allocation11 + $0x88] sm:$0xff]
    %v3329 = vld [vmem:[#allocation11 + $0x90] sm:$0xff]
    %v3330 = vld [vmem:[#allocation11 + $0x98] sm:$0xff]
    %v3331 = vld [vmem:[#allocation11 + $0xa0] sm:$0xff]
    %v3332 = vld [vmem:[#allocation11 + $0xa8] sm:$0xff]
    %v3333 = vld [vmem:[#allocation11 + $0xb0] sm:$0xff]
    %v3334 = vld [vmem:[#allocation11 + $0xb8] sm:$0xff]
    %v3335 = vld [vmem:[#allocation11 + $0xc0] sm:$0xff]
    %v3336 = vld [vmem:[#allocation11 + $0xc8] sm:$0xff]
    %v3337 = vld [vmem:[#allocation11 + $0xd0] sm:$0xff]
    %v3338 = vld [vmem:[#allocation11 + $0xd8] sm:$0xff]
    %v3339 = vld [vmem:[#allocation11 + $0xe0] sm:$0xff]
    %v3340 = vld [vmem:[#allocation11 + $0xe8] sm:$0xff]
    %v3341 = vld [vmem:[#allocation11 + $0xf0] sm:$0xff]
    %v3342 = vld [vmem:[#allocation11 + $0xf8] sm:$0xff]
    %v3343 = vld [vmem:[#allocation11 + $0x100] sm:$0xff]
    %v3344 = vld [vmem:[#allocation11 + $0x108] sm:$0xff]
    %v3345 = vld [vmem:[#allocation11 + $0x110] sm:$0xff]
    %v3346 = vld [vmem:[#allocation11 + $0x118] sm:$0xff]
    %v3347 = vld [vmem:[#allocation11 + $0x120] sm:$0xff]
    %v3348 = vld [vmem:[#allocation11 + $0x128] sm:$0xff]
    %v3349 = vld [vmem:[#allocation11 + $0x130] sm:$0xff]
    %v3350 = vld [vmem:[#allocation11 + $0x138] sm:$0xff]
    %v3351 = vld [vmem:[#allocation11 + $0x140] sm:$0xff]
    %v3352 = vld [vmem:[#allocation11 + $0x148] sm:$0xff]
    %v3353 = vld [vmem:[#allocation11 + $0x150] sm:$0xff]
    %v3354 = vld [vmem:[#allocation11 + $0x158] sm:$0xff]
    %v3355 = vld [vmem:[#allocation11 + $0x160] sm:$0xff]
    %v3356 = vld [vmem:[#allocation11 + $0x168] sm:$0xff]
    %v3357 = vld [vmem:[#allocation11 + $0x170] sm:$0xff]
    %v3358 = vld [vmem:[#allocation11 + $0x178] sm:$0xff]
    %v3359 = vld [vmem:[#allocation11 + $0x180] sm:$0xff]
    %v3360 = vld [vmem:[#allocation11 + $0x188] sm:$0xff]
    %v3361 = vld [vmem:[#allocation11 + $0x190] sm:$0xff]
    %v3362 = vld [vmem:[#allocation11 + $0x198] sm:$0xff]
    %v3363 = vld [vmem:[#allocation11 + $0x1a0] sm:$0xff]
    %v3364 = vld [vmem:[#allocation11 + $0x1a8] sm:$0xff]
    %v3365 = vld [vmem:[#allocation11 + $0x1b0] sm:$0xff]
    %v3366 = vld [vmem:[#allocation11 + $0x1b8] sm:$0xff]
    %v3367 = vld [vmem:[#allocation11 + $0x1c0] sm:$0xff]
    %v3368 = vld [vmem:[#allocation11 + $0x1c8] sm:$0xff]
    %v3369 = vld [vmem:[#allocation11 + $0x1d0] sm:$0xff]
    %v3370 = vld [vmem:[#allocation11 + $0x1d8] sm:$0xff]
    %v3371 = vld [vmem:[#allocation11 + $0x1e0] sm:$0xff]
    %v3372 = vld [vmem:[#allocation11 + $0x1e8] sm:$0xff]
    %v3373 = vld [vmem:[#allocation11 + $0x1f0] sm:$0xff]
    %v3374 = vld [vmem:[#allocation11 + $0x1f8] sm:$0xff]
    %v3375 = vld [vmem:[%s10] sm:$0xf]
    %v3377 = vlaneseq
    %v3378 = vshrl.u32 %v3377, 7
    %v3379 = vsub.s32 0, %v3378
    %v3380 = vrot.slane %v3375, %v3379
    %v3381 = vlaneseq
    %v3382 = vshrl.u32 %v3381, 7
    %v3383 = vsub.s32 1, %v3382
    %v3384 = vrot.slane %v3375, %v3383
    %v3385 = vlaneseq
    %v3386 = vshrl.u32 %v3385, 7
    %v3387 = vsub.s32 2, %v3386
    %v3388 = vrot.slane %v3375, %v3387
    %v3389 = vlaneseq
    %v3390 = vshrl.u32 %v3389, 7
    %v3391 = vsub.s32 3, %v3390
    %v3392 = vrot.slane %v3375, %v3391
    %3397 = vmatprep.subr.mxu0 %v3372
    %3398 = vmatpush1.msra.mxu0 %v3371
    %3399 = vmatprep.subr.mxu0 %v3368
    %3400 = vmatpush1.msra.mxu0 %v3367
    %3401 = vmatprep.subr.mxu0 %v3364
    %3402 = vmatpush1.msra.mxu0 %v3363
    %3403 = vmatprep.subr.mxu0 %v3360
    %3404 = vmatpush1.msra.mxu0 %v3359
    %3405 = vmatprep.subr.mxu0 %v3356
    %3406 = vmatpush1.msra.mxu0 %v3355
    %3407 = vmatprep.subr.mxu0 %v3352
    %3408 = vmatpush1.msra.mxu0 %v3351
    %3409 = vmatprep.subr.mxu0 %v3348
    %3410 = vmatpush1.msra.mxu0 %v3347
    %3411 = vmatprep.subr.mxu0 %v3344
    %3412 = vmatpush1.msra.mxu0 %v3343
    %3413 = vmatprep.subr.mxu0 %v3340
    %3414 = vmatpush1.msra.mxu0 %v3339
    %3415 = vmatprep.subr.mxu0 %v3336
    %3416 = vmatpush1.msra.mxu0 %v3335
    %3417 = vmatprep.subr.mxu0 %v3332
    %3418 = vmatpush1.msra.mxu0 %v3331
    %3419 = vmatprep.subr.mxu0 %v3328
    %3420 = vmatpush1.msra.mxu0 %v3327
    %3421 = vmatprep.subr.mxu0 %v3324
    %3422 = vmatpush1.msra.mxu0 %v3323
    %3423 = vmatprep.subr.mxu0 %v3320
    %3424 = vmatpush1.msra.mxu0 %v3319
    %3425 = vmatprep.subr.mxu0 %v3316
    %3426 = vmatpush1.msra.mxu0 %v3315
    %3427 = vmatprep.subr.mxu0 %v3312
    %3428 = vmatpush1.msra.mxu0 %v3311
    %3429 = vmatprep.subr.mxu0 0.0
    %3430 = vmatpush2.msra.mxu0 0.0
    %3431 = vmatprep.subr.mxu0 0.0
    %3432 = vmatpush2.msra.mxu0 0.0
    %3433 = vmatprep.subr.mxu0 0.0
    %3434 = vmatpush2.msra.mxu0 0.0
    %3435 = vmatprep.subr.mxu0 0.0
    %3436 = vmatpush2.msra.mxu0 0.0
    %3437 = vmatprep.subr.mxu0 0.0
    %3438 = vmatpush2.msra.mxu0 0.0
    %3439 = vmatprep.subr.mxu0 0.0
    %3440 = vmatpush2.msra.mxu0 0.0
    %3441 = vmatprep.subr.mxu0 0.0
    %3442 = vmatpush2.msra.mxu0 0.0
    %3443 = vmatprep.subr.mxu0 0.0
    %3444 = vmatpush2.msra.mxu0 0.0
    %3445 = vmatprep.subr.mxu0 0.0
    %3446 = vmatpush2.msra.mxu0 0.0
    %3447 = vmatprep.subr.mxu0 0.0
    %3448 = vmatpush2.msra.mxu0 0.0
    %3449 = vmatprep.subr.mxu0 0.0
    %3450 = vmatpush2.msra.mxu0 0.0
    %3451 = vmatprep.subr.mxu0 0.0
    %3452 = vmatpush2.msra.mxu0 0.0
    %3453 = vmatprep.subr.mxu0 0.0
    %3454 = vmatpush2.msra.mxu0 0.0
    %3455 = vmatprep.subr.mxu0 0.0
    %3456 = vmatpush2.msra.mxu0 0.0
    %3457 = vmatprep.subr.mxu0 0.0
    %3458 = vmatpush2.msra.mxu0 0.0
    %3459 = vmatprep.subr.mxu0 0.0
    %3460 = vmatpush2.msra.mxu0 0.0
    %3461 = vmatprep.mubr.f32.mxu0 0.0
    %3462 = vmatmul.mubr.f32.gmra.mxu0 %v3307
    %v3463 = vpop.f32.mrf.mxu0
    %v3464 = vadd.f32 %v3380, %v3463
    %v3465 = vpop.f32.mrf.mxu0
    %v3466 = vadd.f32 %v3384, %v3465
    %3467 = vmatprep.mubr.f32.mxu0 0.0
    %3468 = vmatmul.mubr.f32.gmra.mxu0 %v3308
    %v3469 = vpop.f32.mrf.mxu0
    %v3470 = vadd.f32 %v3380, %v3469
    %v3471 = vpop.f32.mrf.mxu0
    %v3472 = vadd.f32 %v3384, %v3471
    %3473 = vmatprep.mubr.f32.mxu0 0.0
    %3474 = vmatmul.mubr.f32.gmra.mxu0 %v3309
    %v3475 = vpop.f32.mrf.mxu0
    %v3476 = vadd.f32 %v3380, %v3475
    %v3477 = vpop.f32.mrf.mxu0
    %v3478 = vadd.f32 %v3384, %v3477
    %3479 = vmatprep.mubr.f32.mxu0 0.0
    %3480 = vmatmul.mubr.f32.gmra.mxu0 %v3310
    %v3481 = vpop.f32.mrf.mxu0
    %v3482 = vadd.f32 %v3380, %v3481
    %v3483 = vpop.f32.mrf.mxu0
    %v3484 = vadd.f32 %v3384, %v3483
    %3485 = vdwg.mxu0
    %3486 = vmatprep.subr.mxu0 %v3374
    %3487 = vmatpush1.msra.mxu0 %v3373
    %3488 = vmatprep.subr.mxu0 %v3370
    %3489 = vmatpush1.msra.mxu0 %v3369
    %3490 = vmatprep.subr.mxu0 %v3366
    %3491 = vmatpush1.msra.mxu0 %v3365
    %3492 = vmatprep.subr.mxu0 %v3362
    %3493 = vmatpush1.msra.mxu0 %v3361
    %3494 = vmatprep.subr.mxu0 %v3358
    %3495 = vmatpush1.msra.mxu0 %v3357
    %3496 = vmatprep.subr.mxu0 %v3354
    %3497 = vmatpush1.msra.mxu0 %v3353
    %3498 = vmatprep.subr.mxu0 %v3350
    %3499 = vmatpush1.msra.mxu0 %v3349
    %3500 = vmatprep.subr.mxu0 %v3346
    %3501 = vmatpush1.msra.mxu0 %v3345
    %3502 = vmatprep.subr.mxu0 %v3342
    %3503 = vmatpush1.msra.mxu0 %v3341
    %3504 = vmatprep.subr.mxu0 %v3338
    %3505 = vmatpush1.msra.mxu0 %v3337
    %3506 = vmatprep.subr.mxu0 %v3334
    %3507 = vmatpush1.msra.mxu0 %v3333
    %3508 = vmatprep.subr.mxu0 %v3330
    %3509 = vmatpush1.msra.mxu0 %v3329
    %3510 = vmatprep.subr.mxu0 %v3326
    %3511 = vmatpush1.msra.mxu0 %v3325
    %3512 = vmatprep.subr.mxu0 %v3322
    %3513 = vmatpush1.msra.mxu0 %v3321
    %3514 = vmatprep.subr.mxu0 %v3318
    %3515 = vmatpush1.msra.mxu0 %v3317
    %3516 = vmatprep.subr.mxu0 %v3314
    %3517 = vmatpush1.msra.mxu0 %v3313
    %3518 = vmatprep.subr.mxu0 0.0
    %3519 = vmatpush2.msra.mxu0 0.0
    %3520 = vmatprep.subr.mxu0 0.0
    %3521 = vmatpush2.msra.mxu0 0.0
    %3522 = vmatprep.subr.mxu0 0.0
    %3523 = vmatpush2.msra.mxu0 0.0
    %3524 = vmatprep.subr.mxu0 0.0
    %3525 = vmatpush2.msra.mxu0 0.0
    %3526 = vmatprep.subr.mxu0 0.0
    %3527 = vmatpush2.msra.mxu0 0.0
    %3528 = vmatprep.subr.mxu0 0.0
    %3529 = vmatpush2.msra.mxu0 0.0
    %3530 = vmatprep.subr.mxu0 0.0
    %3531 = vmatpush2.msra.mxu0 0.0
    %3532 = vmatprep.subr.mxu0 0.0
    %3533 = vmatpush2.msra.mxu0 0.0
    %3534 = vmatprep.subr.mxu0 0.0
    %3535 = vmatpush2.msra.mxu0 0.0
    %3536 = vmatprep.subr.mxu0 0.0
    %3537 = vmatpush2.msra.mxu0 0.0
    %3538 = vmatprep.subr.mxu0 0.0
    %3539 = vmatpush2.msra.mxu0 0.0
    %3540 = vmatprep.subr.mxu0 0.0
    %3541 = vmatpush2.msra.mxu0 0.0
    %3542 = vmatprep.subr.mxu0 0.0
    %3543 = vmatpush2.msra.mxu0 0.0
    %3544 = vmatprep.subr.mxu0 0.0
    %3545 = vmatpush2.msra.mxu0 0.0
    %3546 = vmatprep.subr.mxu0 0.0
    %3547 = vmatpush2.msra.mxu0 0.0
    %3548 = vmatprep.subr.mxu0 0.0
    %3549 = vmatpush2.msra.mxu0 0.0
    %3550 = vmatprep.mubr.f32.mxu0 0.0
    %3551 = vmatmul.mubr.f32.gmra.mxu0 %v3307
    %v3552 = vpop.f32.mrf.mxu0
    %v3553 = vadd.f32 %v3388, %v3552
    %v3554 = vpop.f32.mrf.mxu0
    %v3555 = vadd.f32 %v3392, %v3554
    %3556 = vmatprep.mubr.f32.mxu0 0.0
    %3557 = vmatmul.mubr.f32.gmra.mxu0 %v3308
    %v3558 = vpop.f32.mrf.mxu0
    %v3559 = vadd.f32 %v3388, %v3558
    %v3560 = vpop.f32.mrf.mxu0
    %v3561 = vadd.f32 %v3392, %v3560
    %3562 = vmatprep.mubr.f32.mxu0 0.0
    %3563 = vmatmul.mubr.f32.gmra.mxu0 %v3309
    %v3564 = vpop.f32.mrf.mxu0
    %v3565 = vadd.f32 %v3388, %v3564
    %v3566 = vpop.f32.mrf.mxu0
    %v3567 = vadd.f32 %v3392, %v3566
    %3568 = vmatprep.mubr.f32.mxu0 0.0
    %3569 = vmatmul.mubr.f32.gmra.mxu0 %v3310
    %v3570 = vpop.f32.mrf.mxu0
    %v3571 = vadd.f32 %v3388, %v3570
    %v3572 = vpop.f32.mrf.mxu0
    %v3573 = vadd.f32 %v3392, %v3572
    %3574 = vdwg.mxu0
    %v3575 = vmax.f32 %v3464, 0.0
    %v3576 = vmax.f32 %v3466, 0.0
    %v3577 = vmax.f32 %v3553, 0.0
    %v3578 = vmax.f32 %v3555, 0.0
    %v3579 = vmax.f32 %v3470, 0.0
    %v3580 = vmax.f32 %v3472, 0.0
    %v3581 = vmax.f32 %v3559, 0.0
    %v3582 = vmax.f32 %v3561, 0.0
    %v3583 = vmax.f32 %v3476, 0.0
    %v3584 = vmax.f32 %v3478, 0.0
    %v3585 = vmax.f32 %v3565, 0.0
    %v3586 = vmax.f32 %v3567, 0.0
    %v3587 = vmax.f32 %v3482, 0.0
    %v3588 = vmax.f32 %v3484, 0.0
    %v3589 = vmax.f32 %v3571, 0.0
    %v3590 = vmax.f32 %v3573, 0.0
    %v3591 = vld [vmem:[#allocation12] sm:$0xff]
    %v3592 = vld [vmem:[#allocation12 + $0x8] sm:$0xff]
    %v3593 = vld [vmem:[#allocation12 + $0x10] sm:$0xff]
    %v3594 = vld [vmem:[#allocation12 + $0x18] sm:$0xff]
    %v3595 = vld [vmem:[#allocation12 + $0x20] sm:$0xff]
    %v3596 = vld [vmem:[#allocation12 + $0x28] sm:$0xff]
    %v3597 = vld [vmem:[#allocation12 + $0x30] sm:$0xff]
    %v3598 = vld [vmem:[#allocation12 + $0x38] sm:$0xff]
    %v3599 = vld [vmem:[#allocation12 + $0x40] sm:$0xff]
    %v3600 = vld [vmem:[#allocation12 + $0x48] sm:$0xff]
    %v3601 = vld [vmem:[#allocation12 + $0x50] sm:$0xff]
    %v3602 = vld [vmem:[#allocation12 + $0x58] sm:$0xff]
    %v3603 = vld [vmem:[#allocation12 + $0x60] sm:$0xff]
    %v3604 = vld [vmem:[#allocation12 + $0x68] sm:$0xff]
    %v3605 = vld [vmem:[#allocation12 + $0x70] sm:$0xff]
    %v3606 = vld [vmem:[#allocation12 + $0x78] sm:$0xff]
    %v3607 = vld [vmem:[#allocation12 + $0x80] sm:$0xff]
    %v3608 = vld [vmem:[#allocation12 + $0x88] sm:$0xff]
    %v3609 = vld [vmem:[#allocation12 + $0x90] sm:$0xff]
    %v3610 = vld [vmem:[#allocation12 + $0x98] sm:$0xff]
    %v3611 = vld [vmem:[#allocation12 + $0xa0] sm:$0xff]
    %v3612 = vld [vmem:[#allocation12 + $0xa8] sm:$0xff]
    %v3613 = vld [vmem:[#allocation12 + $0xb0] sm:$0xff]
    %v3614 = vld [vmem:[#allocation12 + $0xb8] sm:$0xff]
    %v3615 = vld [vmem:[#allocation12 + $0xc0] sm:$0xff]
    %v3616 = vld [vmem:[#allocation12 + $0xc8] sm:$0xff]
    %v3617 = vld [vmem:[#allocation12 + $0xd0] sm:$0xff]
    %v3618 = vld [vmem:[#allocation12 + $0xd8] sm:$0xff]
    %v3619 = vld [vmem:[#allocation12 + $0xe0] sm:$0xff]
    %v3620 = vld [vmem:[#allocation12 + $0xe8] sm:$0xff]
    %v3621 = vld [vmem:[#allocation12 + $0xf0] sm:$0xff]
    %v3622 = vld [vmem:[#allocation12 + $0xf8] sm:$0xff]
    %v3623 = vld [vmem:[#allocation12 + $0x100] sm:$0xff]
    %v3624 = vld [vmem:[#allocation12 + $0x108] sm:$0xff]
    %v3625 = vld [vmem:[#allocation12 + $0x110] sm:$0xff]
    %v3626 = vld [vmem:[#allocation12 + $0x118] sm:$0xff]
    %v3627 = vld [vmem:[#allocation12 + $0x120] sm:$0xff]
    %v3628 = vld [vmem:[#allocation12 + $0x128] sm:$0xff]
    %v3629 = vld [vmem:[#allocation12 + $0x130] sm:$0xff]
    %v3630 = vld [vmem:[#allocation12 + $0x138] sm:$0xff]
    %v3631 = vld [vmem:[#allocation12 + $0x140] sm:$0xff]
    %v3632 = vld [vmem:[#allocation12 + $0x148] sm:$0xff]
    %v3633 = vld [vmem:[#allocation12 + $0x150] sm:$0xff]
    %v3634 = vld [vmem:[#allocation12 + $0x158] sm:$0xff]
    %v3635 = vld [vmem:[#allocation12 + $0x160] sm:$0xff]
    %v3636 = vld [vmem:[#allocation12 + $0x168] sm:$0xff]
    %v3637 = vld [vmem:[#allocation12 + $0x170] sm:$0xff]
    %v3638 = vld [vmem:[#allocation12 + $0x178] sm:$0xff]
    %v3639 = vld [vmem:[#allocation12 + $0x180] sm:$0xff]
    %v3640 = vld [vmem:[#allocation12 + $0x188] sm:$0xff]
    %v3641 = vld [vmem:[#allocation12 + $0x190] sm:$0xff]
    %v3642 = vld [vmem:[#allocation12 + $0x198] sm:$0xff]
    %v3643 = vld [vmem:[#allocation12 + $0x1a0] sm:$0xff]
    %v3644 = vld [vmem:[#allocation12 + $0x1a8] sm:$0xff]
    %v3645 = vld [vmem:[#allocation12 + $0x1b0] sm:$0xff]
    %v3646 = vld [vmem:[#allocation12 + $0x1b8] sm:$0xff]
    %v3647 = vld [vmem:[#allocation12 + $0x1c0] sm:$0xff]
    %v3648 = vld [vmem:[#allocation12 + $0x1c8] sm:$0xff]
    %v3649 = vld [vmem:[#allocation12 + $0x1d0] sm:$0xff]
    %v3650 = vld [vmem:[#allocation12 + $0x1d8] sm:$0xff]
    %v3651 = vld [vmem:[#allocation12 + $0x1e0] sm:$0xff]
    %v3652 = vld [vmem:[#allocation12 + $0x1e8] sm:$0xff]
    %v3653 = vld [vmem:[#allocation12 + $0x1f0] sm:$0xff]
    %v3654 = vld [vmem:[#allocation12 + $0x1f8] sm:$0xff]
    %v3655 = vld [vmem:[%s12] sm:$0x1]
    %v3657 = vlaneseq
    %v3658 = vshrl.u32 %v3657, 7
    %v3659 = vsub.s32 0, %v3658
    %v3660 = vrot.slane %v3655, %v3659
    %3662 = vmatprep.subr.mxu0 0.0
    %3663 = vmatpush1.msra.mxu0 %v3606
    %3664 = vmatprep.subr.mxu0 0.0
    %3665 = vmatpush1.msra.mxu0 %v3605
    %3666 = vmatprep.subr.mxu0 0.0
    %3667 = vmatpush1.msra.mxu0 %v3604
    %3668 = vmatprep.subr.mxu0 0.0
    %3669 = vmatpush1.msra.mxu0 %v3603
    %3670 = vmatprep.subr.mxu0 0.0
    %3671 = vmatpush1.msra.mxu0 %v3602
    %3672 = vmatprep.subr.mxu0 0.0
    %3673 = vmatpush1.msra.mxu0 %v3601
    %3674 = vmatprep.subr.mxu0 0.0
    %3675 = vmatpush1.msra.mxu0 %v3600
    %3676 = vmatprep.subr.mxu0 0.0
    %3677 = vmatpush1.msra.mxu0 %v3599
    %3678 = vmatprep.subr.mxu0 0.0
    %3679 = vmatpush1.msra.mxu0 %v3598
    %3680 = vmatprep.subr.mxu0 0.0
    %3681 = vmatpush1.msra.mxu0 %v3597
    %3682 = vmatprep.subr.mxu0 0.0
    %3683 = vmatpush1.msra.mxu0 %v3596
    %3684 = vmatprep.subr.mxu0 0.0
    %3685 = vmatpush1.msra.mxu0 %v3595
    %3686 = vmatprep.subr.mxu0 0.0
    %3687 = vmatpush1.msra.mxu0 %v3594
    %3688 = vmatprep.subr.mxu0 0.0
    %3689 = vmatpush1.msra.mxu0 %v3593
    %3690 = vmatprep.subr.mxu0 0.0
    %3691 = vmatpush1.msra.mxu0 %v3592
    %3692 = vmatprep.subr.mxu0 0.0
    %3693 = vmatpush1.msra.mxu0 %v3591
    %3694 = vmatprep.subr.mxu0 0.0
    %3695 = vmatpush2.msra.mxu0 %v3622
    %3696 = vmatprep.subr.mxu0 0.0
    %3697 = vmatpush2.msra.mxu0 %v3621
    %3698 = vmatprep.subr.mxu0 0.0
    %3699 = vmatpush2.msra.mxu0 %v3620
    %3700 = vmatprep.subr.mxu0 0.0
    %3701 = vmatpush2.msra.mxu0 %v3619
    %3702 = vmatprep.subr.mxu0 0.0
    %3703 = vmatpush2.msra.mxu0 %v3618
    %3704 = vmatprep.subr.mxu0 0.0
    %3705 = vmatpush2.msra.mxu0 %v3617
    %3706 = vmatprep.subr.mxu0 0.0
    %3707 = vmatpush2.msra.mxu0 %v3616
    %3708 = vmatprep.subr.mxu0 0.0
    %3709 = vmatpush2.msra.mxu0 %v3615
    %3710 = vmatprep.subr.mxu0 0.0
    %3711 = vmatpush2.msra.mxu0 %v3614
    %3712 = vmatprep.subr.mxu0 0.0
    %3713 = vmatpush2.msra.mxu0 %v3613
    %3714 = vmatprep.subr.mxu0 0.0
    %3715 = vmatpush2.msra.mxu0 %v3612
    %3716 = vmatprep.subr.mxu0 0.0
    %3717 = vmatpush2.msra.mxu0 %v3611
    %3718 = vmatprep.subr.mxu0 0.0
    %3719 = vmatpush2.msra.mxu0 %v3610
    %3720 = vmatprep.subr.mxu0 0.0
    %3721 = vmatpush2.msra.mxu0 %v3609
    %3722 = vmatprep.subr.mxu0 0.0
    %3723 = vmatpush2.msra.mxu0 %v3608
    %3724 = vmatprep.subr.mxu0 0.0
    %3725 = vmatpush2.msra.mxu0 %v3607
    %3726 = vmatprep.mubr.f32.mxu0 %v3576
    %3727 = vmatmul.mubr.f32.gmra.mxu0 %v3575
    %v3728 = vpop.f32.mrf.mxu0
    %v3729 = vadd.f32 %v3660, %v3728
    %v3730 = vpop.f32.mrf.mxu0
    %3731 = vmatprep.mubr.f32.mxu0 %v3580
    %3732 = vmatmul.mubr.f32.gmra.mxu0 %v3579
    %v3733 = vpop.f32.mrf.mxu0
    %v3734 = vadd.f32 %v3660, %v3733
    %v3735 = vpop.f32.mrf.mxu0
    %3736 = vmatprep.mubr.f32.mxu0 %v3584
    %3737 = vmatmul.mubr.f32.gmra.mxu0 %v3583
    %v3738 = vpop.f32.mrf.mxu0
    %v3739 = vadd.f32 %v3660, %v3738
    %v3740 = vpop.f32.mrf.mxu0
    %3741 = vmatprep.mubr.f32.mxu0 %v3588
    %3742 = vmatmul.mubr.f32.gmra.mxu0 %v3587
    %v3743 = vpop.f32.mrf.mxu0
    %v3744 = vadd.f32 %v3660, %v3743
    %v3745 = vpop.f32.mrf.mxu0
    %3746 = vdwg.mxu0
    %3747 = vmatprep.subr.mxu0 0.0
    %3748 = vmatpush1.msra.mxu0 %v3638
    %3749 = vmatprep.subr.mxu0 0.0
    %3750 = vmatpush1.msra.mxu0 %v3637
    %3751 = vmatprep.subr.mxu0 0.0
    %3752 = vmatpush1.msra.mxu0 %v3636
    %3753 = vmatprep.subr.mxu0 0.0
    %3754 = vmatpush1.msra.mxu0 %v3635
    %3755 = vmatprep.subr.mxu0 0.0
    %3756 = vmatpush1.msra.mxu0 %v3634
    %3757 = vmatprep.subr.mxu0 0.0
    %3758 = vmatpush1.msra.mxu0 %v3633
    %3759 = vmatprep.subr.mxu0 0.0
    %3760 = vmatpush1.msra.mxu0 %v3632
    %3761 = vmatprep.subr.mxu0 0.0
    %3762 = vmatpush1.msra.mxu0 %v3631
    %3763 = vmatprep.subr.mxu0 0.0
    %3764 = vmatpush1.msra.mxu0 %v3630
    %3765 = vmatprep.subr.mxu0 0.0
    %3766 = vmatpush1.msra.mxu0 %v3629
    %3767 = vmatprep.subr.mxu0 0.0
    %3768 = vmatpush1.msra.mxu0 %v3628
    %3769 = vmatprep.subr.mxu0 0.0
    %3770 = vmatpush1.msra.mxu0 %v3627
    %3771 = vmatprep.subr.mxu0 0.0
    %3772 = vmatpush1.msra.mxu0 %v3626
    %3773 = vmatprep.subr.mxu0 0.0
    %3774 = vmatpush1.msra.mxu0 %v3625
    %3775 = vmatprep.subr.mxu0 0.0
    %3776 = vmatpush1.msra.mxu0 %v3624
    %3777 = vmatprep.subr.mxu0 0.0
    %3778 = vmatpush1.msra.mxu0 %v3623
    %3779 = vmatprep.subr.mxu0 0.0
    %3780 = vmatpush2.msra.mxu0 %v3654
    %3781 = vmatprep.subr.mxu0 0.0
    %3782 = vmatpush2.msra.mxu0 %v3653
    %3783 = vmatprep.subr.mxu0 0.0
    %3784 = vmatpush2.msra.mxu0 %v3652
    %3785 = vmatprep.subr.mxu0 0.0
    %3786 = vmatpush2.msra.mxu0 %v3651
    %3787 = vmatprep.subr.mxu0 0.0
    %3788 = vmatpush2.msra.mxu0 %v3650
    %3789 = vmatprep.subr.mxu0 0.0
    %3790 = vmatpush2.msra.mxu0 %v3649
    %3791 = vmatprep.subr.mxu0 0.0
    %3792 = vmatpush2.msra.mxu0 %v3648
    %3793 = vmatprep.subr.mxu0 0.0
    %3794 = vmatpush2.msra.mxu0 %v3647
    %3795 = vmatprep.subr.mxu0 0.0
    %3796 = vmatpush2.msra.mxu0 %v3646
    %3797 = vmatprep.subr.mxu0 0.0
    %3798 = vmatpush2.msra.mxu0 %v3645
    %3799 = vmatprep.subr.mxu0 0.0
    %3800 = vmatpush2.msra.mxu0 %v3644
    %3801 = vmatprep.subr.mxu0 0.0
    %3802 = vmatpush2.msra.mxu0 %v3643
    %3803 = vmatprep.subr.mxu0 0.0
    %3804 = vmatpush2.msra.mxu0 %v3642
    %3805 = vmatprep.subr.mxu0 0.0
    %3806 = vmatpush2.msra.mxu0 %v3641
    %3807 = vmatprep.subr.mxu0 0.0
    %3808 = vmatpush2.msra.mxu0 %v3640
    %3809 = vmatprep.subr.mxu0 0.0
    %3810 = vmatpush2.msra.mxu0 %v3639
    %3811 = vmatprep.mubr.f32.mxu0 %v3578
    %3812 = vmatmul.mubr.f32.gmra.mxu0 %v3577
    %v3813 = vpop.f32.mrf.mxu0
    %v3814 = vadd.f32 %v3729, %v3813
    %v3815 = vpop.f32.mrf.mxu0
    %3816 = vmatprep.mubr.f32.mxu0 %v3582
    %3817 = vmatmul.mubr.f32.gmra.mxu0 %v3581
    %v3818 = vpop.f32.mrf.mxu0
    %v3819 = vadd.f32 %v3734, %v3818
    %v3820 = vpop.f32.mrf.mxu0
    %3821 = vmatprep.mubr.f32.mxu0 %v3586
    %3822 = vmatmul.mubr.f32.gmra.mxu0 %v3585
    %v3823 = vpop.f32.mrf.mxu0
    %v3824 = vadd.f32 %v3739, %v3823
    %v3825 = vpop.f32.mrf.mxu0
    %3826 = vmatprep.mubr.f32.mxu0 %v3590
    %3827 = vmatmul.mubr.f32.gmra.mxu0 %v3589
    %v3828 = vpop.f32.mrf.mxu0
    %v3829 = vadd.f32 %v3744, %v3828
    %v3830 = vpop.f32.mrf.mxu0
    %3831 = vdwg.mxu0
    %v3832 = vadd.f32 %v3241, %v3814
    %v3833 = vadd.f32 %v3242, %v3819
    %v3834 = vadd.f32 %v3243, %v3824
    %v3835 = vadd.f32 %v3244, %v3829
    %3836 = vst [vmem:[#allocation14] sm:$0xff] %v3832
    %3837 = vst [vmem:[#allocation14 + $0x8] sm:$0xff] %v3833
    %3838 = vst [vmem:[#allocation14 + $0x10] sm:$0xff] %v3834
    %3839 = vst [vmem:[#allocation14 + $0x18] sm:$0xff] %v3835
    // Predicated region
    $region78: #{tpu_custom_call.1} parent=1 // pred_check
      _
    $region79: #{tpu_custom_call.1} parent=1 // pred_check_branch
      %3841 = sbr.rel (0) target = $region81
    $region80: #{tpu_custom_call.1} parent=1 // pred_region
      %s3843 = ssub.s32 512, 512
      %3844 = vsyncadd [#allocation5], %s3843
      %s3845 = sshll.u32 [#allocation14], 4
      %s3846 = int_to_ptr.vmem [resolvable:$true] %s3845
      %3851 = dma.vmem_to_hbm [thread:$0]  %s3846, 512, %s13, [#allocation5], 128, 128, 8
    $region81: #{tpu_custom_call.1} parent=1 // pred_fallthru
      _
    // Predicated region
    $region82: #{tpu_custom_call.1} parent=1 // pred_check
      _
    $region83: #{tpu_custom_call.1} parent=1 // pred_check_branch
      %3853 = sbr.rel (0) target = $region85
    $region84: #{tpu_custom_call.1} parent=1 // pred_region
      %3854 = dma.done [#allocation5], 512
    $region85: #{tpu_custom_call.1} parent=1 // pred_fallthru
      _
    %3855 = vsyncpa [#allocation4], 1
    %3856 = vsyncpa [#allocation7], 1
    %3857 = vsyncpa [#allocation10], 1
    %3858 = vsyncpa [#allocation13], 1
    %3859 = vsyncpa [#allocation5], 1

</llo_original>
